<compile_context>
chip_gen: v5e
topology: v5e:2x2
jax: 0.10.0
libtpu: 0.0.40
codegen_flags: <defaults>
</compile_context>

<pallas_src>
import functools

import jax
import jax.numpy as jnp
from jax import lax
from jax.experimental import pallas as pl
from jax.experimental.pallas import tpu as pltpu


# Constants for the supported config (img_size=32, patch_size=16).
IMG = 32                                   # input spatial size (= a-trous grid side)
GRID = IMG * IMG                           # 1024 flattened grid positions (lane dim)
N_PATCH_SIDE = IMG // 16                   # 2   (ConvStem requires patch_size=16)
N_PATCHES = N_PATCH_SIDE * N_PATCH_SIDE    # 4
DILS = (1, 2, 4, 8)                        # a-trous dilation of stem layer l
PADS = tuple(33 * d for d in DILS)         # zero lane-pad of layer l's INPUT slab
CP = 16                                    # channel padding = one bf16 sublane tile


# ------------------------------ kernel body -------------------------------- #

def _zero_lane_pads(ref, pad):
    """Zero the lane pads (which realize conv zero-padding) of a flat slab."""
    c, w = ref.shape
    ref[:, 0:pad] = jnp.zeros((c, pad), ref.dtype)
    ref[:, pad + GRID:w] = jnp.zeros((c, w - pad - GRID), ref.dtype)


def _atrous_conv(in_ref, pad, w_ref, s_ref, t_ref, dil):
    """Conv3x3(stride 1, dilation=dil) + BN(eval) + ReLU over the full flat grid.

    in_ref: (cin, pad + GRID + pad) bf16 slab, zero lane pads (pad >= 33*dil).
    w_ref : (cout, 9*cin) bf16 -- taps concatenated kh-major, kw, cin-minor.
    Returns the (cout, GRID) bf16 activation (positions in lanes).
    """
    lane = lax.broadcasted_iota(jnp.int32, (1, GRID), 1)
    col = lane % IMG                              # output column of each position
    taps = []
    for kh in (-1, 0, 1):
        for kw in (-1, 0, 1):
            start = pad + (kh * IMG + kw) * dil   # static lane offset
            tap = in_ref[:, start:start + GRID]   # (cin, GRID) bf16
            # The zero lane pads already cover rows falling off the top/bottom
            # of the image; only columns wrapping into a neighbouring row need
            # masking (kw == 0 taps never wrap).
            if kw == -1:
                tap = jnp.where(col >= dil, tap, jnp.zeros_like(tap))
            elif kw == 1:
                tap = jnp.where(col < IMG - dil, tap, jnp.zeros_like(tap))
            taps.append(tap)
    patches = jnp.concatenate(taps, axis=0)       # (9*cin, GRID) bf16 im2col
    acc = jnp.dot(w_ref[...], patches,
                  preferred_element_type=jnp.float32)          # (cout, GRID) f32
    y = jnp.maximum(acc * s_ref[...] + t_ref[...], 0.0)        # folded BN + ReLU
    return y.astype(jnp.bfloat16)


def _conv_stem_kernel(x_ref,
                      w1, s1, t1, w2, s2, t2, w3, s3, t3, w4, s4, t4,
                      wp_ref, bp_ref,
                      o_ref,
                      xp_ref, z1_ref, z2_ref, z3_ref):
    # Scratch persists across grid steps and each core owns its own copy, so
    # the zero borders are (cheaply) re-established every step.
    xp_ref[...] = jnp.zeros_like(xp_ref)          # also zeroes channels 3..CP-1
    _zero_lane_pads(z1_ref, PADS[1])
    _zero_lane_pads(z2_ref, PADS[2])
    _zero_lane_pads(z3_ref, PADS[3])

    n_img, cin0, _ = x_ref.shape
    embed = bp_ref.shape[1] // N_PATCHES

    for bi in range(n_img):                       # images folded into this step
        # Stage the raw NCHW image ((3, 1024) flat) into the slab interior.
        xp_ref[0:cin0, PADS[0]:PADS[0] + GRID] = x_ref[bi].astype(jnp.bfloat16)

        # Stride-2 convs evaluated a trous (stride 1, dilation 2^l on the full
        # 32x32 grid); the true layer-l outputs sit at grid points that are
        # multiples of 2^l -- the only positions read downstream.
        y1 = _atrous_conv(xp_ref, PADS[0], w1, s1, t1, DILS[0])
        z1_ref[:, PADS[1]:PADS[1] + GRID] = y1
        y2 = _atrous_conv(z1_ref, PADS[1], w2, s2, t2, DILS[1])
        z2_ref[:, PADS[2]:PADS[2] + GRID] = y2
        y3 = _atrous_conv(z2_ref, PADS[2], w3, s3, t3, DILS[2])
        z3_ref[:, PADS[3]:PADS[3] + GRID] = y3
        z4 = _atrous_conv(z3_ref, PADS[3], w4, s4, t4, DILS[3])   # (C4, GRID)

        # The 2x2 patch grid lives at a-trous positions (16*oh, 16*ow),
        # i.e. flattened lanes {0, 16, 512, 528} (row-major over (oh, ow)).
        step = IMG // N_PATCH_SIDE
        pos = [oh * step * IMG + ow * step
               for oh in range(N_PATCH_SIDE) for ow in range(N_PATCH_SIDE)]
        c4 = z4.shape[0]

        # Final 1x1 conv (+bias): out[p*E + e] = sum_c z4[c, pos_p]*Wp[c, e]+b[e].
        # Realized as lane-broadcast of each patch column against a pre-tiled
        # (C4, 4*E) weight followed by a sublane reduction, so the flattened
        # (patch, embed) output needs no transpose and is a single lane-dense
        # (1, 128) store.
        hrep = jnp.concatenate(
            [jnp.broadcast_to(z4[:, p:p + 1], (c4, embed)) for p in pos],
            axis=1).astype(jnp.float32)                           # (C4, 4*E)
        out = jnp.sum(hrep * wp_ref[...], axis=0, keepdims=True) + bp_ref[...]
        o_ref[bi] = out                                           # (1, 4*E) f32
        # norm_layer=None -> nn.Identity, so no trailing norm is applied.


# ------------------------------- wrapper ----------------------------------- #

def _r_up(n, m):
    return ((n + m - 1) // m) * m


def conv_stem_forward(x_nchw, params, *, batch_block=1):
    """Matches ConvStem.forward: proj(x), flatten(2).transpose(1, 2), Identity."""
    B, C, H, W = x_nchw.shape
    assert (H, W) == (IMG, IMG) and C == 3, (B, C, H, W)
    assert B % batch_block == 0, (B, batch_block)
    assert len(params["stem"]) == 4
    assert all(p == 33 * d for p, d in zip(PADS, DILS))   # zero border >= reach

    # Free row-major flatten of the NCHW input; all padding happens in-kernel.
    x = x_nchw.astype(jnp.float32).reshape(B, C, H * W)

    stem_in = []
    co_pads = []
    prev_cp = None
    ci_p0 = None
    for (w_oihw, bn_scale, bn_shift) in params["stem"]:
        cout, cin = int(w_oihw.shape[0]), int(w_oihw.shape[1])
        ci_p = _r_up(max(cin, CP), CP)
        co_p = _r_up(max(cout, CP), CP)
        if prev_cp is None:
            ci_p0 = ci_p
        else:
            assert ci_p == prev_cp, (ci_p, prev_cp)       # slab channel chain
        prev_cp = co_p
        co_pads.append(co_p)
        # (cout, cin, 3, 3) -> zero-padded -> (cout_p, 3, 3, cin_p) -> (cout_p, 9*cin_p)
        w = jnp.zeros((co_p, ci_p, 3, 3), jnp.float32)
        w = w.at[:cout, :cin].set(w_oihw.astype(jnp.float32))
        wcat = jnp.transpose(w, (0, 2, 3, 1)).reshape(co_p, 9 * ci_p)
        sc = jnp.zeros((co_p, 1), jnp.float32).at[:cout, 0].set(bn_scale)
        sh = jnp.zeros((co_p, 1), jnp.float32).at[:cout, 0].set(bn_shift)
        stem_in += [wcat.astype(jnp.bfloat16), sc, sh]

    w1, b1 = params["proj"]                              # (E, C4, 1, 1), (E,)
    E, c4 = int(w1.shape[0]), int(w1.shape[1])
    wp = jnp.zeros((co_pads[-1], E), jnp.float32).at[:c4, :].set(
        jnp.transpose(w1[:, :, 0, 0], (1, 0)))
    wtile = jnp.tile(wp, (1, N_PATCHES))                 # (C4p, 4*E) f32
    btile = jnp.tile(b1.reshape(1, E).astype(jnp.float32), (1, N_PATCHES))

    bb = batch_block

    def _full(a):
        return pl.BlockSpec(a.shape, lambda g: (0,) * a.ndim)

    in_specs = ([pl.BlockSpec((bb, C, H * W), lambda g: (g, 0, 0))]
                + [_full(a) for a in stem_in]
                + [_full(wtile), _full(btile)])
    out_specs = pl.BlockSpec((bb, 1, N_PATCHES * E), lambda g: (g, 0, 0))

    # Zero-lane-padded bf16 activation slabs (positions-in-lanes layout),
    # ~160 KiB total -- vs ~3.6 MiB of lane-padded scratch in the old layout.
    scratch = [pltpu.VMEM((ci_p0,      2 * PADS[0] + GRID), jnp.bfloat16),
               pltpu.VMEM((co_pads[0], 2 * PADS[1] + GRID), jnp.bfloat16),
               pltpu.VMEM((co_pads[1], 2 * PADS[2] + GRID), jnp.bfloat16),
               pltpu.VMEM((co_pads[2], 2 * PADS[3] + GRID), jnp.bfloat16)]

    out = pl.pallas_call(
        _conv_stem_kernel,
        out_shape=jax.ShapeDtypeStruct((B, 1, N_PATCHES * E), jnp.float32),
        grid=(B // bb,),
        in_specs=in_specs,
        out_specs=out_specs,
        scratch_shapes=scratch,
        compiler_params=pltpu.CompilerParams(
            dimension_semantics=("parallel",)),   # batch across TCs on v7x
    )(x, *stem_in, wtile, btile)
    return out.reshape(B, N_PATCHES, E)


# -------------------------- params & pure-JAX ref --------------------------- #

def init_params(key, embed_dim=32):
    """Deterministic synthetic parameters matching ConvStem.__init__ shapes."""
    dims = [3] + [(embed_dim // 8) * (2 ** l) for l in range(4)]   # [3,4,8,16,32]
    keys = jax.random.split(key, 6)
    stem = []
    eps = 1e-5
    for l in range(4):
        cin, cout = dims[l], dims[l + 1]
        w = jax.random.normal(keys[l], (cout, cin, 3, 3), jnp.float32) * 0.1
        gamma = 1.0 + 0.01 * jnp.arange(cout, dtype=jnp.float32)
        beta = 0.02 * jnp.arange(cout, dtype=jnp.float32)
        rmean = 0.03 * jnp.arange(cout, dtype=jnp.float32)
        rvar = 1.0 + 0.05 * jnp.arange(cout, dtype=jnp.float32)
        scale = gamma / jnp.sqrt(rvar + eps)        # fold eval-mode BN into affine
        shift = beta - rmean * scale
        stem.append((w, scale, shift))
    w1 = jax.random.normal(keys[4], (embed_dim, dims[-1], 1, 1), jnp.float32) * 0.1
    b1 = jax.random.normal(keys[5], (embed_dim,), jnp.float32) * 0.1
    return {"stem": stem, "proj": (w1, b1)}


def reference_forward(x_nchw, params):
    x = x_nchw.astype(jnp.float32)
    for (w, scale, shift) in params["stem"]:
        x = lax.conv_general_dilated(
            x, w, (2, 2), ((1, 1), (1, 1)),
            dimension_numbers=("NCHW", "OIHW", "NCHW"),
            precision=lax.Precision.HIGHEST)
        x = x * scale[None, :, None, None] + shift[None, :, None, None]
        x = jnp.maximum(x, 0.0)
    w1, b1 = params["proj"]
    x = lax.conv_general_dilated(
        x, w1, (1, 1), ((0, 0), (0, 0)),
        dimension_numbers=("NCHW", "OIHW", "NCHW"),
        precision=lax.Precision.HIGHEST)
    x = x + b1[None, :, None, None]
    B, C, H, W = x.shape
    return jnp.transpose(x.reshape(B, C, H * W), (0, 2, 1))


if __name__ == "__main__":
    key = jax.random.PRNGKey(0)
    k_x, k_p = jax.random.split(key)

    B, C, H, W = 2, 3, 32, 32          # img_size=32, patch_size=16 -> 2x2 patches
    embed_dim = 32
    x = jax.random.normal(k_x, (B, C, H, W), jnp.float32)
    params = init_params(k_p, embed_dim=embed_dim)

    ref = jax.block_until_ready(reference_forward(x, params))

    # batch_block=1 -> 2 "parallel" grid steps (v7x megacore);
    # batch_block=2 -> both images folded into one step (serial-grid v5e/v6e).
    for bb in (1, 2):
        fwd = jax.jit(functools.partial(conv_stem_forward, batch_block=bb))
        out = jax.block_until_ready(fwd(x, params))
        assert out.shape == (B, (H // 16) * (W // 16), embed_dim), out.shape
        # bf16 MXU operands (f32 accumulate) vs HIGHEST-precision XLA reference.
        err = float(jnp.abs(out - ref).max())
        assert jnp.allclose(out, ref, rtol=2e-2, atol=2e-2), (bb, err)

    print("KERNEL_OK")
</pallas_src>

<mosaic_0001>
module attributes {stable_mosaic.version = 11 : i64} {
  func.func @_conv_stem_kernel(%arg0: i32, %arg1: memref<1x3x1024xf32, #tpu.memory_space<vmem>>, %arg2: memref<16x144xbf16, #tpu.memory_space<vmem>>, %arg3: memref<16x1xf32, #tpu.memory_space<vmem>>, %arg4: memref<16x1xf32, #tpu.memory_space<vmem>>, %arg5: memref<16x144xbf16, #tpu.memory_space<vmem>>, %arg6: memref<16x1xf32, #tpu.memory_space<vmem>>, %arg7: memref<16x1xf32, #tpu.memory_space<vmem>>, %arg8: memref<16x144xbf16, #tpu.memory_space<vmem>>, %arg9: memref<16x1xf32, #tpu.memory_space<vmem>>, %arg10: memref<16x1xf32, #tpu.memory_space<vmem>>, %arg11: memref<32x144xbf16, #tpu.memory_space<vmem>>, %arg12: memref<32x1xf32, #tpu.memory_space<vmem>>, %arg13: memref<32x1xf32, #tpu.memory_space<vmem>>, %arg14: memref<32x128xf32, #tpu.memory_space<vmem>>, %arg15: memref<1x128xf32, #tpu.memory_space<vmem>>, %arg16: memref<1x1x128xf32, #tpu.memory_space<vmem>>, %arg17: memref<16x1090xbf16, #tpu.memory_space<vmem>>, %arg18: memref<16x1156xbf16, #tpu.memory_space<vmem>>, %arg19: memref<16x1288xbf16, #tpu.memory_space<vmem>>, %arg20: memref<16x1552xbf16, #tpu.memory_space<vmem>>) attributes {dimension_semantics = [#tpu.dimension_semantics<parallel>], iteration_bounds = array<i64: 2>, scalar_prefetch = 0 : i64, scratch_operands = 4 : i64, tpu.core_type = #tpu.core_type<tc>, window_params = [{transform_indices = @transform_0, window_bounds = array<i64: 1, 3, 1024>}, {pipeline_mode = #tpu.pipeline_mode<synchronous>, transform_indices = @transform_1, window_bounds = array<i64: 16, 144>}, {pipeline_mode = #tpu.pipeline_mode<synchronous>, transform_indices = @transform_2, window_bounds = array<i64: 16, 1>}, {pipeline_mode = #tpu.pipeline_mode<synchronous>, transform_indices = @transform_3, window_bounds = array<i64: 16, 1>}, {pipeline_mode = #tpu.pipeline_mode<synchronous>, transform_indices = @transform_4, window_bounds = array<i64: 16, 144>}, {pipeline_mode = #tpu.pipeline_mode<synchronous>, transform_indices = @transform_5, window_bounds = array<i64: 16, 1>}, {pipeline_mode = #tpu.pipeline_mode<synchronous>, transform_indices = @transform_6, window_bounds = array<i64: 16, 1>}, {pipeline_mode = #tpu.pipeline_mode<synchronous>, transform_indices = @transform_7, window_bounds = array<i64: 16, 144>}, {pipeline_mode = #tpu.pipeline_mode<synchronous>, transform_indices = @transform_8, window_bounds = array<i64: 16, 1>}, {pipeline_mode = #tpu.pipeline_mode<synchronous>, transform_indices = @transform_9, window_bounds = array<i64: 16, 1>}, {pipeline_mode = #tpu.pipeline_mode<synchronous>, transform_indices = @transform_10, window_bounds = array<i64: 32, 144>}, {pipeline_mode = #tpu.pipeline_mode<synchronous>, transform_indices = @transform_11, window_bounds = array<i64: 32, 1>}, {pipeline_mode = #tpu.pipeline_mode<synchronous>, transform_indices = @transform_12, window_bounds = array<i64: 32, 1>}, {pipeline_mode = #tpu.pipeline_mode<synchronous>, transform_indices = @transform_13, window_bounds = array<i64: 32, 128>}, {pipeline_mode = #tpu.pipeline_mode<synchronous>, transform_indices = @transform_14, window_bounds = array<i64: 1, 128>}, {transform_indices = @transform_15, window_bounds = array<i64: 1, 1, 128>}]} {
    %cst = arith.constant 0.000000e+00 : bf16
    %0 = vector.broadcast %cst : bf16 to vector<16x1090xbf16>
    %c0 = arith.constant 0 : index
    %c0_0 = arith.constant 0 : index
    %1 = vector.load %arg17[%c0, %c0_0] : memref<16x1090xbf16, #tpu.memory_space<vmem>>, vector<16x1090xbf16>
    tpu.vector_store %arg17[%c0, %c0_0], %0 {strides = array<i32>} : memref<16x1090xbf16, #tpu.memory_space<vmem>>, vector<16x1090xbf16>,
    %cst_1 = arith.constant 0.000000e+00 : bf16
    %2 = vector.broadcast %cst_1 : bf16 to vector<16x66xbf16>
    %c0_2 = arith.constant 0 : index
    %c0_3 = arith.constant 0 : index
    %3 = vector.load %arg18[%c0_2, %c0_3] : memref<16x1156xbf16, #tpu.memory_space<vmem>>, vector<16x66xbf16>
    tpu.vector_store %arg18[%c0_2, %c0_3], %2 {strides = array<i32>} : memref<16x1156xbf16, #tpu.memory_space<vmem>>, vector<16x66xbf16>,
    %cst_4 = arith.constant 0.000000e+00 : bf16
    %4 = vector.broadcast %cst_4 : bf16 to vector<16x66xbf16>
    %c0_5 = arith.constant 0 : index
    %c1090 = arith.constant 1090 : index
    %5 = vector.load %arg18[%c0_5, %c1090] : memref<16x1156xbf16, #tpu.memory_space<vmem>>, vector<16x66xbf16>
    tpu.vector_store %arg18[%c0_5, %c1090], %4 {strides = array<i32>} : memref<16x1156xbf16, #tpu.memory_space<vmem>>, vector<16x66xbf16>,
    %cst_6 = arith.constant 0.000000e+00 : bf16
    %6 = vector.broadcast %cst_6 : bf16 to vector<16x132xbf16>
    %c0_7 = arith.constant 0 : index
    %c0_8 = arith.constant 0 : index
    %7 = vector.load %arg19[%c0_7, %c0_8] : memref<16x1288xbf16, #tpu.memory_space<vmem>>, vector<16x132xbf16>
    tpu.vector_store %arg19[%c0_7, %c0_8], %6 {strides = array<i32>} : memref<16x1288xbf16, #tpu.memory_space<vmem>>, vector<16x132xbf16>,
    %cst_9 = arith.constant 0.000000e+00 : bf16
    %8 = vector.broadcast %cst_9 : bf16 to vector<16x132xbf16>
    %c0_10 = arith.constant 0 : index
    %c1156 = arith.constant 1156 : index
    %9 = vector.load %arg19[%c0_10, %c1156] : memref<16x1288xbf16, #tpu.memory_space<vmem>>, vector<16x132xbf16>
    tpu.vector_store %arg19[%c0_10, %c1156], %8 {strides = array<i32>} : memref<16x1288xbf16, #tpu.memory_space<vmem>>, vector<16x132xbf16>,
    %cst_11 = arith.constant 0.000000e+00 : bf16
    %10 = vector.broadcast %cst_11 : bf16 to vector<16x264xbf16>
    %c0_12 = arith.constant 0 : index
    %c0_13 = arith.constant 0 : index
    %11 = vector.load %arg20[%c0_12, %c0_13] : memref<16x1552xbf16, #tpu.memory_space<vmem>>, vector<16x264xbf16>
    tpu.vector_store %arg20[%c0_12, %c0_13], %10 {strides = array<i32>} : memref<16x1552xbf16, #tpu.memory_space<vmem>>, vector<16x264xbf16>,
    %cst_14 = arith.constant 0.000000e+00 : bf16
    %12 = vector.broadcast %cst_14 : bf16 to vector<16x264xbf16>
    %c0_15 = arith.constant 0 : index
    %c1288 = arith.constant 1288 : index
    %13 = vector.load %arg20[%c0_15, %c1288] : memref<16x1552xbf16, #tpu.memory_space<vmem>>, vector<16x264xbf16>
    tpu.vector_store %arg20[%c0_15, %c1288], %12 {strides = array<i32>} : memref<16x1552xbf16, #tpu.memory_space<vmem>>, vector<16x264xbf16>,
    %c0_16 = arith.constant 0 : index
    %c0_17 = arith.constant 0 : index
    %c0_18 = arith.constant 0 : index
    %14 = vector.load %arg1[%c0_16, %c0_17, %c0_18] : memref<1x3x1024xf32, #tpu.memory_space<vmem>>, vector<1x3x1024xf32>
    %15 = vector.shape_cast %14 : vector<1x3x1024xf32> to vector<3x1024xf32>
    %16 = arith.truncf %15 : vector<3x1024xf32> to vector<3x1024xbf16>
    %c0_19 = arith.constant 0 : index
    %c33 = arith.constant 33 : index
    %17 = vector.load %arg17[%c0_19, %c33] : memref<16x1090xbf16, #tpu.memory_space<vmem>>, vector<3x1024xbf16>
    tpu.vector_store %arg17[%c0_19, %c33], %16 {strides = array<i32>} : memref<16x1090xbf16, #tpu.memory_space<vmem>>, vector<3x1024xbf16>,
    %18 = tpu.iota {dimensions = array<i32: 1>} : vector<1x1024xi32>
    %c32_i32 = arith.constant 32 : i32
    %c0_i32 = arith.constant 0 : i32
    %19 = arith.cmpi eq, %c32_i32, %c0_i32 : i32
    %c1_i32 = arith.constant 1 : i32
    %20 = arith.select %19, %c1_i32, %c32_i32 : i32
    %21 = vector.broadcast %20 : i32 to vector<1x1024xi32>
    %22 = arith.remsi %18, %21 : vector<1x1024xi32>
    %c0_i32_20 = arith.constant 0 : i32
    %23 = vector.broadcast %c0_i32_20 : i32 to vector<1x1024xi32>
    %24 = arith.cmpi ne, %22, %23 : vector<1x1024xi32>
    %c0_i32_21 = arith.constant 0 : i32
    %25 = vector.broadcast %c0_i32_21 : i32 to vector<1x1024xi32>
    %26 = arith.cmpi slt, %22, %25 : vector<1x1024xi32>
    %c0_i32_22 = arith.constant 0 : i32
    %27 = arith.cmpi slt, %20, %c0_i32_22 : i32
    %28 = vector.broadcast %27 : i1 to vector<1x1024xi1>
    %29 = vector.broadcast %28 : vector<1x1024xi1> to vector<1x1024xi1>
    %30 = arith.xori %26, %29 : vector<1x1024xi1>
    %31 = arith.andi %30, %24 : vector<1x1024xi1>
    %32 = vector.broadcast %20 : i32 to vector<1x1024xi32>
    %33 = arith.addi %22, %32 : vector<1x1024xi32>
    %34 = arith.select %31, %33, %22 : vector<1x1024xi1>, vector<1x1024xi32>
    %c0_23 = arith.constant 0 : index
    %c0_24 = arith.constant 0 : index
    %35 = vector.load %arg17[%c0_23, %c0_24] : memref<16x1090xbf16, #tpu.memory_space<vmem>>, vector<16x1024xbf16>
    %c1_i32_25 = arith.constant 1 : i32
    %36 = vector.broadcast %c1_i32_25 : i32 to vector<1x1024xi32>
    %37 = arith.cmpi sge, %34, %36 : vector<1x1024xi32>
    %cst_26 = arith.constant 0.000000e+00 : bf16
    %38 = vector.broadcast %cst_26 : bf16 to vector<16x1024xbf16>
    %39 = vector.shape_cast %37 : vector<1x1024xi1> to vector<1x1024xi1>
    %40 = vector.broadcast %39 : vector<1x1024xi1> to vector<16x1024xi1>
    %41 = arith.select %40, %35, %38 : vector<16x1024xi1>, vector<16x1024xbf16>
    %c0_27 = arith.constant 0 : index
    %c1 = arith.constant 1 : index
    %42 = vector.load %arg17[%c0_27, %c1] : memref<16x1090xbf16, #tpu.memory_space<vmem>>, vector<16x1024xbf16>
    %c0_28 = arith.constant 0 : index
    %c2 = arith.constant 2 : index
    %43 = vector.load %arg17[%c0_28, %c2] : memref<16x1090xbf16, #tpu.memory_space<vmem>>, vector<16x1024xbf16>
    %c31_i32 = arith.constant 31 : i32
    %44 = vector.broadcast %c31_i32 : i32 to vector<1x1024xi32>
    %45 = arith.cmpi slt, %34, %44 : vector<1x1024xi32>
    %cst_29 = arith.constant 0.000000e+00 : bf16
    %46 = vector.broadcast %cst_29 : bf16 to vector<16x1024xbf16>
    %47 = vector.shape_cast %45 : vector<1x1024xi1> to vector<1x1024xi1>
    %48 = vector.broadcast %47 : vector<1x1024xi1> to vector<16x1024xi1>
    %49 = arith.select %48, %43, %46 : vector<16x1024xi1>, vector<16x1024xbf16>
    %c0_30 = arith.constant 0 : index
    %c32 = arith.constant 32 : index
    %50 = vector.load %arg17[%c0_30, %c32] : memref<16x1090xbf16, #tpu.memory_space<vmem>>, vector<16x1024xbf16>
    %c1_i32_31 = arith.constant 1 : i32
    %51 = vector.broadcast %c1_i32_31 : i32 to vector<1x1024xi32>
    %52 = arith.cmpi sge, %34, %51 : vector<1x1024xi32>
    %cst_32 = arith.constant 0.000000e+00 : bf16
    %53 = vector.broadcast %cst_32 : bf16 to vector<16x1024xbf16>
    %54 = vector.shape_cast %52 : vector<1x1024xi1> to vector<1x1024xi1>
    %55 = vector.broadcast %54 : vector<1x1024xi1> to vector<16x1024xi1>
    %56 = arith.select %55, %50, %53 : vector<16x1024xi1>, vector<16x1024xbf16>
    %c0_33 = arith.constant 0 : index
    %c33_34 = arith.constant 33 : index
    %57 = vector.load %arg17[%c0_33, %c33_34] : memref<16x1090xbf16, #tpu.memory_space<vmem>>, vector<16x1024xbf16>
    %c0_35 = arith.constant 0 : index
    %c34 = arith.constant 34 : index
    %58 = vector.load %arg17[%c0_35, %c34] : memref<16x1090xbf16, #tpu.memory_space<vmem>>, vector<16x1024xbf16>
    %c31_i32_36 = arith.constant 31 : i32
    %59 = vector.broadcast %c31_i32_36 : i32 to vector<1x1024xi32>
    %60 = arith.cmpi slt, %34, %59 : vector<1x1024xi32>
    %cst_37 = arith.constant 0.000000e+00 : bf16
    %61 = vector.broadcast %cst_37 : bf16 to vector<16x1024xbf16>
    %62 = vector.shape_cast %60 : vector<1x1024xi1> to vector<1x1024xi1>
    %63 = vector.broadcast %62 : vector<1x1024xi1> to vector<16x1024xi1>
    %64 = arith.select %63, %58, %61 : vector<16x1024xi1>, vector<16x1024xbf16>
    %c0_38 = arith.constant 0 : index
    %c64 = arith.constant 64 : index
    %65 = vector.load %arg17[%c0_38, %c64] : memref<16x1090xbf16, #tpu.memory_space<vmem>>, vector<16x1024xbf16>
    %c1_i32_39 = arith.constant 1 : i32
    %66 = vector.broadcast %c1_i32_39 : i32 to vector<1x1024xi32>
    %67 = arith.cmpi sge, %34, %66 : vector<1x1024xi32>
    %cst_40 = arith.constant 0.000000e+00 : bf16
    %68 = vector.broadcast %cst_40 : bf16 to vector<16x1024xbf16>
    %69 = vector.shape_cast %67 : vector<1x1024xi1> to vector<1x1024xi1>
    %70 = vector.broadcast %69 : vector<1x1024xi1> to vector<16x1024xi1>
    %71 = arith.select %70, %65, %68 : vector<16x1024xi1>, vector<16x1024xbf16>
    %c0_41 = arith.constant 0 : index
    %c65 = arith.constant 65 : index
    %72 = vector.load %arg17[%c0_41, %c65] : memref<16x1090xbf16, #tpu.memory_space<vmem>>, vector<16x1024xbf16>
    %c0_42 = arith.constant 0 : index
    %c66 = arith.constant 66 : index
    %73 = vector.load %arg17[%c0_42, %c66] : memref<16x1090xbf16, #tpu.memory_space<vmem>>, vector<16x1024xbf16>
    %c31_i32_43 = arith.constant 31 : i32
    %74 = vector.broadcast %c31_i32_43 : i32 to vector<1x1024xi32>
    %75 = arith.cmpi slt, %34, %74 : vector<1x1024xi32>
    %cst_44 = arith.constant 0.000000e+00 : bf16
    %76 = vector.broadcast %cst_44 : bf16 to vector<16x1024xbf16>
    %77 = vector.shape_cast %75 : vector<1x1024xi1> to vector<1x1024xi1>
    %78 = vector.broadcast %77 : vector<1x1024xi1> to vector<16x1024xi1>
    %79 = arith.select %78, %73, %76 : vector<16x1024xi1>, vector<16x1024xbf16>
    %80 = tpu.concatenate %41, %42, %49, %56, %57, %64, %71, %72, %79 in 0 : vector<16x1024xbf16>, vector<16x1024xbf16>, vector<16x1024xbf16>, vector<16x1024xbf16>, vector<16x1024xbf16>, vector<16x1024xbf16>, vector<16x1024xbf16>, vector<16x1024xbf16>, vector<16x1024xbf16> -> vector<144x1024xbf16>
    %c0_45 = arith.constant 0 : index
    %c0_46 = arith.constant 0 : index
    %81 = vector.load %arg2[%c0_45, %c0_46] : memref<16x144xbf16, #tpu.memory_space<vmem>>, vector<16x144xbf16>
    %cst_47 = arith.constant dense<0.000000e+00> : vector<16x1024xf32>
    %82 = tpu.matmul %81, %80, %cst_47 {dimension_numbers = #tpu.dot_dimension_numbers<[1], [0], [0], [1], [0, 0, 1, 1], [], []>} : vector<16x144xbf16>, vector<144x1024xbf16>, vector<16x1024xf32> -> vector<16x1024xf32>
    %c0_48 = arith.constant 0 : index
    %c0_49 = arith.constant 0 : index
    %83 = vector.load %arg3[%c0_48, %c0_49] : memref<16x1xf32, #tpu.memory_space<vmem>>, vector<16x1xf32>
    %84 = vector.broadcast %83 : vector<16x1xf32> to vector<16x1024xf32>
    %85 = arith.mulf %82, %84 : vector<16x1024xf32>
    %c0_50 = arith.constant 0 : index
    %c0_51 = arith.constant 0 : index
    %86 = vector.load %arg4[%c0_50, %c0_51] : memref<16x1xf32, #tpu.memory_space<vmem>>, vector<16x1xf32>
    %87 = vector.broadcast %86 : vector<16x1xf32> to vector<16x1024xf32>
    %88 = arith.addf %85, %87 : vector<16x1024xf32>
    %cst_52 = arith.constant 0.000000e+00 : f32
    %89 = vector.broadcast %cst_52 : f32 to vector<16x1024xf32>
    %90 = arith.maximumf %88, %89 : vector<16x1024xf32>
    %91 = arith.truncf %90 : vector<16x1024xf32> to vector<16x1024xbf16>
    %c0_53 = arith.constant 0 : index
    %c66_54 = arith.constant 66 : index
    %92 = vector.load %arg18[%c0_53, %c66_54] : memref<16x1156xbf16, #tpu.memory_space<vmem>>, vector<16x1024xbf16>
    tpu.vector_store %arg18[%c0_53, %c66_54], %91 {strides = array<i32>} : memref<16x1156xbf16, #tpu.memory_space<vmem>>, vector<16x1024xbf16>,
    %93 = tpu.iota {dimensions = array<i32: 1>} : vector<1x1024xi32>
    %c32_i32_55 = arith.constant 32 : i32
    %c0_i32_56 = arith.constant 0 : i32
    %94 = arith.cmpi eq, %c32_i32_55, %c0_i32_56 : i32
    %c1_i32_57 = arith.constant 1 : i32
    %95 = arith.select %94, %c1_i32_57, %c32_i32_55 : i32
    %96 = vector.broadcast %95 : i32 to vector<1x1024xi32>
    %97 = arith.remsi %93, %96 : vector<1x1024xi32>
    %c0_i32_58 = arith.constant 0 : i32
    %98 = vector.broadcast %c0_i32_58 : i32 to vector<1x1024xi32>
    %99 = arith.cmpi ne, %97, %98 : vector<1x1024xi32>
    %c0_i32_59 = arith.constant 0 : i32
    %100 = vector.broadcast %c0_i32_59 : i32 to vector<1x1024xi32>
    %101 = arith.cmpi slt, %97, %100 : vector<1x1024xi32>
    %c0_i32_60 = arith.constant 0 : i32
    %102 = arith.cmpi slt, %95, %c0_i32_60 : i32
    %103 = vector.broadcast %102 : i1 to vector<1x1024xi1>
    %104 = vector.broadcast %103 : vector<1x1024xi1> to vector<1x1024xi1>
    %105 = arith.xori %101, %104 : vector<1x1024xi1>
    %106 = arith.andi %105, %99 : vector<1x1024xi1>
    %107 = vector.broadcast %95 : i32 to vector<1x1024xi32>
    %108 = arith.addi %97, %107 : vector<1x1024xi32>
    %109 = arith.select %106, %108, %97 : vector<1x1024xi1>, vector<1x1024xi32>
    %c0_61 = arith.constant 0 : index
    %c0_62 = arith.constant 0 : index
    %110 = vector.load %arg18[%c0_61, %c0_62] : memref<16x1156xbf16, #tpu.memory_space<vmem>>, vector<16x1024xbf16>
    %c2_i32 = arith.constant 2 : i32
    %111 = vector.broadcast %c2_i32 : i32 to vector<1x1024xi32>
    %112 = arith.cmpi sge, %109, %111 : vector<1x1024xi32>
    %cst_63 = arith.constant 0.000000e+00 : bf16
    %113 = vector.broadcast %cst_63 : bf16 to vector<16x1024xbf16>
    %114 = vector.shape_cast %112 : vector<1x1024xi1> to vector<1x1024xi1>
    %115 = vector.broadcast %114 : vector<1x1024xi1> to vector<16x1024xi1>
    %116 = arith.select %115, %110, %113 : vector<16x1024xi1>, vector<16x1024xbf16>
    %c0_64 = arith.constant 0 : index
    %c2_65 = arith.constant 2 : index
    %117 = vector.load %arg18[%c0_64, %c2_65] : memref<16x1156xbf16, #tpu.memory_space<vmem>>, vector<16x1024xbf16>
    %c0_66 = arith.constant 0 : index
    %c4 = arith.constant 4 : index
    %118 = vector.load %arg18[%c0_66, %c4] : memref<16x1156xbf16, #tpu.memory_space<vmem>>, vector<16x1024xbf16>
    %c30_i32 = arith.constant 30 : i32
    %119 = vector.broadcast %c30_i32 : i32 to vector<1x1024xi32>
    %120 = arith.cmpi slt, %109, %119 : vector<1x1024xi32>
    %cst_67 = arith.constant 0.000000e+00 : bf16
    %121 = vector.broadcast %cst_67 : bf16 to vector<16x1024xbf16>
    %122 = vector.shape_cast %120 : vector<1x1024xi1> to vector<1x1024xi1>
    %123 = vector.broadcast %122 : vector<1x1024xi1> to vector<16x1024xi1>
    %124 = arith.select %123, %118, %121 : vector<16x1024xi1>, vector<16x1024xbf16>
    %c0_68 = arith.constant 0 : index
    %c64_69 = arith.constant 64 : index
    %125 = vector.load %arg18[%c0_68, %c64_69] : memref<16x1156xbf16, #tpu.memory_space<vmem>>, vector<16x1024xbf16>
    %c2_i32_70 = arith.constant 2 : i32
    %126 = vector.broadcast %c2_i32_70 : i32 to vector<1x1024xi32>
    %127 = arith.cmpi sge, %109, %126 : vector<1x1024xi32>
    %cst_71 = arith.constant 0.000000e+00 : bf16
    %128 = vector.broadcast %cst_71 : bf16 to vector<16x1024xbf16>
    %129 = vector.shape_cast %127 : vector<1x1024xi1> to vector<1x1024xi1>
    %130 = vector.broadcast %129 : vector<1x1024xi1> to vector<16x1024xi1>
    %131 = arith.select %130, %125, %128 : vector<16x1024xi1>, vector<16x1024xbf16>
    %c0_72 = arith.constant 0 : index
    %c66_73 = arith.constant 66 : index
    %132 = vector.load %arg18[%c0_72, %c66_73] : memref<16x1156xbf16, #tpu.memory_space<vmem>>, vector<16x1024xbf16>
    %c0_74 = arith.constant 0 : index
    %c68 = arith.constant 68 : index
    %133 = vector.load %arg18[%c0_74, %c68] : memref<16x1156xbf16, #tpu.memory_space<vmem>>, vector<16x1024xbf16>
    %c30_i32_75 = arith.constant 30 : i32
    %134 = vector.broadcast %c30_i32_75 : i32 to vector<1x1024xi32>
    %135 = arith.cmpi slt, %109, %134 : vector<1x1024xi32>
    %cst_76 = arith.constant 0.000000e+00 : bf16
    %136 = vector.broadcast %cst_76 : bf16 to vector<16x1024xbf16>
    %137 = vector.shape_cast %135 : vector<1x1024xi1> to vector<1x1024xi1>
    %138 = vector.broadcast %137 : vector<1x1024xi1> to vector<16x1024xi1>
    %139 = arith.select %138, %133, %136 : vector<16x1024xi1>, vector<16x1024xbf16>
    %c0_77 = arith.constant 0 : index
    %c128 = arith.constant 128 : index
    %140 = vector.load %arg18[%c0_77, %c128] : memref<16x1156xbf16, #tpu.memory_space<vmem>>, vector<16x1024xbf16>
    %c2_i32_78 = arith.constant 2 : i32
    %141 = vector.broadcast %c2_i32_78 : i32 to vector<1x1024xi32>
    %142 = arith.cmpi sge, %109, %141 : vector<1x1024xi32>
    %cst_79 = arith.constant 0.000000e+00 : bf16
    %143 = vector.broadcast %cst_79 : bf16 to vector<16x1024xbf16>
    %144 = vector.shape_cast %142 : vector<1x1024xi1> to vector<1x1024xi1>
    %145 = vector.broadcast %144 : vector<1x1024xi1> to vector<16x1024xi1>
    %146 = arith.select %145, %140, %143 : vector<16x1024xi1>, vector<16x1024xbf16>
    %c0_80 = arith.constant 0 : index
    %c130 = arith.constant 130 : index
    %147 = vector.load %arg18[%c0_80, %c130] : memref<16x1156xbf16, #tpu.memory_space<vmem>>, vector<16x1024xbf16>
    %c0_81 = arith.constant 0 : index
    %c132 = arith.constant 132 : index
    %148 = vector.load %arg18[%c0_81, %c132] : memref<16x1156xbf16, #tpu.memory_space<vmem>>, vector<16x1024xbf16>
    %c30_i32_82 = arith.constant 30 : i32
    %149 = vector.broadcast %c30_i32_82 : i32 to vector<1x1024xi32>
    %150 = arith.cmpi slt, %109, %149 : vector<1x1024xi32>
    %cst_83 = arith.constant 0.000000e+00 : bf16
    %151 = vector.broadcast %cst_83 : bf16 to vector<16x1024xbf16>
    %152 = vector.shape_cast %150 : vector<1x1024xi1> to vector<1x1024xi1>
    %153 = vector.broadcast %152 : vector<1x1024xi1> to vector<16x1024xi1>
    %154 = arith.select %153, %148, %151 : vector<16x1024xi1>, vector<16x1024xbf16>
    %155 = tpu.concatenate %116, %117, %124, %131, %132, %139, %146, %147, %154 in 0 : vector<16x1024xbf16>, vector<16x1024xbf16>, vector<16x1024xbf16>, vector<16x1024xbf16>, vector<16x1024xbf16>, vector<16x1024xbf16>, vector<16x1024xbf16>, vector<16x1024xbf16>, vector<16x1024xbf16> -> vector<144x1024xbf16>
    %c0_84 = arith.constant 0 : index
    %c0_85 = arith.constant 0 : index
    %156 = vector.load %arg5[%c0_84, %c0_85] : memref<16x144xbf16, #tpu.memory_space<vmem>>, vector<16x144xbf16>
    %cst_86 = arith.constant dense<0.000000e+00> : vector<16x1024xf32>
    %157 = tpu.matmul %156, %155, %cst_86 {dimension_numbers = #tpu.dot_dimension_numbers<[1], [0], [0], [1], [0, 0, 1, 1], [], []>} : vector<16x144xbf16>, vector<144x1024xbf16>, vector<16x1024xf32> -> vector<16x1024xf32>
    %c0_87 = arith.constant 0 : index
    %c0_88 = arith.constant 0 : index
    %158 = vector.load %arg6[%c0_87, %c0_88] : memref<16x1xf32, #tpu.memory_space<vmem>>, vector<16x1xf32>
    %159 = vector.broadcast %158 : vector<16x1xf32> to vector<16x1024xf32>
    %160 = arith.mulf %157, %159 : vector<16x1024xf32>
    %c0_89 = arith.constant 0 : index
    %c0_90 = arith.constant 0 : index
    %161 = vector.load %arg7[%c0_89, %c0_90] : memref<16x1xf32, #tpu.memory_space<vmem>>, vector<16x1xf32>
    %162 = vector.broadcast %161 : vector<16x1xf32> to vector<16x1024xf32>
    %163 = arith.addf %160, %162 : vector<16x1024xf32>
    %cst_91 = arith.constant 0.000000e+00 : f32
    %164 = vector.broadcast %cst_91 : f32 to vector<16x1024xf32>
    %165 = arith.maximumf %163, %164 : vector<16x1024xf32>
    %166 = arith.truncf %165 : vector<16x1024xf32> to vector<16x1024xbf16>
    %c0_92 = arith.constant 0 : index
    %c132_93 = arith.constant 132 : index
    %167 = vector.load %arg19[%c0_92, %c132_93] : memref<16x1288xbf16, #tpu.memory_space<vmem>>, vector<16x1024xbf16>
    tpu.vector_store %arg19[%c0_92, %c132_93], %166 {strides = array<i32>} : memref<16x1288xbf16, #tpu.memory_space<vmem>>, vector<16x1024xbf16>,
    %168 = tpu.iota {dimensions = array<i32: 1>} : vector<1x1024xi32>
    %c32_i32_94 = arith.constant 32 : i32
    %c0_i32_95 = arith.constant 0 : i32
    %169 = arith.cmpi eq, %c32_i32_94, %c0_i32_95 : i32
    %c1_i32_96 = arith.constant 1 : i32
    %170 = arith.select %169, %c1_i32_96, %c32_i32_94 : i32
    %171 = vector.broadcast %170 : i32 to vector<1x1024xi32>
    %172 = arith.remsi %168, %171 : vector<1x1024xi32>
    %c0_i32_97 = arith.constant 0 : i32
    %173 = vector.broadcast %c0_i32_97 : i32 to vector<1x1024xi32>
    %174 = arith.cmpi ne, %172, %173 : vector<1x1024xi32>
    %c0_i32_98 = arith.constant 0 : i32
    %175 = vector.broadcast %c0_i32_98 : i32 to vector<1x1024xi32>
    %176 = arith.cmpi slt, %172, %175 : vector<1x1024xi32>
    %c0_i32_99 = arith.constant 0 : i32
    %177 = arith.cmpi slt, %170, %c0_i32_99 : i32
    %178 = vector.broadcast %177 : i1 to vector<1x1024xi1>
    %179 = vector.broadcast %178 : vector<1x1024xi1> to vector<1x1024xi1>
    %180 = arith.xori %176, %179 : vector<1x1024xi1>
    %181 = arith.andi %180, %174 : vector<1x1024xi1>
    %182 = vector.broadcast %170 : i32 to vector<1x1024xi32>
    %183 = arith.addi %172, %182 : vector<1x1024xi32>
    %184 = arith.select %181, %183, %172 : vector<1x1024xi1>, vector<1x1024xi32>
    %c0_100 = arith.constant 0 : index
    %c0_101 = arith.constant 0 : index
    %185 = vector.load %arg19[%c0_100, %c0_101] : memref<16x1288xbf16, #tpu.memory_space<vmem>>, vector<16x1024xbf16>
    %c4_i32 = arith.constant 4 : i32
    %186 = vector.broadcast %c4_i32 : i32 to vector<1x1024xi32>
    %187 = arith.cmpi sge, %184, %186 : vector<1x1024xi32>
    %cst_102 = arith.constant 0.000000e+00 : bf16
    %188 = vector.broadcast %cst_102 : bf16 to vector<16x1024xbf16>
    %189 = vector.shape_cast %187 : vector<1x1024xi1> to vector<1x1024xi1>
    %190 = vector.broadcast %189 : vector<1x1024xi1> to vector<16x1024xi1>
    %191 = arith.select %190, %185, %188 : vector<16x1024xi1>, vector<16x1024xbf16>
    %c0_103 = arith.constant 0 : index
    %c4_104 = arith.constant 4 : index
    %192 = vector.load %arg19[%c0_103, %c4_104] : memref<16x1288xbf16, #tpu.memory_space<vmem>>, vector<16x1024xbf16>
    %c0_105 = arith.constant 0 : index
    %c8 = arith.constant 8 : index
    %193 = vector.load %arg19[%c0_105, %c8] : memref<16x1288xbf16, #tpu.memory_space<vmem>>, vector<16x1024xbf16>
    %c28_i32 = arith.constant 28 : i32
    %194 = vector.broadcast %c28_i32 : i32 to vector<1x1024xi32>
    %195 = arith.cmpi slt, %184, %194 : vector<1x1024xi32>
    %cst_106 = arith.constant 0.000000e+00 : bf16
    %196 = vector.broadcast %cst_106 : bf16 to vector<16x1024xbf16>
    %197 = vector.shape_cast %195 : vector<1x1024xi1> to vector<1x1024xi1>
    %198 = vector.broadcast %197 : vector<1x1024xi1> to vector<16x1024xi1>
    %199 = arith.select %198, %193, %196 : vector<16x1024xi1>, vector<16x1024xbf16>
    %c0_107 = arith.constant 0 : index
    %c128_108 = arith.constant 128 : index
    %200 = vector.load %arg19[%c0_107, %c128_108] : memref<16x1288xbf16, #tpu.memory_space<vmem>>, vector<16x1024xbf16>
    %c4_i32_109 = arith.constant 4 : i32
    %201 = vector.broadcast %c4_i32_109 : i32 to vector<1x1024xi32>
    %202 = arith.cmpi sge, %184, %201 : vector<1x1024xi32>
    %cst_110 = arith.constant 0.000000e+00 : bf16
    %203 = vector.broadcast %cst_110 : bf16 to vector<16x1024xbf16>
    %204 = vector.shape_cast %202 : vector<1x1024xi1> to vector<1x1024xi1>
    %205 = vector.broadcast %204 : vector<1x1024xi1> to vector<16x1024xi1>
    %206 = arith.select %205, %200, %203 : vector<16x1024xi1>, vector<16x1024xbf16>
    %c0_111 = arith.constant 0 : index
    %c132_112 = arith.constant 132 : index
    %207 = vector.load %arg19[%c0_111, %c132_112] : memref<16x1288xbf16, #tpu.memory_space<vmem>>, vector<16x1024xbf16>
    %c0_113 = arith.constant 0 : index
    %c136 = arith.constant 136 : index
    %208 = vector.load %arg19[%c0_113, %c136] : memref<16x1288xbf16, #tpu.memory_space<vmem>>, vector<16x1024xbf16>
    %c28_i32_114 = arith.constant 28 : i32
    %209 = vector.broadcast %c28_i32_114 : i32 to vector<1x1024xi32>
    %210 = arith.cmpi slt, %184, %209 : vector<1x1024xi32>
    %cst_115 = arith.constant 0.000000e+00 : bf16
    %211 = vector.broadcast %cst_115 : bf16 to vector<16x1024xbf16>
    %212 = vector.shape_cast %210 : vector<1x1024xi1> to vector<1x1024xi1>
    %213 = vector.broadcast %212 : vector<1x1024xi1> to vector<16x1024xi1>
    %214 = arith.select %213, %208, %211 : vector<16x1024xi1>, vector<16x1024xbf16>
    %c0_116 = arith.constant 0 : index
    %c256 = arith.constant 256 : index
    %215 = vector.load %arg19[%c0_116, %c256] : memref<16x1288xbf16, #tpu.memory_space<vmem>>, vector<16x1024xbf16>
    %c4_i32_117 = arith.constant 4 : i32
    %216 = vector.broadcast %c4_i32_117 : i32 to vector<1x1024xi32>
    %217 = arith.cmpi sge, %184, %216 : vector<1x1024xi32>
    %cst_118 = arith.constant 0.000000e+00 : bf16
    %218 = vector.broadcast %cst_118 : bf16 to vector<16x1024xbf16>
    %219 = vector.shape_cast %217 : vector<1x1024xi1> to vector<1x1024xi1>
    %220 = vector.broadcast %219 : vector<1x1024xi1> to vector<16x1024xi1>
    %221 = arith.select %220, %215, %218 : vector<16x1024xi1>, vector<16x1024xbf16>
    %c0_119 = arith.constant 0 : index
    %c260 = arith.constant 260 : index
    %222 = vector.load %arg19[%c0_119, %c260] : memref<16x1288xbf16, #tpu.memory_space<vmem>>, vector<16x1024xbf16>
    %c0_120 = arith.constant 0 : index
    %c264 = arith.constant 264 : index
    %223 = vector.load %arg19[%c0_120, %c264] : memref<16x1288xbf16, #tpu.memory_space<vmem>>, vector<16x1024xbf16>
    %c28_i32_121 = arith.constant 28 : i32
    %224 = vector.broadcast %c28_i32_121 : i32 to vector<1x1024xi32>
    %225 = arith.cmpi slt, %184, %224 : vector<1x1024xi32>
    %cst_122 = arith.constant 0.000000e+00 : bf16
    %226 = vector.broadcast %cst_122 : bf16 to vector<16x1024xbf16>
    %227 = vector.shape_cast %225 : vector<1x1024xi1> to vector<1x1024xi1>
    %228 = vector.broadcast %227 : vector<1x1024xi1> to vector<16x1024xi1>
    %229 = arith.select %228, %223, %226 : vector<16x1024xi1>, vector<16x1024xbf16>
    %230 = tpu.concatenate %191, %192, %199, %206, %207, %214, %221, %222, %229 in 0 : vector<16x1024xbf16>, vector<16x1024xbf16>, vector<16x1024xbf16>, vector<16x1024xbf16>, vector<16x1024xbf16>, vector<16x1024xbf16>, vector<16x1024xbf16>, vector<16x1024xbf16>, vector<16x1024xbf16> -> vector<144x1024xbf16>
    %c0_123 = arith.constant 0 : index
    %c0_124 = arith.constant 0 : index
    %231 = vector.load %arg8[%c0_123, %c0_124] : memref<16x144xbf16, #tpu.memory_space<vmem>>, vector<16x144xbf16>
    %cst_125 = arith.constant dense<0.000000e+00> : vector<16x1024xf32>
    %232 = tpu.matmul %231, %230, %cst_125 {dimension_numbers = #tpu.dot_dimension_numbers<[1], [0], [0], [1], [0, 0, 1, 1], [], []>} : vector<16x144xbf16>, vector<144x1024xbf16>, vector<16x1024xf32> -> vector<16x1024xf32>
    %c0_126 = arith.constant 0 : index
    %c0_127 = arith.constant 0 : index
    %233 = vector.load %arg9[%c0_126, %c0_127] : memref<16x1xf32, #tpu.memory_space<vmem>>, vector<16x1xf32>
    %234 = vector.broadcast %233 : vector<16x1xf32> to vector<16x1024xf32>
    %235 = arith.mulf %232, %234 : vector<16x1024xf32>
    %c0_128 = arith.constant 0 : index
    %c0_129 = arith.constant 0 : index
    %236 = vector.load %arg10[%c0_128, %c0_129] : memref<16x1xf32, #tpu.memory_space<vmem>>, vector<16x1xf32>
    %237 = vector.broadcast %236 : vector<16x1xf32> to vector<16x1024xf32>
    %238 = arith.addf %235, %237 : vector<16x1024xf32>
    %cst_130 = arith.constant 0.000000e+00 : f32
    %239 = vector.broadcast %cst_130 : f32 to vector<16x1024xf32>
    %240 = arith.maximumf %238, %239 : vector<16x1024xf32>
    %241 = arith.truncf %240 : vector<16x1024xf32> to vector<16x1024xbf16>
    %c0_131 = arith.constant 0 : index
    %c264_132 = arith.constant 264 : index
    %242 = vector.load %arg20[%c0_131, %c264_132] : memref<16x1552xbf16, #tpu.memory_space<vmem>>, vector<16x1024xbf16>
    tpu.vector_store %arg20[%c0_131, %c264_132], %241 {strides = array<i32>} : memref<16x1552xbf16, #tpu.memory_space<vmem>>, vector<16x1024xbf16>,
    %243 = tpu.iota {dimensions = array<i32: 1>} : vector<1x1024xi32>
    %c32_i32_133 = arith.constant 32 : i32
    %c0_i32_134 = arith.constant 0 : i32
    %244 = arith.cmpi eq, %c32_i32_133, %c0_i32_134 : i32
    %c1_i32_135 = arith.constant 1 : i32
    %245 = arith.select %244, %c1_i32_135, %c32_i32_133 : i32
    %246 = vector.broadcast %245 : i32 to vector<1x1024xi32>
    %247 = arith.remsi %243, %246 : vector<1x1024xi32>
    %c0_i32_136 = arith.constant 0 : i32
    %248 = vector.broadcast %c0_i32_136 : i32 to vector<1x1024xi32>
    %249 = arith.cmpi ne, %247, %248 : vector<1x1024xi32>
    %c0_i32_137 = arith.constant 0 : i32
    %250 = vector.broadcast %c0_i32_137 : i32 to vector<1x1024xi32>
    %251 = arith.cmpi slt, %247, %250 : vector<1x1024xi32>
    %c0_i32_138 = arith.constant 0 : i32
    %252 = arith.cmpi slt, %245, %c0_i32_138 : i32
    %253 = vector.broadcast %252 : i1 to vector<1x1024xi1>
    %254 = vector.broadcast %253 : vector<1x1024xi1> to vector<1x1024xi1>
    %255 = arith.xori %251, %254 : vector<1x1024xi1>
    %256 = arith.andi %255, %249 : vector<1x1024xi1>
    %257 = vector.broadcast %245 : i32 to vector<1x1024xi32>
    %258 = arith.addi %247, %257 : vector<1x1024xi32>
    %259 = arith.select %256, %258, %247 : vector<1x1024xi1>, vector<1x1024xi32>
    %c0_139 = arith.constant 0 : index
    %c0_140 = arith.constant 0 : index
    %260 = vector.load %arg20[%c0_139, %c0_140] : memref<16x1552xbf16, #tpu.memory_space<vmem>>, vector<16x1024xbf16>
    %c8_i32 = arith.constant 8 : i32
    %261 = vector.broadcast %c8_i32 : i32 to vector<1x1024xi32>
    %262 = arith.cmpi sge, %259, %261 : vector<1x1024xi32>
    %cst_141 = arith.constant 0.000000e+00 : bf16
    %263 = vector.broadcast %cst_141 : bf16 to vector<16x1024xbf16>
    %264 = vector.shape_cast %262 : vector<1x1024xi1> to vector<1x1024xi1>
    %265 = vector.broadcast %264 : vector<1x1024xi1> to vector<16x1024xi1>
    %266 = arith.select %265, %260, %263 : vector<16x1024xi1>, vector<16x1024xbf16>
    %c0_142 = arith.constant 0 : index
    %c8_143 = arith.constant 8 : index
    %267 = vector.load %arg20[%c0_142, %c8_143] : memref<16x1552xbf16, #tpu.memory_space<vmem>>, vector<16x1024xbf16>
    %c0_144 = arith.constant 0 : index
    %c16 = arith.constant 16 : index
    %268 = vector.load %arg20[%c0_144, %c16] : memref<16x1552xbf16, #tpu.memory_space<vmem>>, vector<16x1024xbf16>
    %c24_i32 = arith.constant 24 : i32
    %269 = vector.broadcast %c24_i32 : i32 to vector<1x1024xi32>
    %270 = arith.cmpi slt, %259, %269 : vector<1x1024xi32>
    %cst_145 = arith.constant 0.000000e+00 : bf16
    %271 = vector.broadcast %cst_145 : bf16 to vector<16x1024xbf16>
    %272 = vector.shape_cast %270 : vector<1x1024xi1> to vector<1x1024xi1>
    %273 = vector.broadcast %272 : vector<1x1024xi1> to vector<16x1024xi1>
    %274 = arith.select %273, %268, %271 : vector<16x1024xi1>, vector<16x1024xbf16>
    %c0_146 = arith.constant 0 : index
    %c256_147 = arith.constant 256 : index
    %275 = vector.load %arg20[%c0_146, %c256_147] : memref<16x1552xbf16, #tpu.memory_space<vmem>>, vector<16x1024xbf16>
    %c8_i32_148 = arith.constant 8 : i32
    %276 = vector.broadcast %c8_i32_148 : i32 to vector<1x1024xi32>
    %277 = arith.cmpi sge, %259, %276 : vector<1x1024xi32>
    %cst_149 = arith.constant 0.000000e+00 : bf16
    %278 = vector.broadcast %cst_149 : bf16 to vector<16x1024xbf16>
    %279 = vector.shape_cast %277 : vector<1x1024xi1> to vector<1x1024xi1>
    %280 = vector.broadcast %279 : vector<1x1024xi1> to vector<16x1024xi1>
    %281 = arith.select %280, %275, %278 : vector<16x1024xi1>, vector<16x1024xbf16>
    %c0_150 = arith.constant 0 : index
    %c264_151 = arith.constant 264 : index
    %282 = vector.load %arg20[%c0_150, %c264_151] : memref<16x1552xbf16, #tpu.memory_space<vmem>>, vector<16x1024xbf16>
    %c0_152 = arith.constant 0 : index
    %c272 = arith.constant 272 : index
    %283 = vector.load %arg20[%c0_152, %c272] : memref<16x1552xbf16, #tpu.memory_space<vmem>>, vector<16x1024xbf16>
    %c24_i32_153 = arith.constant 24 : i32
    %284 = vector.broadcast %c24_i32_153 : i32 to vector<1x1024xi32>
    %285 = arith.cmpi slt, %259, %284 : vector<1x1024xi32>
    %cst_154 = arith.constant 0.000000e+00 : bf16
    %286 = vector.broadcast %cst_154 : bf16 to vector<16x1024xbf16>
    %287 = vector.shape_cast %285 : vector<1x1024xi1> to vector<1x1024xi1>
    %288 = vector.broadcast %287 : vector<1x1024xi1> to vector<16x1024xi1>
    %289 = arith.select %288, %283, %286 : vector<16x1024xi1>, vector<16x1024xbf16>
    %c0_155 = arith.constant 0 : index
    %c512 = arith.constant 512 : index
    %290 = vector.load %arg20[%c0_155, %c512] : memref<16x1552xbf16, #tpu.memory_space<vmem>>, vector<16x1024xbf16>
    %c8_i32_156 = arith.constant 8 : i32
    %291 = vector.broadcast %c8_i32_156 : i32 to vector<1x1024xi32>
    %292 = arith.cmpi sge, %259, %291 : vector<1x1024xi32>
    %cst_157 = arith.constant 0.000000e+00 : bf16
    %293 = vector.broadcast %cst_157 : bf16 to vector<16x1024xbf16>
    %294 = vector.shape_cast %292 : vector<1x1024xi1> to vector<1x1024xi1>
    %295 = vector.broadcast %294 : vector<1x1024xi1> to vector<16x1024xi1>
    %296 = arith.select %295, %290, %293 : vector<16x1024xi1>, vector<16x1024xbf16>
    %c0_158 = arith.constant 0 : index
    %c520 = arith.constant 520 : index
    %297 = vector.load %arg20[%c0_158, %c520] : memref<16x1552xbf16, #tpu.memory_space<vmem>>, vector<16x1024xbf16>
    %c0_159 = arith.constant 0 : index
    %c528 = arith.constant 528 : index
    %298 = vector.load %arg20[%c0_159, %c528] : memref<16x1552xbf16, #tpu.memory_space<vmem>>, vector<16x1024xbf16>
    %c24_i32_160 = arith.constant 24 : i32
    %299 = vector.broadcast %c24_i32_160 : i32 to vector<1x1024xi32>
    %300 = arith.cmpi slt, %259, %299 : vector<1x1024xi32>
    %cst_161 = arith.constant 0.000000e+00 : bf16
    %301 = vector.broadcast %cst_161 : bf16 to vector<16x1024xbf16>
    %302 = vector.shape_cast %300 : vector<1x1024xi1> to vector<1x1024xi1>
    %303 = vector.broadcast %302 : vector<1x1024xi1> to vector<16x1024xi1>
    %304 = arith.select %303, %298, %301 : vector<16x1024xi1>, vector<16x1024xbf16>
    %305 = tpu.concatenate %266, %267, %274, %281, %282, %289, %296, %297, %304 in 0 : vector<16x1024xbf16>, vector<16x1024xbf16>, vector<16x1024xbf16>, vector<16x1024xbf16>, vector<16x1024xbf16>, vector<16x1024xbf16>, vector<16x1024xbf16>, vector<16x1024xbf16>, vector<16x1024xbf16> -> vector<144x1024xbf16>
    %c0_162 = arith.constant 0 : index
    %c0_163 = arith.constant 0 : index
    %306 = vector.load %arg11[%c0_162, %c0_163] : memref<32x144xbf16, #tpu.memory_space<vmem>>, vector<32x144xbf16>
    %cst_164 = arith.constant dense<0.000000e+00> : vector<32x1024xf32>
    %307 = tpu.matmul %306, %305, %cst_164 {dimension_numbers = #tpu.dot_dimension_numbers<[1], [0], [0], [1], [0, 0, 1, 1], [], []>} : vector<32x144xbf16>, vector<144x1024xbf16>, vector<32x1024xf32> -> vector<32x1024xf32>
    %c0_165 = arith.constant 0 : index
    %c0_166 = arith.constant 0 : index
    %308 = vector.load %arg12[%c0_165, %c0_166] : memref<32x1xf32, #tpu.memory_space<vmem>>, vector<32x1xf32>
    %309 = vector.broadcast %308 : vector<32x1xf32> to vector<32x1024xf32>
    %310 = arith.mulf %307, %309 : vector<32x1024xf32>
    %c0_167 = arith.constant 0 : index
    %c0_168 = arith.constant 0 : index
    %311 = vector.load %arg13[%c0_167, %c0_168] : memref<32x1xf32, #tpu.memory_space<vmem>>, vector<32x1xf32>
    %312 = vector.broadcast %311 : vector<32x1xf32> to vector<32x1024xf32>
    %313 = arith.addf %310, %312 : vector<32x1024xf32>
    %cst_169 = arith.constant 0.000000e+00 : f32
    %314 = vector.broadcast %cst_169 : f32 to vector<32x1024xf32>
    %315 = arith.maximumf %313, %314 : vector<32x1024xf32>
    %316 = arith.truncf %315 : vector<32x1024xf32> to vector<32x1024xbf16>
    %317 = vector.extract_strided_slice %316 {offsets = [0, 0], sizes = [32, 1], strides = [1, 1]} : vector<32x1024xbf16> to vector<32x1xbf16>
    %318 = vector.shape_cast %317 : vector<32x1xbf16> to vector<32x1xbf16>
    %319 = vector.broadcast %318 : vector<32x1xbf16> to vector<32x32xbf16>
    %320 = vector.extract_strided_slice %316 {offsets = [0, 16], sizes = [32, 1], strides = [1, 1]} : vector<32x1024xbf16> to vector<32x1xbf16>
    %321 = vector.shape_cast %320 : vector<32x1xbf16> to vector<32x1xbf16>
    %322 = vector.broadcast %321 : vector<32x1xbf16> to vector<32x32xbf16>
    %323 = vector.extract_strided_slice %316 {offsets = [0, 512], sizes = [32, 1], strides = [1, 1]} : vector<32x1024xbf16> to vector<32x1xbf16>
    %324 = vector.shape_cast %323 : vector<32x1xbf16> to vector<32x1xbf16>
    %325 = vector.broadcast %324 : vector<32x1xbf16> to vector<32x32xbf16>
    %326 = vector.extract_strided_slice %316 {offsets = [0, 528], sizes = [32, 1], strides = [1, 1]} : vector<32x1024xbf16> to vector<32x1xbf16>
    %327 = vector.shape_cast %326 : vector<32x1xbf16> to vector<32x1xbf16>
    %328 = vector.broadcast %327 : vector<32x1xbf16> to vector<32x32xbf16>
    %329 = tpu.concatenate %319, %322, %325, %328 in 1 : vector<32x32xbf16>, vector<32x32xbf16>, vector<32x32xbf16>, vector<32x32xbf16> -> vector<32x128xbf16>
    %330 = arith.extf %329 : vector<32x128xbf16> to vector<32x128xf32>
    %c0_170 = arith.constant 0 : index
    %c0_171 = arith.constant 0 : index
    %331 = vector.load %arg14[%c0_170, %c0_171] : memref<32x128xf32, #tpu.memory_space<vmem>>, vector<32x128xf32>
    %332 = arith.mulf %330, %331 : vector<32x128xf32>
    %cst_172 = arith.constant dense<0.000000e+00> : vector<128xf32>
    %333 = vector.multi_reduction <add>, %332, %cst_172 [0] : vector<32x128xf32> to vector<128xf32>
    %334 = vector.shape_cast %333 : vector<128xf32> to vector<1x128xf32>
    %c0_173 = arith.constant 0 : index
    %c0_174 = arith.constant 0 : index
    %335 = vector.load %arg15[%c0_173, %c0_174] : memref<1x128xf32, #tpu.memory_space<vmem>>, vector<1x128xf32>
    %336 = arith.addf %334, %335 : vector<1x128xf32>
    %c0_175 = arith.constant 0 : index
    %c0_176 = arith.constant 0 : index
    %c0_177 = arith.constant 0 : index
    %337 = vector.load %arg16[%c0_175, %c0_176, %c0_177] : memref<1x1x128xf32, #tpu.memory_space<vmem>>, vector<1x1x128xf32>
    %338 = vector.shape_cast %337 : vector<1x1x128xf32> to vector<1x128xf32>
    %339 = vector.shape_cast %336 : vector<1x128xf32> to vector<1x1x128xf32>
    tpu.vector_store %arg16[%c0_175, %c0_176, %c0_177], %339 {strides = array<i32>} : memref<1x1x128xf32, #tpu.memory_space<vmem>>, vector<1x1x128xf32>,
    return
  }
  func.func @transform_0(%arg0: i32) -> (i32, i32, i32) {
    %c0_i32 = arith.constant 0 : i32
    %c0_i32_0 = arith.constant 0 : i32
    %c0_i32_1 = arith.constant 0 : i32
    return %arg0, %c0_i32, %c0_i32_0 : i32, i32, i32
  }
  func.func @transform_1(%arg0: i32) -> (i32, i32) {
    %c0_i32 = arith.constant 0 : i32
    %c0_i32_0 = arith.constant 0 : i32
    %c0_i32_1 = arith.constant 0 : i32
    return %c0_i32, %c0_i32_0 : i32, i32
  }
  func.func @transform_2(%arg0: i32) -> (i32, i32) {
    %c0_i32 = arith.constant 0 : i32
    %c0_i32_0 = arith.constant 0 : i32
    %c0_i32_1 = arith.constant 0 : i32
    return %c0_i32, %c0_i32_0 : i32, i32
  }
  func.func @transform_3(%arg0: i32) -> (i32, i32) {
    %c0_i32 = arith.constant 0 : i32
    %c0_i32_0 = arith.constant 0 : i32
    %c0_i32_1 = arith.constant 0 : i32
    return %c0_i32, %c0_i32_0 : i32, i32
  }
  func.func @transform_4(%arg0: i32) -> (i32, i32) {
    %c0_i32 = arith.constant 0 : i32
    %c0_i32_0 = arith.constant 0 : i32
    %c0_i32_1 = arith.constant 0 : i32
    return %c0_i32, %c0_i32_0 : i32, i32
  }
  func.func @transform_5(%arg0: i32) -> (i32, i32) {
    %c0_i32 = arith.constant 0 : i32
    %c0_i32_0 = arith.constant 0 : i32
    %c0_i32_1 = arith.constant 0 : i32
    return %c0_i32, %c0_i32_0 : i32, i32
  }
  func.func @transform_6(%arg0: i32) -> (i32, i32) {
    %c0_i32 = arith.constant 0 : i32
    %c0_i32_0 = arith.constant 0 : i32
    %c0_i32_1 = arith.constant 0 : i32
    return %c0_i32, %c0_i32_0 : i32, i32
  }
  func.func @transform_7(%arg0: i32) -> (i32, i32) {
    %c0_i32 = arith.constant 0 : i32
    %c0_i32_0 = arith.constant 0 : i32
    %c0_i32_1 = arith.constant 0 : i32
    return %c0_i32, %c0_i32_0 : i32, i32
  }
  func.func @transform_8(%arg0: i32) -> (i32, i32) {
    %c0_i32 = arith.constant 0 : i32
    %c0_i32_0 = arith.constant 0 : i32
    %c0_i32_1 = arith.constant 0 : i32
    return %c0_i32, %c0_i32_0 : i32, i32
  }
  func.func @transform_9(%arg0: i32) -> (i32, i32) {
    %c0_i32 = arith.constant 0 : i32
    %c0_i32_0 = arith.constant 0 : i32
    %c0_i32_1 = arith.constant 0 : i32
    return %c0_i32, %c0_i32_0 : i32, i32
  }
  func.func @transform_10(%arg0: i32) -> (i32, i32) {
    %c0_i32 = arith.constant 0 : i32
    %c0_i32_0 = arith.constant 0 : i32
    %c0_i32_1 = arith.constant 0 : i32
    return %c0_i32, %c0_i32_0 : i32, i32
  }
  func.func @transform_11(%arg0: i32) -> (i32, i32) {
    %c0_i32 = arith.constant 0 : i32
    %c0_i32_0 = arith.constant 0 : i32
    %c0_i32_1 = arith.constant 0 : i32
    return %c0_i32, %c0_i32_0 : i32, i32
  }
  func.func @transform_12(%arg0: i32) -> (i32, i32) {
    %c0_i32 = arith.constant 0 : i32
    %c0_i32_0 = arith.constant 0 : i32
    %c0_i32_1 = arith.constant 0 : i32
    return %c0_i32, %c0_i32_0 : i32, i32
  }
  func.func @transform_13(%arg0: i32) -> (i32, i32) {
    %c0_i32 = arith.constant 0 : i32
    %c0_i32_0 = arith.constant 0 : i32
    %c0_i32_1 = arith.constant 0 : i32
    return %c0_i32, %c0_i32_0 : i32, i32
  }
  func.func @transform_14(%arg0: i32) -> (i32, i32) {
    %c0_i32 = arith.constant 0 : i32
    %c0_i32_0 = arith.constant 0 : i32
    %c0_i32_1 = arith.constant 0 : i32
    return %c0_i32, %c0_i32_0 : i32, i32
  }
  func.func @transform_15(%arg0: i32) -> (i32, i32, i32) {
    %c0_i32 = arith.constant 0 : i32
    %c0_i32_0 = arith.constant 0 : i32
    %c0_i32_1 = arith.constant 0 : i32
    return %arg0, %c0_i32, %c0_i32_0 : i32, i32, i32
  }
}

</mosaic_0001>

<llo_original>
// kernel: tile.13
$region0: #{tile.13}
  %s0 = inlined_call_operand.vmem [shape: f32[32,4,32], index: 0, kind: input, shape index: {}]
  %s1 = inlined_call_operand.vmem [shape: f32[32,128], index: 1, kind: output, shape index: {}]
  $region1: #{tile.13} parent=0
    #allocation0 [shape = 'u8[131072]{0}', space=vmem, size = 0x20000, scoped, tag = 'scoped mem for input reshape']
    %s3 = ssub.s32 16, 1
    %s4 = scalar_lea.vmem %s0, 124
    %v5 = vld [vmem:[%s4] sm:%s3]
    %s6 = scalar_lea.vmem [#allocation0], 248
    %7 = vst [vmem:[%s6] sm:%s3] %v5
    %s8 = scalar_lea.vmem %s0, 120
    %v9 = vld [vmem:[%s8] sm:%s3]
    %s10 = scalar_lea.vmem [#allocation0], 240
    %11 = vst [vmem:[%s10] sm:%s3] %v9
    %s12 = scalar_lea.vmem %s0, 116
    %v13 = vld [vmem:[%s12] sm:%s3]
    %s14 = scalar_lea.vmem [#allocation0], 232
    %15 = vst [vmem:[%s14] sm:%s3] %v13
    %s16 = scalar_lea.vmem %s0, 112
    %v17 = vld [vmem:[%s16] sm:%s3]
    %s18 = scalar_lea.vmem [#allocation0], 224
    %19 = vst [vmem:[%s18] sm:%s3] %v17
    %s20 = scalar_lea.vmem %s0, 108
    %v21 = vld [vmem:[%s20] sm:%s3]
    %s22 = scalar_lea.vmem [#allocation0], 216
    %23 = vst [vmem:[%s22] sm:%s3] %v21
    %s24 = scalar_lea.vmem %s0, 104
    %v25 = vld [vmem:[%s24] sm:%s3]
    %s26 = scalar_lea.vmem [#allocation0], 208
    %27 = vst [vmem:[%s26] sm:%s3] %v25
    %s28 = scalar_lea.vmem %s0, 100
    %v29 = vld [vmem:[%s28] sm:%s3]
    %s30 = scalar_lea.vmem [#allocation0], 200
    %31 = vst [vmem:[%s30] sm:%s3] %v29
    %s32 = scalar_lea.vmem %s0, 96
    %v33 = vld [vmem:[%s32] sm:%s3]
    %s34 = scalar_lea.vmem [#allocation0], 192
    %35 = vst [vmem:[%s34] sm:%s3] %v33
    %s36 = scalar_lea.vmem %s0, 92
    %v37 = vld [vmem:[%s36] sm:%s3]
    %s38 = scalar_lea.vmem [#allocation0], 184
    %39 = vst [vmem:[%s38] sm:%s3] %v37
    %s40 = scalar_lea.vmem %s0, 88
    %v41 = vld [vmem:[%s40] sm:%s3]
    %s42 = scalar_lea.vmem [#allocation0], 176
    %43 = vst [vmem:[%s42] sm:%s3] %v41
    %s44 = scalar_lea.vmem %s0, 84
    %v45 = vld [vmem:[%s44] sm:%s3]
    %s46 = scalar_lea.vmem [#allocation0], 168
    %47 = vst [vmem:[%s46] sm:%s3] %v45
    %s48 = scalar_lea.vmem %s0, 80
    %v49 = vld [vmem:[%s48] sm:%s3]
    %s50 = scalar_lea.vmem [#allocation0], 160
    %51 = vst [vmem:[%s50] sm:%s3] %v49
    %s52 = scalar_lea.vmem %s0, 76
    %v53 = vld [vmem:[%s52] sm:%s3]
    %s54 = scalar_lea.vmem [#allocation0], 152
    %55 = vst [vmem:[%s54] sm:%s3] %v53
    %s56 = scalar_lea.vmem %s0, 72
    %v57 = vld [vmem:[%s56] sm:%s3]
    %s58 = scalar_lea.vmem [#allocation0], 144
    %59 = vst [vmem:[%s58] sm:%s3] %v57
    %s60 = scalar_lea.vmem %s0, 68
    %v61 = vld [vmem:[%s60] sm:%s3]
    %s62 = scalar_lea.vmem [#allocation0], 136
    %63 = vst [vmem:[%s62] sm:%s3] %v61
    %s64 = scalar_lea.vmem %s0, 64
    %v65 = vld [vmem:[%s64] sm:%s3]
    %s66 = scalar_lea.vmem [#allocation0], 128
    %67 = vst [vmem:[%s66] sm:%s3] %v65
    %s68 = scalar_lea.vmem %s0, 60
    %v69 = vld [vmem:[%s68] sm:%s3]
    %s70 = scalar_lea.vmem [#allocation0], 120
    %71 = vst [vmem:[%s70] sm:%s3] %v69
    %s72 = scalar_lea.vmem %s0, 56
    %v73 = vld [vmem:[%s72] sm:%s3]
    %s74 = scalar_lea.vmem [#allocation0], 112
    %75 = vst [vmem:[%s74] sm:%s3] %v73
    %s76 = scalar_lea.vmem %s0, 52
    %v77 = vld [vmem:[%s76] sm:%s3]
    %s78 = scalar_lea.vmem [#allocation0], 104
    %79 = vst [vmem:[%s78] sm:%s3] %v77
    %s80 = scalar_lea.vmem %s0, 48
    %v81 = vld [vmem:[%s80] sm:%s3]
    %s82 = scalar_lea.vmem [#allocation0], 96
    %83 = vst [vmem:[%s82] sm:%s3] %v81
    %s84 = scalar_lea.vmem %s0, 44
    %v85 = vld [vmem:[%s84] sm:%s3]
    %s86 = scalar_lea.vmem [#allocation0], 88
    %87 = vst [vmem:[%s86] sm:%s3] %v85
    %s88 = scalar_lea.vmem %s0, 40
    %v89 = vld [vmem:[%s88] sm:%s3]
    %s90 = scalar_lea.vmem [#allocation0], 80
    %91 = vst [vmem:[%s90] sm:%s3] %v89
    %s92 = scalar_lea.vmem %s0, 36
    %v93 = vld [vmem:[%s92] sm:%s3]
    %s94 = scalar_lea.vmem [#allocation0], 72
    %95 = vst [vmem:[%s94] sm:%s3] %v93
    %s96 = scalar_lea.vmem %s0, 32
    %v97 = vld [vmem:[%s96] sm:%s3]
    %s98 = scalar_lea.vmem [#allocation0], 64
    %99 = vst [vmem:[%s98] sm:%s3] %v97
    %s100 = scalar_lea.vmem %s0, 28
    %v101 = vld [vmem:[%s100] sm:%s3]
    %s102 = scalar_lea.vmem [#allocation0], 56
    %103 = vst [vmem:[%s102] sm:%s3] %v101
    %s104 = scalar_lea.vmem %s0, 24
    %v105 = vld [vmem:[%s104] sm:%s3]
    %s106 = scalar_lea.vmem [#allocation0], 48
    %107 = vst [vmem:[%s106] sm:%s3] %v105
    %s108 = scalar_lea.vmem %s0, 20
    %v109 = vld [vmem:[%s108] sm:%s3]
    %s110 = scalar_lea.vmem [#allocation0], 40
    %111 = vst [vmem:[%s110] sm:%s3] %v109
    %s112 = scalar_lea.vmem %s0, 16
    %v113 = vld [vmem:[%s112] sm:%s3]
    %s114 = scalar_lea.vmem [#allocation0], 32
    %115 = vst [vmem:[%s114] sm:%s3] %v113
    %s116 = scalar_lea.vmem %s0, 12
    %v117 = vld [vmem:[%s116] sm:%s3]
    %s118 = scalar_lea.vmem [#allocation0], 24
    %119 = vst [vmem:[%s118] sm:%s3] %v117
    %s120 = scalar_lea.vmem %s0, 8
    %v121 = vld [vmem:[%s120] sm:%s3]
    %s122 = scalar_lea.vmem [#allocation0], 16
    %123 = vst [vmem:[%s122] sm:%s3] %v121
    %s124 = scalar_lea.vmem %s0, 4
    %v125 = vld [vmem:[%s124] sm:%s3]
    %s126 = scalar_lea.vmem [#allocation0], 8
    %127 = vst [vmem:[%s126] sm:%s3] %v125
    %v128 = vld [vmem:[%s0] sm:%s3]
    %129 = vst [vmem:[#allocation0] sm:%s3] %v128
    %v130 = vld [vmem:[#allocation0] ss:$8 sm:$0xf]
    %v131 = vld [vmem:[#allocation0] ss:$8 sm:$0xf0]
    %vm132 = vcmask 1047556
    %v133 = vsel %vm132, %v131, %v130
    %vm134 = vcmask 261120
    %135 = vst.msk [vmem:[%s1] sm:$0xff] %vm134, %v133
    %s136 = scalar_lea.vmem [#allocation0], 64
    %v137 = vld [vmem:[%s136] ss:$8 sm:$0xf]
    %s138 = scalar_lea.vmem [#allocation0], 64
    %v139 = vld [vmem:[%s138] ss:$8 sm:$0xf0]
    %vm140 = vcmask 1047556
    %v141 = vsel %vm140, %v139, %v137
    %vm142 = vcmask 261120
    %s143 = scalar_lea.vmem %s1, 8
    %144 = vst.msk [vmem:[%s143] sm:$0xff] %vm142, %v141
    %s145 = scalar_lea.vmem [#allocation0], 128
    %v146 = vld [vmem:[%s145] ss:$8 sm:$0xf]
    %s147 = scalar_lea.vmem [#allocation0], 128
    %v148 = vld [vmem:[%s147] ss:$8 sm:$0xf0]
    %vm149 = vcmask 1047556
    %v150 = vsel %vm149, %v148, %v146
    %vm151 = vcmask 261120
    %s152 = scalar_lea.vmem %s1, 16
    %153 = vst.msk [vmem:[%s152] sm:$0xff] %vm151, %v150
    %s154 = scalar_lea.vmem [#allocation0], 192
    %v155 = vld [vmem:[%s154] ss:$8 sm:$0xf]
    %s156 = scalar_lea.vmem [#allocation0], 192
    %v157 = vld [vmem:[%s156] ss:$8 sm:$0xf0]
    %vm158 = vcmask 1047556
    %v159 = vsel %vm158, %v157, %v155
    %vm160 = vcmask 261120
    %s161 = scalar_lea.vmem %s1, 24
    %162 = vst.msk [vmem:[%s161] sm:$0xff] %vm160, %v159
    %s163 = scalar_lea.vmem [#allocation0], 3
    %v164 = vld [vmem:[%s163] ss:$8 sm:$0xf]
    %s165 = scalar_lea.vmem [#allocation0], 3
    %v166 = vld [vmem:[%s165] ss:$8 sm:$0xf0]
    %vm167 = vcmask 1047556
    %v168 = vsel %vm167, %v166, %v164
    %169 = vrot.lane.b32.xlu0 %v168, 96
    %v170 = vpop.permute.xlu0 %169
    %vm171 = vcmask 1048320
    %172 = vst.msk [vmem:[%s1] sm:$0xff] %vm171, %v170
    %s173 = scalar_lea.vmem [#allocation0], 67
    %v174 = vld [vmem:[%s173] ss:$8 sm:$0xf]
    %s175 = scalar_lea.vmem [#allocation0], 67
    %v176 = vld [vmem:[%s175] ss:$8 sm:$0xf0]
    %vm177 = vcmask 1047556
    %v178 = vsel %vm177, %v176, %v174
    %179 = vrot.lane.b32.xlu0 %v178, 96
    %v180 = vpop.permute.xlu0 %179
    %vm181 = vcmask 1048320
    %s182 = scalar_lea.vmem %s1, 8
    %183 = vst.msk [vmem:[%s182] sm:$0xff] %vm181, %v180
    %s184 = scalar_lea.vmem [#allocation0], 131
    %v185 = vld [vmem:[%s184] ss:$8 sm:$0xf]
    %s186 = scalar_lea.vmem [#allocation0], 131
    %v187 = vld [vmem:[%s186] ss:$8 sm:$0xf0]
    %vm188 = vcmask 1047556
    %v189 = vsel %vm188, %v187, %v185
    %190 = vrot.lane.b32.xlu0 %v189, 96
    %v191 = vpop.permute.xlu0 %190
    %vm192 = vcmask 1048320
    %s193 = scalar_lea.vmem %s1, 16
    %194 = vst.msk [vmem:[%s193] sm:$0xff] %vm192, %v191
    %s195 = scalar_lea.vmem [#allocation0], 195
    %v196 = vld [vmem:[%s195] ss:$8 sm:$0xf]
    %s197 = scalar_lea.vmem [#allocation0], 195
    %v198 = vld [vmem:[%s197] ss:$8 sm:$0xf0]
    %vm199 = vcmask 1047556
    %v200 = vsel %vm199, %v198, %v196
    %201 = vrot.lane.b32.xlu0 %v200, 96
    %v202 = vpop.permute.xlu0 %201
    %vm203 = vcmask 1048320
    %s204 = scalar_lea.vmem %s1, 24
    %205 = vst.msk [vmem:[%s204] sm:$0xff] %vm203, %v202
    %s206 = scalar_lea.vmem [#allocation0], 2
    %v207 = vld [vmem:[%s206] ss:$8 sm:$0xf]
    %s208 = scalar_lea.vmem [#allocation0], 2
    %v209 = vld [vmem:[%s208] ss:$8 sm:$0xf0]
    %vm210 = vcmask 1047556
    %v211 = vsel %vm210, %v209, %v207
    %212 = vrot.lane.b32.xlu0 %v211, 64
    %v213 = vpop.permute.xlu0 %212
    %vm214 = vcmask 785920
    %215 = vst.msk [vmem:[%s1] sm:$0xff] %vm214, %v213
    %s216 = scalar_lea.vmem [#allocation0], 66
    %v217 = vld [vmem:[%s216] ss:$8 sm:$0xf]
    %s218 = scalar_lea.vmem [#allocation0], 66
    %v219 = vld [vmem:[%s218] ss:$8 sm:$0xf0]
    %vm220 = vcmask 1047556
    %v221 = vsel %vm220, %v219, %v217
    %222 = vrot.lane.b32.xlu0 %v221, 64
    %v223 = vpop.permute.xlu0 %222
    %vm224 = vcmask 785920
    %s225 = scalar_lea.vmem %s1, 8
    %226 = vst.msk [vmem:[%s225] sm:$0xff] %vm224, %v223
    %s227 = scalar_lea.vmem [#allocation0], 130
    %v228 = vld [vmem:[%s227] ss:$8 sm:$0xf]
    %s229 = scalar_lea.vmem [#allocation0], 130
    %v230 = vld [vmem:[%s229] ss:$8 sm:$0xf0]
    %vm231 = vcmask 1047556
    %v232 = vsel %vm231, %v230, %v228
    %233 = vrot.lane.b32.xlu0 %v232, 64
    %v234 = vpop.permute.xlu0 %233
    %vm235 = vcmask 785920
    %s236 = scalar_lea.vmem %s1, 16
    %237 = vst.msk [vmem:[%s236] sm:$0xff] %vm235, %v234
    %s238 = scalar_lea.vmem [#allocation0], 194
    %v239 = vld [vmem:[%s238] ss:$8 sm:$0xf]
    %s240 = scalar_lea.vmem [#allocation0], 194
    %v241 = vld [vmem:[%s240] ss:$8 sm:$0xf0]
    %vm242 = vcmask 1047556
    %v243 = vsel %vm242, %v241, %v239
    %244 = vrot.lane.b32.xlu0 %v243, 64
    %v245 = vpop.permute.xlu0 %244
    %vm246 = vcmask 785920
    %s247 = scalar_lea.vmem %s1, 24
    %248 = vst.msk [vmem:[%s247] sm:$0xff] %vm246, %v245
    %s249 = scalar_lea.vmem [#allocation0], 1
    %v250 = vld [vmem:[%s249] ss:$8 sm:$0xf]
    %s251 = scalar_lea.vmem [#allocation0], 1
    %v252 = vld [vmem:[%s251] ss:$8 sm:$0xf0]
    %vm253 = vcmask 1047556
    %v254 = vsel %vm253, %v252, %v250
    %255 = vrot.lane.b32.xlu0 %v254, 32
    %v256 = vpop.permute.xlu0 %255
    %vm257 = vcmask 523520
    %258 = vst.msk [vmem:[%s1] sm:$0xff] %vm257, %v256
    %s259 = scalar_lea.vmem [#allocation0], 65
    %v260 = vld [vmem:[%s259] ss:$8 sm:$0xf]
    %s261 = scalar_lea.vmem [#allocation0], 65
    %v262 = vld [vmem:[%s261] ss:$8 sm:$0xf0]
    %vm263 = vcmask 1047556
    %v264 = vsel %vm263, %v262, %v260
    %265 = vrot.lane.b32.xlu0 %v264, 32
    %v266 = vpop.permute.xlu0 %265
    %vm267 = vcmask 523520
    %s268 = scalar_lea.vmem %s1, 8
    %269 = vst.msk [vmem:[%s268] sm:$0xff] %vm267, %v266
    %s270 = scalar_lea.vmem [#allocation0], 129
    %v271 = vld [vmem:[%s270] ss:$8 sm:$0xf]
    %s272 = scalar_lea.vmem [#allocation0], 129
    %v273 = vld [vmem:[%s272] ss:$8 sm:$0xf0]
    %vm274 = vcmask 1047556
    %v275 = vsel %vm274, %v273, %v271
    %276 = vrot.lane.b32.xlu0 %v275, 32
    %v277 = vpop.permute.xlu0 %276
    %vm278 = vcmask 523520
    %s279 = scalar_lea.vmem %s1, 16
    %280 = vst.msk [vmem:[%s279] sm:$0xff] %vm278, %v277
    %s281 = scalar_lea.vmem [#allocation0], 193
    %v282 = vld [vmem:[%s281] ss:$8 sm:$0xf]
    %s283 = scalar_lea.vmem [#allocation0], 193
    %v284 = vld [vmem:[%s283] ss:$8 sm:$0xf0]
    %vm285 = vcmask 1047556
    %v286 = vsel %vm285, %v284, %v282
    %287 = vrot.lane.b32.xlu0 %v286, 32
    %v288 = vpop.permute.xlu0 %287
    %vm289 = vcmask 523520
    %s290 = scalar_lea.vmem %s1, 24
    %291 = vst.msk [vmem:[%s290] sm:$0xff] %vm289, %v288

// kernel: conv_stem_forward.1
$region0: #{conv_stem_forward.1}
  #allocation0 [shape = 'u32[]', space=smem, size = 0x4, offset = 0x4, fixed_abs, tag = 'smem constant byte address 0x4 - core index']
  #allocation1 [shape = 'u32[72,128]{1,0:T(1,128)}', space=vmem, size = 0x9000, scoped, tag = 'internal scratch']
  #allocation2 [shape = 'bf16[16,1090]{1,0:T(8,128)(2,1)}', space=vmem, size = 0x9000, scoped, tag = 'scratch operand']
  #allocation3 [shape = 'bf16[16,1156]{1,0:T(8,128)(2,1)}', space=vmem, size = 0xa000, scoped, tag = 'scratch operand']
  #allocation4 [shape = 'bf16[16,1288]{1,0:T(8,128)(2,1)}', space=vmem, size = 0xb000, scoped, tag = 'scratch operand']
  #allocation5 [shape = 'bf16[16,1552]{1,0:T(8,128)(2,1)}', space=vmem, size = 0xd000, scoped, tag = 'scratch operand']
  %s0 = inlined_call_operand.vmem [shape: f32[2,3,1024], index: 0, kind: input, shape index: {}]
  %s1 = inlined_call_operand.vmem [shape: bf16[16,144], index: 1, kind: input, shape index: {}]
  %s2 = inlined_call_operand.vmem [shape: f32[16,1], index: 2, kind: input, shape index: {}]
  %s3 = inlined_call_operand.vmem [shape: f32[16,1], index: 3, kind: input, shape index: {}]
  %s4 = inlined_call_operand.vmem [shape: bf16[16,144], index: 4, kind: input, shape index: {}]
  %s5 = inlined_call_operand.vmem [shape: f32[16,1], index: 5, kind: input, shape index: {}]
  %s6 = inlined_call_operand.vmem [shape: f32[16,1], index: 6, kind: input, shape index: {}]
  %s7 = inlined_call_operand.vmem [shape: bf16[16,144], index: 7, kind: input, shape index: {}]
  %s8 = inlined_call_operand.vmem [shape: f32[16,1], index: 8, kind: input, shape index: {}]
  %s9 = inlined_call_operand.vmem [shape: f32[16,1], index: 9, kind: input, shape index: {}]
  %s10 = inlined_call_operand.vmem [shape: bf16[32,144], index: 10, kind: input, shape index: {}]
  %s11 = inlined_call_operand.vmem [shape: f32[32,1], index: 11, kind: input, shape index: {}]
  %s12 = inlined_call_operand.vmem [shape: f32[32,1], index: 12, kind: input, shape index: {}]
  %s13 = inlined_call_operand.vmem [shape: f32[32,128], index: 13, kind: input, shape index: {}]
  %s14 = inlined_call_operand.vmem [shape: f32[1,128], index: 14, kind: input, shape index: {}]
  %s15 = inlined_call_operand.vmem [shape: f32[2,1,128], index: 15, kind: output, shape index: {}]
  %s16 = sld [smem:[#allocation0]]
  $region93: #{conv_stem_forward.1} parent=0
    _
  %s18 = ssub.s32 1, %s16
  %s19 = scalar_select 0, %s18, %s16
  loop: start=0, step=1, limit=4
  $region2: #{conv_stem_forward.1} parent=0 // loop_pre_header
    _
  $region3: #{conv_stem_forward.1} parent=0 // loop_header
    %s21 = sphi 0, %s25
    %p22 = scmp.ge.s32.totalorder %s21, 4
    %s31 = sphi 0, %s33
    %s34 = sphi 0, %s31
    %s35 = sphi 0, %s34
    %s51 = sphi 0, %s35
    %s55 = sphi 0, %s55
    %s57 = sphi 0, %s55
    %s58 = sphi 0, %s57
    %s72 = sphi 0, %s58
    %s76 = sphi 0, %s76
    %s78 = sphi 0, %s76
    %s79 = sphi 0, %s78
    %s93 = sphi 0, %s79
    %s97 = sphi 0, %s97
    %s99 = sphi 0, %s97
    %s100 = sphi 0, %s99
    %s114 = sphi 0, %s100
    %s118 = sphi 0, %s118
    %s120 = sphi 0, %s118
    %s121 = sphi 0, %s120
    %s135 = sphi 0, %s121
    %s139 = sphi 0, %s139
    %s141 = sphi 0, %s139
    %s142 = sphi 0, %s141
    %s156 = sphi 0, %s142
    %s160 = sphi 0, %s160
    %s162 = sphi 0, %s160
    %s163 = sphi 0, %s162
    %s177 = sphi 0, %s163
    %s181 = sphi 0, %s181
    %s183 = sphi 0, %s181
    %s184 = sphi 0, %s183
    %s198 = sphi 0, %s184
    %s202 = sphi 0, %s202
    %s204 = sphi 0, %s202
    %s205 = sphi 0, %s204
    %s219 = sphi 0, %s205
    %s223 = sphi 0, %s223
    %s225 = sphi 0, %s223
    %s226 = sphi 0, %s225
    %s240 = sphi 0, %s226
    %s244 = sphi 0, %s244
    %s246 = sphi 0, %s244
    %s247 = sphi 0, %s246
    %s261 = sphi 0, %s247
    %s265 = sphi 0, %s265
    %s267 = sphi 0, %s265
    %s268 = sphi 0, %s267
    %s282 = sphi 0, %s268
    %s286 = sphi 0, %s286
    %s288 = sphi 0, %s286
    %s289 = sphi 0, %s288
    %s303 = sphi 0, %s289
    %s307 = sphi 0, %s307
    %s309 = sphi 0, %s307
    %s310 = sphi 0, %s309
    %s324 = sphi 0, %s310
    %s328 = sphi 0, %s328
    %s330 = sphi 0, %s328
    %s331 = sphi 0, %s330
    %s345 = sphi 0, %s331
    %s351 = sphi 0, %s353
    %s354 = sphi 0, %s351
    %s355 = sphi 0, %s354
    %s371 = sphi 0, %s355
  $region4: #{conv_stem_forward.1} parent=0 // loop_header_branch
    %24 = sbr.rel (%p22) target = $region8
  $region5: #{conv_stem_forward.1} parent=0 // loop_body
    %s26 = ssub.s32 %s21, 1
    %s27 = ssub.s32 %s21, 2
    %s28 = sadd.s32 %s21, 1
    %s29 = ssub.s32 %s21, %s28
    %p30 = scmp.eq.s32.totalorder %s29, 0
    %s32 = sadd.s32 %s31, 1
    %s33 = scalar_select %p30, %s31, %s32
    %p36 = pneg %p30
    %p37 = scmp.eq.s32.totalorder %s21, 1
    %p38 = por %p36, %p37
    %p39 = scmp.ne.s32.totalorder %s31, %s34
    %p40 = scmp.eq.s32.totalorder %s21, 0
    %p41 = por %p39, %p40
    %p42 = scmp.ne.s32.totalorder %s31, %s34
    %p43 = scmp.eq.s32.totalorder %s26, 1
    %p44 = por %p42, %p43
    %p45 = scmp.ne.s32.totalorder %s34, %s35
    %p46 = scmp.eq.s32.totalorder %s26, 0
    %p47 = por %p45, %p46
    %p48 = scmp.ne.s32.totalorder %s34, %s35
    %p49 = scmp.eq.s32.totalorder %s27, 1
    %p50 = por %p48, %p49
    %p52 = scmp.ne.s32.totalorder %s35, %s51
    %p53 = scmp.eq.s32.totalorder %s27, 0
    %p54 = por %p52, %p53
    %s56 = sadd.s32 %s55, 1
    %p59 = scmp.eq.s32.totalorder %s21, 1
    %p60 = scmp.ne.s32.totalorder %s55, %s57
    %p61 = scmp.eq.s32.totalorder %s21, 0
    %p62 = por %p60, %p61
    %p63 = scmp.ne.s32.totalorder %s55, %s57
    %p64 = scmp.eq.s32.totalorder %s26, 1
    %p65 = por %p63, %p64
    %p66 = scmp.ne.s32.totalorder %s57, %s58
    %p67 = scmp.eq.s32.totalorder %s26, 0
    %p68 = por %p66, %p67
    %p69 = scmp.ne.s32.totalorder %s57, %s58
    %p70 = scmp.eq.s32.totalorder %s27, 1
    %p71 = por %p69, %p70
    %p73 = scmp.ne.s32.totalorder %s58, %s72
    %p74 = scmp.eq.s32.totalorder %s27, 0
    %p75 = por %p73, %p74
    %s77 = sadd.s32 %s76, 1
    %p80 = scmp.eq.s32.totalorder %s21, 1
    %p81 = scmp.ne.s32.totalorder %s76, %s78
    %p82 = scmp.eq.s32.totalorder %s21, 0
    %p83 = por %p81, %p82
    %p84 = scmp.ne.s32.totalorder %s76, %s78
    %p85 = scmp.eq.s32.totalorder %s26, 1
    %p86 = por %p84, %p85
    %p87 = scmp.ne.s32.totalorder %s78, %s79
    %p88 = scmp.eq.s32.totalorder %s26, 0
    %p89 = por %p87, %p88
    %p90 = scmp.ne.s32.totalorder %s78, %s79
    %p91 = scmp.eq.s32.totalorder %s27, 1
    %p92 = por %p90, %p91
    %p94 = scmp.ne.s32.totalorder %s79, %s93
    %p95 = scmp.eq.s32.totalorder %s27, 0
    %p96 = por %p94, %p95
    %s98 = sadd.s32 %s97, 1
    %p101 = scmp.eq.s32.totalorder %s21, 1
    %p102 = scmp.ne.s32.totalorder %s97, %s99
    %p103 = scmp.eq.s32.totalorder %s21, 0
    %p104 = por %p102, %p103
    %p105 = scmp.ne.s32.totalorder %s97, %s99
    %p106 = scmp.eq.s32.totalorder %s26, 1
    %p107 = por %p105, %p106
    %p108 = scmp.ne.s32.totalorder %s99, %s100
    %p109 = scmp.eq.s32.totalorder %s26, 0
    %p110 = por %p108, %p109
    %p111 = scmp.ne.s32.totalorder %s99, %s100
    %p112 = scmp.eq.s32.totalorder %s27, 1
    %p113 = por %p111, %p112
    %p115 = scmp.ne.s32.totalorder %s100, %s114
    %p116 = scmp.eq.s32.totalorder %s27, 0
    %p117 = por %p115, %p116
    %s119 = sadd.s32 %s118, 1
    %p122 = scmp.eq.s32.totalorder %s21, 1
    %p123 = scmp.ne.s32.totalorder %s118, %s120
    %p124 = scmp.eq.s32.totalorder %s21, 0
    %p125 = por %p123, %p124
    %p126 = scmp.ne.s32.totalorder %s118, %s120
    %p127 = scmp.eq.s32.totalorder %s26, 1
    %p128 = por %p126, %p127
    %p129 = scmp.ne.s32.totalorder %s120, %s121
    %p130 = scmp.eq.s32.totalorder %s26, 0
    %p131 = por %p129, %p130
    %p132 = scmp.ne.s32.totalorder %s120, %s121
    %p133 = scmp.eq.s32.totalorder %s27, 1
    %p134 = por %p132, %p133
    %p136 = scmp.ne.s32.totalorder %s121, %s135
    %p137 = scmp.eq.s32.totalorder %s27, 0
    %p138 = por %p136, %p137
    %s140 = sadd.s32 %s139, 1
    %p143 = scmp.eq.s32.totalorder %s21, 1
    %p144 = scmp.ne.s32.totalorder %s139, %s141
    %p145 = scmp.eq.s32.totalorder %s21, 0
    %p146 = por %p144, %p145
    %p147 = scmp.ne.s32.totalorder %s139, %s141
    %p148 = scmp.eq.s32.totalorder %s26, 1
    %p149 = por %p147, %p148
    %p150 = scmp.ne.s32.totalorder %s141, %s142
    %p151 = scmp.eq.s32.totalorder %s26, 0
    %p152 = por %p150, %p151
    %p153 = scmp.ne.s32.totalorder %s141, %s142
    %p154 = scmp.eq.s32.totalorder %s27, 1
    %p155 = por %p153, %p154
    %p157 = scmp.ne.s32.totalorder %s142, %s156
    %p158 = scmp.eq.s32.totalorder %s27, 0
    %p159 = por %p157, %p158
    %s161 = sadd.s32 %s160, 1
    %p164 = scmp.eq.s32.totalorder %s21, 1
    %p165 = scmp.ne.s32.totalorder %s160, %s162
    %p166 = scmp.eq.s32.totalorder %s21, 0
    %p167 = por %p165, %p166
    %p168 = scmp.ne.s32.totalorder %s160, %s162
    %p169 = scmp.eq.s32.totalorder %s26, 1
    %p170 = por %p168, %p169
    %p171 = scmp.ne.s32.totalorder %s162, %s163
    %p172 = scmp.eq.s32.totalorder %s26, 0
    %p173 = por %p171, %p172
    %p174 = scmp.ne.s32.totalorder %s162, %s163
    %p175 = scmp.eq.s32.totalorder %s27, 1
    %p176 = por %p174, %p175
    %p178 = scmp.ne.s32.totalorder %s163, %s177
    %p179 = scmp.eq.s32.totalorder %s27, 0
    %p180 = por %p178, %p179
    %s182 = sadd.s32 %s181, 1
    %p185 = scmp.eq.s32.totalorder %s21, 1
    %p186 = scmp.ne.s32.totalorder %s181, %s183
    %p187 = scmp.eq.s32.totalorder %s21, 0
    %p188 = por %p186, %p187
    %p189 = scmp.ne.s32.totalorder %s181, %s183
    %p190 = scmp.eq.s32.totalorder %s26, 1
    %p191 = por %p189, %p190
    %p192 = scmp.ne.s32.totalorder %s183, %s184
    %p193 = scmp.eq.s32.totalorder %s26, 0
    %p194 = por %p192, %p193
    %p195 = scmp.ne.s32.totalorder %s183, %s184
    %p196 = scmp.eq.s32.totalorder %s27, 1
    %p197 = por %p195, %p196
    %p199 = scmp.ne.s32.totalorder %s184, %s198
    %p200 = scmp.eq.s32.totalorder %s27, 0
    %p201 = por %p199, %p200
    %s203 = sadd.s32 %s202, 1
    %p206 = scmp.eq.s32.totalorder %s21, 1
    %p207 = scmp.ne.s32.totalorder %s202, %s204
    %p208 = scmp.eq.s32.totalorder %s21, 0
    %p209 = por %p207, %p208
    %p210 = scmp.ne.s32.totalorder %s202, %s204
    %p211 = scmp.eq.s32.totalorder %s26, 1
    %p212 = por %p210, %p211
    %p213 = scmp.ne.s32.totalorder %s204, %s205
    %p214 = scmp.eq.s32.totalorder %s26, 0
    %p215 = por %p213, %p214
    %p216 = scmp.ne.s32.totalorder %s204, %s205
    %p217 = scmp.eq.s32.totalorder %s27, 1
    %p218 = por %p216, %p217
    %p220 = scmp.ne.s32.totalorder %s205, %s219
    %p221 = scmp.eq.s32.totalorder %s27, 0
    %p222 = por %p220, %p221
    %s224 = sadd.s32 %s223, 1
    %p227 = scmp.eq.s32.totalorder %s21, 1
    %p228 = scmp.ne.s32.totalorder %s223, %s225
    %p229 = scmp.eq.s32.totalorder %s21, 0
    %p230 = por %p228, %p229
    %p231 = scmp.ne.s32.totalorder %s223, %s225
    %p232 = scmp.eq.s32.totalorder %s26, 1
    %p233 = por %p231, %p232
    %p234 = scmp.ne.s32.totalorder %s225, %s226
    %p235 = scmp.eq.s32.totalorder %s26, 0
    %p236 = por %p234, %p235
    %p237 = scmp.ne.s32.totalorder %s225, %s226
    %p238 = scmp.eq.s32.totalorder %s27, 1
    %p239 = por %p237, %p238
    %p241 = scmp.ne.s32.totalorder %s226, %s240
    %p242 = scmp.eq.s32.totalorder %s27, 0
    %p243 = por %p241, %p242
    %s245 = sadd.s32 %s244, 1
    %p248 = scmp.eq.s32.totalorder %s21, 1
    %p249 = scmp.ne.s32.totalorder %s244, %s246
    %p250 = scmp.eq.s32.totalorder %s21, 0
    %p251 = por %p249, %p250
    %p252 = scmp.ne.s32.totalorder %s244, %s246
    %p253 = scmp.eq.s32.totalorder %s26, 1
    %p254 = por %p252, %p253
    %p255 = scmp.ne.s32.totalorder %s246, %s247
    %p256 = scmp.eq.s32.totalorder %s26, 0
    %p257 = por %p255, %p256
    %p258 = scmp.ne.s32.totalorder %s246, %s247
    %p259 = scmp.eq.s32.totalorder %s27, 1
    %p260 = por %p258, %p259
    %p262 = scmp.ne.s32.totalorder %s247, %s261
    %p263 = scmp.eq.s32.totalorder %s27, 0
    %p264 = por %p262, %p263
    %s266 = sadd.s32 %s265, 1
    %p269 = scmp.eq.s32.totalorder %s21, 1
    %p270 = scmp.ne.s32.totalorder %s265, %s267
    %p271 = scmp.eq.s32.totalorder %s21, 0
    %p272 = por %p270, %p271
    %p273 = scmp.ne.s32.totalorder %s265, %s267
    %p274 = scmp.eq.s32.totalorder %s26, 1
    %p275 = por %p273, %p274
    %p276 = scmp.ne.s32.totalorder %s267, %s268
    %p277 = scmp.eq.s32.totalorder %s26, 0
    %p278 = por %p276, %p277
    %p279 = scmp.ne.s32.totalorder %s267, %s268
    %p280 = scmp.eq.s32.totalorder %s27, 1
    %p281 = por %p279, %p280
    %p283 = scmp.ne.s32.totalorder %s268, %s282
    %p284 = scmp.eq.s32.totalorder %s27, 0
    %p285 = por %p283, %p284
    %s287 = sadd.s32 %s286, 1
    %p290 = scmp.eq.s32.totalorder %s21, 1
    %p291 = scmp.ne.s32.totalorder %s286, %s288
    %p292 = scmp.eq.s32.totalorder %s21, 0
    %p293 = por %p291, %p292
    %p294 = scmp.ne.s32.totalorder %s286, %s288
    %p295 = scmp.eq.s32.totalorder %s26, 1
    %p296 = por %p294, %p295
    %p297 = scmp.ne.s32.totalorder %s288, %s289
    %p298 = scmp.eq.s32.totalorder %s26, 0
    %p299 = por %p297, %p298
    %p300 = scmp.ne.s32.totalorder %s288, %s289
    %p301 = scmp.eq.s32.totalorder %s27, 1
    %p302 = por %p300, %p301
    %p304 = scmp.ne.s32.totalorder %s289, %s303
    %p305 = scmp.eq.s32.totalorder %s27, 0
    %p306 = por %p304, %p305
    %s308 = sadd.s32 %s307, 1
    %p311 = scmp.eq.s32.totalorder %s21, 1
    %p312 = scmp.ne.s32.totalorder %s307, %s309
    %p313 = scmp.eq.s32.totalorder %s21, 0
    %p314 = por %p312, %p313
    %p315 = scmp.ne.s32.totalorder %s307, %s309
    %p316 = scmp.eq.s32.totalorder %s26, 1
    %p317 = por %p315, %p316
    %p318 = scmp.ne.s32.totalorder %s309, %s310
    %p319 = scmp.eq.s32.totalorder %s26, 0
    %p320 = por %p318, %p319
    %p321 = scmp.ne.s32.totalorder %s309, %s310
    %p322 = scmp.eq.s32.totalorder %s27, 1
    %p323 = por %p321, %p322
    %p325 = scmp.ne.s32.totalorder %s310, %s324
    %p326 = scmp.eq.s32.totalorder %s27, 0
    %p327 = por %p325, %p326
    %s329 = sadd.s32 %s328, 1
    %p332 = scmp.eq.s32.totalorder %s21, 1
    %p333 = scmp.ne.s32.totalorder %s328, %s330
    %p334 = scmp.eq.s32.totalorder %s21, 0
    %p335 = por %p333, %p334
    %p336 = scmp.ne.s32.totalorder %s328, %s330
    %p337 = scmp.eq.s32.totalorder %s26, 1
    %p338 = por %p336, %p337
    %p339 = scmp.ne.s32.totalorder %s330, %s331
    %p340 = scmp.eq.s32.totalorder %s26, 0
    %p341 = por %p339, %p340
    %p342 = scmp.ne.s32.totalorder %s330, %s331
    %p343 = scmp.eq.s32.totalorder %s27, 1
    %p344 = por %p342, %p343
    %p346 = scmp.ne.s32.totalorder %s331, %s345
    %p347 = scmp.eq.s32.totalorder %s27, 0
    %p348 = por %p346, %p347
    %s349 = ssub.s32 %s21, %s28
    %p350 = scmp.eq.s32.totalorder %s349, 0
    %s352 = sadd.s32 %s351, 1
    %s353 = scalar_select %p350, %s351, %s352
    %p356 = pneg %p350
    %p357 = scmp.eq.s32.totalorder %s21, 1
    %p358 = por %p356, %p357
    %p359 = scmp.ne.s32.totalorder %s351, %s354
    %p360 = scmp.eq.s32.totalorder %s21, 0
    %p361 = por %p359, %p360
    %p362 = scmp.ne.s32.totalorder %s351, %s354
    %p363 = scmp.eq.s32.totalorder %s26, 1
    %p364 = por %p362, %p363
    %p365 = scmp.ne.s32.totalorder %s354, %s355
    %p366 = scmp.eq.s32.totalorder %s26, 0
    %p367 = por %p365, %p366
    %p368 = scmp.ne.s32.totalorder %s354, %s355
    %p369 = scmp.eq.s32.totalorder %s27, 1
    %p370 = por %p368, %p369
    %p372 = scmp.ne.s32.totalorder %s355, %s371
    %p373 = scmp.eq.s32.totalorder %s27, 0
    %p374 = por %p372, %p373
    %p375 = scmp.le.s32.totalorder 1, %s21
    %p376 = scmp.lt.s32.totalorder %s21, 3
    %p377 = pnand %p375, %p376
    %p378 = pneg %p377
    // Predicated region
    $region9: #{conv_stem_forward.1} parent=5 // pred_check
      _
    $region10: #{conv_stem_forward.1} parent=5 // pred_check_branch
      %380 = sbr.rel (%p377) target = $region12
    $region11: #{conv_stem_forward.1} parent=5 // pred_region
      %s381 = ssub.s32 %s21, 1
      // Predicated region
      $region13: #{conv_stem_forward.1} parent=11 // pred_check
        %p382 = pneg %p68
      $region14: #{conv_stem_forward.1} parent=11 // pred_check_branch
        %384 = sbr.rel (%p382) target = $region16
      $region15: #{conv_stem_forward.1} parent=11 // pred_region
        _
      $region16: #{conv_stem_forward.1} parent=11 // pred_fallthru
        _
      // Predicated region
      $region17: #{conv_stem_forward.1} parent=11 // pred_check
        %p385 = pneg %p89
      $region18: #{conv_stem_forward.1} parent=11 // pred_check_branch
        %387 = sbr.rel (%p385) target = $region20
      $region19: #{conv_stem_forward.1} parent=11 // pred_region
        _
      $region20: #{conv_stem_forward.1} parent=11 // pred_fallthru
        _
      // Predicated region
      $region21: #{conv_stem_forward.1} parent=11 // pred_check
        %p388 = pneg %p110
      $region22: #{conv_stem_forward.1} parent=11 // pred_check_branch
        %390 = sbr.rel (%p388) target = $region24
      $region23: #{conv_stem_forward.1} parent=11 // pred_region
        _
      $region24: #{conv_stem_forward.1} parent=11 // pred_fallthru
        _
      // Predicated region
      $region25: #{conv_stem_forward.1} parent=11 // pred_check
        %p391 = pneg %p131
      $region26: #{conv_stem_forward.1} parent=11 // pred_check_branch
        %393 = sbr.rel (%p391) target = $region28
      $region27: #{conv_stem_forward.1} parent=11 // pred_region
        _
      $region28: #{conv_stem_forward.1} parent=11 // pred_fallthru
        _
      // Predicated region
      $region29: #{conv_stem_forward.1} parent=11 // pred_check
        %p394 = pneg %p152
      $region30: #{conv_stem_forward.1} parent=11 // pred_check_branch
        %396 = sbr.rel (%p394) target = $region32
      $region31: #{conv_stem_forward.1} parent=11 // pred_region
        _
      $region32: #{conv_stem_forward.1} parent=11 // pred_fallthru
        _
      // Predicated region
      $region33: #{conv_stem_forward.1} parent=11 // pred_check
        %p397 = pneg %p173
      $region34: #{conv_stem_forward.1} parent=11 // pred_check_branch
        %399 = sbr.rel (%p397) target = $region36
      $region35: #{conv_stem_forward.1} parent=11 // pred_region
        _
      $region36: #{conv_stem_forward.1} parent=11 // pred_fallthru
        _
      // Predicated region
      $region37: #{conv_stem_forward.1} parent=11 // pred_check
        %p400 = pneg %p194
      $region38: #{conv_stem_forward.1} parent=11 // pred_check_branch
        %402 = sbr.rel (%p400) target = $region40
      $region39: #{conv_stem_forward.1} parent=11 // pred_region
        _
      $region40: #{conv_stem_forward.1} parent=11 // pred_fallthru
        _
      // Predicated region
      $region41: #{conv_stem_forward.1} parent=11 // pred_check
        %p403 = pneg %p215
      $region42: #{conv_stem_forward.1} parent=11 // pred_check_branch
        %405 = sbr.rel (%p403) target = $region44
      $region43: #{conv_stem_forward.1} parent=11 // pred_region
        _
      $region44: #{conv_stem_forward.1} parent=11 // pred_fallthru
        _
      // Predicated region
      $region45: #{conv_stem_forward.1} parent=11 // pred_check
        %p406 = pneg %p236
      $region46: #{conv_stem_forward.1} parent=11 // pred_check_branch
        %408 = sbr.rel (%p406) target = $region48
      $region47: #{conv_stem_forward.1} parent=11 // pred_region
        _
      $region48: #{conv_stem_forward.1} parent=11 // pred_fallthru
        _
      // Predicated region
      $region49: #{conv_stem_forward.1} parent=11 // pred_check
        %p409 = pneg %p257
      $region50: #{conv_stem_forward.1} parent=11 // pred_check_branch
        %411 = sbr.rel (%p409) target = $region52
      $region51: #{conv_stem_forward.1} parent=11 // pred_region
        _
      $region52: #{conv_stem_forward.1} parent=11 // pred_fallthru
        _
      // Predicated region
      $region53: #{conv_stem_forward.1} parent=11 // pred_check
        %p412 = pneg %p278
      $region54: #{conv_stem_forward.1} parent=11 // pred_check_branch
        %414 = sbr.rel (%p412) target = $region56
      $region55: #{conv_stem_forward.1} parent=11 // pred_region
        _
      $region56: #{conv_stem_forward.1} parent=11 // pred_fallthru
        _
      // Predicated region
      $region57: #{conv_stem_forward.1} parent=11 // pred_check
        %p415 = pneg %p299
      $region58: #{conv_stem_forward.1} parent=11 // pred_check_branch
        %417 = sbr.rel (%p415) target = $region60
      $region59: #{conv_stem_forward.1} parent=11 // pred_region
        _
      $region60: #{conv_stem_forward.1} parent=11 // pred_fallthru
        _
      // Predicated region
      $region61: #{conv_stem_forward.1} parent=11 // pred_check
        %p418 = pneg %p320
      $region62: #{conv_stem_forward.1} parent=11 // pred_check_branch
        %420 = sbr.rel (%p418) target = $region64
      $region63: #{conv_stem_forward.1} parent=11 // pred_region
        _
      $region64: #{conv_stem_forward.1} parent=11 // pred_fallthru
        _
      // Predicated region
      $region65: #{conv_stem_forward.1} parent=11 // pred_check
        %p421 = pneg %p341
      $region66: #{conv_stem_forward.1} parent=11 // pred_check_branch
        %423 = sbr.rel (%p421) target = $region68
      $region67: #{conv_stem_forward.1} parent=11 // pred_region
        _
      $region68: #{conv_stem_forward.1} parent=11 // pred_fallthru
        _
    $region12: #{conv_stem_forward.1} parent=5 // pred_fallthru
      _
    %p424 = scmp.lt.s32.totalorder %s21, 2
    // Predicated region
    $region69: #{conv_stem_forward.1} parent=5 // pred_check
      %p425 = pneg %p424
    $region70: #{conv_stem_forward.1} parent=5 // pred_check_branch
      %427 = sbr.rel (%p425) target = $region72
    $region71: #{conv_stem_forward.1} parent=5 // pred_region
      // Predicated region
      $region73: #{conv_stem_forward.1} parent=71 // pred_check
        %p428 = pneg %p41
      $region74: #{conv_stem_forward.1} parent=71 // pred_check_branch
        %430 = sbr.rel (%p428) target = $region76
      $region75: #{conv_stem_forward.1} parent=71 // pred_region
        %p431 = scmp.lt.s32.totalorder %s21, 1
        %s432 = scalar_select %p431, %s21, 1
        %s433 = smul.addr %s432, 8
        %s434 = smul.addr %s433, 4
        %s435 = scalar_lea.vmem %s0, %s434
      $region76: #{conv_stem_forward.1} parent=71 // pred_fallthru
        _
    $region72: #{conv_stem_forward.1} parent=5 // pred_fallthru
      _
    %p436 = scmp.le.s32.totalorder 1, %s21
    %p437 = scmp.lt.s32.totalorder %s21, 3
    %p438 = pnand %p436, %p437
    %p439 = pneg %p438
    // Predicated region
    $region77: #{conv_stem_forward.1} parent=5 // pred_check
      _
    $region78: #{conv_stem_forward.1} parent=5 // pred_check_branch
      %441 = sbr.rel (%p438) target = $region80
    $region79: #{conv_stem_forward.1} parent=5 // pred_region
      %s442 = ssub.s32 %s21, 1
      %p443 = scmp.lt.s32.totalorder %s26, 1
      %s444 = scalar_select %p443, %s26, 1
      %s445 = smul.addr %s444, 8
      %s446 = smul.addr %s445, 4
      %s447 = scalar_lea.vmem %s0, %s446
      %p448 = pneg %p47
      %p449 = pneg %p44
      %p450 = pneg %p68
      %p451 = pneg %p65
      %p452 = pneg %p89
      %p453 = pneg %p86
      %p454 = pneg %p110
      %p455 = pneg %p107
      %p456 = pneg %p131
      %p457 = pneg %p128
      %p458 = pneg %p152
      %p459 = pneg %p149
      %p460 = pneg %p173
      %p461 = pneg %p170
      %p462 = pneg %p194
      %p463 = pneg %p191
      %p464 = pneg %p215
      %p465 = pneg %p212
      %p466 = pneg %p236
      %p467 = pneg %p233
      %p468 = pneg %p257
      %p469 = pneg %p254
      %p470 = pneg %p278
      %p471 = pneg %p275
      %p472 = pneg %p299
      %p473 = pneg %p296
      %p474 = pneg %p320
      %p475 = pneg %p317
      %p476 = pneg %p341
      %p477 = pneg %p338
      %p478 = pneg %p367
      %p479 = pneg %p364
      %p480 = scmp.lt.s32.totalorder %s26, 1
      %s481 = scalar_select %p480, %s26, 1
      %s482 = scalar_lea.vmem %s15, %s481
      %p483 = scmp.lt.s32.totalorder %s26, 1
      %s484 = scalar_select %p483, %s26, 1
      %s485 = smul.addr %s484, 8
      %s486 = smul.addr %s485, 4
      %s487 = scalar_lea.vmem %s0, %s486
      %p488 = scmp.lt.s32.totalorder %s26, 1
      %s489 = scalar_select %p488, %s26, 1
      %s490 = scalar_lea.vmem %s15, %s489
      %494 = vst [vmem:[#allocation2] sm:$0xff] 0
      %495 = vst [vmem:[#allocation2 + $0x8] sm:$0xff] 0
      %496 = vst [vmem:[#allocation2 + $0x10] sm:$0xff] 0
      %497 = vst [vmem:[#allocation2 + $0x18] sm:$0xff] 0
      %vm498 = vcmask 535552
      %499 = vst.msk [vmem:[#allocation2 + $0x20] sm:$0xf] %vm498, 0
      %500 = vst [vmem:[#allocation2 + $0x24] sm:$0xff] 0
      %501 = vst [vmem:[#allocation2 + $0x2c] sm:$0xff] 0
      %502 = vst [vmem:[#allocation2 + $0x34] sm:$0xff] 0
      %503 = vst [vmem:[#allocation2 + $0x3c] sm:$0xff] 0
      %504 = vst.msk [vmem:[#allocation2 + $0x44] sm:$0xf] %vm498, 0
      %505 = vst.msk [vmem:[#allocation3] sm:$0xf] %vm498, 0
      %506 = vst.msk [vmem:[#allocation3 + $0x28] sm:$0xf] %vm498, 0
      %vm507 = vcmask 1043984
      %vm508 = vcmask 31748
      %vm509 = vmor %vm508, %vm507
      %510 = vst.msk [vmem:[#allocation3 + $0x20] sm:$0xff] %vm509, 0
      %511 = vst.msk [vmem:[#allocation3 + $0x48] sm:$0xff] %vm509, 0
      %vm512 = vcmask 1043456
      %vm513 = vmor %vm508, %vm512
      %514 = vst.msk [vmem:[#allocation4] sm:$0xff] %vm513, 0
      %515 = vst.msk [vmem:[#allocation4 + $0x2c] sm:$0xff] %vm513, 0
      %vm516 = vcmask 1043488
      %vm517 = vcmask 64516
      %vm518 = vmor %vm517, %vm516
      %519 = vst.msk [vmem:[#allocation4 + $0x24] sm:$0xff] %vm518, 0
      %520 = vst.msk [vmem:[#allocation4 + $0x50] sm:$0xff] %vm518, 0
      %521 = vst [vmem:[#allocation5] sm:$0xff] 0
      %vm522 = vcmask 60416
      %523 = vst.msk [vmem:[#allocation5 + $0x8] sm:$0xf] %vm522, 0
      %524 = vst [vmem:[#allocation5 + $0x34] sm:$0xff] 0
      %525 = vst.msk [vmem:[#allocation5 + $0x3c] sm:$0xf] %vm522, 0
      %vm526 = vcmask 1043520
      %vm527 = vcmask 1047556
      %vm528 = vmor %vm527, %vm526
      %529 = vst.msk [vmem:[#allocation5 + $0x28] sm:$0xff] %vm528, 0
      %vm530 = vcmask 125952
      %531 = vst.msk [vmem:[#allocation5 + $0x30] sm:$0xf] %vm530, 0
      %532 = vst.msk [vmem:[#allocation5 + $0x5c] sm:$0xff] %vm528, 0
      %533 = vst.msk [vmem:[#allocation5 + $0x64] sm:$0xf] %vm530, 0
      %v534 = vld [vmem:[%s487] sm:$0x77]
      %v535 = vld [vmem:[%s487 + $0x8] sm:$0x77]
      %v536 = vld [vmem:[%s487 + $0x10] sm:$0x77]
      %v537 = vld [vmem:[%s487 + $0x18] sm:$0x77]
      %542 = vst [vmem:[#allocation1] ss:$2 sm:$0xff] %v534
      %s543 = scalar_lea.vmem [#allocation1], 16
      %544 = vst [vmem:[%s543] ss:$2 sm:$0xff] %v535
      %s545 = scalar_lea.vmem [#allocation1], 32
      %546 = vst [vmem:[%s545] ss:$2 sm:$0xff] %v536
      %s547 = scalar_lea.vmem [#allocation1], 48
      %548 = vst [vmem:[%s547] ss:$2 sm:$0xff] %v537
      %v549 = vld.sshfl [vmem:[#allocation1] sm:$0xff pattern:$0x75316420]
      %v550 = vld.sshfl [vmem:[#allocation1 + $0x8] sm:$0xff pattern:$0x75316420]
      %v551 = vld.sshfl [vmem:[#allocation1 + $0x10] sm:$0xff pattern:$0x75316420]
      %v552 = vld.sshfl [vmem:[#allocation1 + $0x18] sm:$0xff pattern:$0x75316420]
      %v553 = vld.sshfl [vmem:[#allocation1 + $0x20] sm:$0xff pattern:$0x75316420]
      %v554 = vld.sshfl [vmem:[#allocation1 + $0x28] sm:$0xff pattern:$0x75316420]
      %v555 = vld.sshfl [vmem:[#allocation1 + $0x30] sm:$0xff pattern:$0x75316420]
      %v556 = vld.sshfl [vmem:[#allocation1 + $0x38] sm:$0xff pattern:$0x75316420]
      %v565 = vpack.c.bf16 %v550, %v549
      %v566 = vpack.c.bf16 %v552, %v551
      %v567 = vpack.c.bf16 %v554, %v553
      %v568 = vpack.c.bf16 %v556, %v555
      %573 = vrot.lane.b32.xlu0 %v565, 33
      %v574 = vpop.permute.xlu0 %573
      %575 = vrot.lane.b32.xlu0 %v566, 33
      %v576 = vpop.permute.xlu0 %575
      %577 = vrot.lane.b32.xlu0 %v567, 33
      %v578 = vpop.permute.xlu0 %577
      %579 = vrot.lane.b32.xlu0 %v568, 33
      %v580 = vpop.permute.xlu0 %579
      %v581 = vrot.slane %v574, 4
      %v582 = vrot.slane %v576, 4
      %v583 = vrot.slane %v578, 4
      %v584 = vrot.slane %v580, 4
      %vm585 = vcmask 269312
      %v586 = vsel %vm585, %v581, %v574
      %vm587 = vcmask 1043456
      %v588 = vsel %vm587, %v581, %v582
      %v589 = vsel %vm585, %v588, %v576
      %v590 = vsel %vm587, %v582, %v583
      %v591 = vsel %vm585, %v590, %v578
      %v592 = vsel %vm587, %v583, %v584
      %v593 = vsel %vm585, %v592, %v580
      %vm599 = vcmask 1041672
      %vm600 = vsmask.f32 1280
      %vm601 = vmand %vm599, %vm600
      %vm602 = vcmask 1045508
      %vm603 = vsmask.f32 5376
      %vm604 = vmand %vm602, %vm603
      %vm605 = vmor %vm604, %vm601
      %v606 = vld [vmem:[#allocation2] sm:$0x33]
      %v607 = vsel %vm605, %v586, %v606
      %608 = vst [vmem:[#allocation2] sm:$0x33] %v607
      %vm609 = vcmask 1041408
      %vm610 = vmand %vm609, %vm600
      %vm611 = vmor %vm604, %vm610
      %v612 = vld [vmem:[#allocation2 + $0x8] sm:$0x33]
      %v613 = vsel %vm611, %v589, %v612
      %614 = vst [vmem:[#allocation2 + $0x8] sm:$0x33] %v613
      %v615 = vld [vmem:[#allocation2 + $0x10] sm:$0x33]
      %v616 = vsel %vm611, %v591, %v615
      %617 = vst [vmem:[#allocation2 + $0x10] sm:$0x33] %v616
      %v618 = vld [vmem:[#allocation2 + $0x18] sm:$0x33]
      %v619 = vsel %vm611, %v593, %v618
      %620 = vst [vmem:[#allocation2 + $0x18] sm:$0x33] %v619
      %vm621 = vcmask 263168
      %vm622 = vmand %vm621, %vm600
      %v623 = vld [vmem:[#allocation2 + $0x20] sm:$0x3]
      %v624 = vsel %vm622, %v584, %v623
      %625 = vst [vmem:[#allocation2 + $0x20] sm:$0x3] %v624
      %v626 = vlaneseq
      %v627 = vand.u32 %v626, 127
      %v628 = vadd.s32 %v627, 128
      %v629 = vadd.s32 %v627, 256
      %v630 = vadd.s32 %v627, 384
      %v631 = vadd.s32 %v627, 512
      %v632 = vadd.s32 %v627, 640
      %v633 = vadd.s32 %v627, 768
      %v634 = vadd.s32 %v627, 896
      %vm635 = vcmp.lt.s32.totalorder %v627, 0
      %v636 = vsub.s32 0, %v627
      %v637 = vsel %vm635, %v636, %v627
      %v638 = vshrl.u32 %v637, 5
      %v639 = vand.u32 %v637, 31
      %v640 = vsub.s32 0, %v639
      %v641 = vsel %vm635, %v640, %v639
      %vm642 = vcmp.lt.s32.totalorder %v628, 0
      %v643 = vsub.s32 0, %v628
      %v644 = vsel %vm642, %v643, %v628
      %v645 = vshrl.u32 %v644, 5
      %v646 = vand.u32 %v644, 31
      %v647 = vsub.s32 0, %v646
      %v648 = vsel %vm642, %v647, %v646
      %vm649 = vcmp.lt.s32.totalorder %v629, 0
      %v650 = vsub.s32 0, %v629
      %v651 = vsel %vm649, %v650, %v629
      %v652 = vshrl.u32 %v651, 5
      %v653 = vand.u32 %v651, 31
      %v654 = vsub.s32 0, %v653
      %v655 = vsel %vm649, %v654, %v653
      %vm656 = vcmp.lt.s32.totalorder %v630, 0
      %v657 = vsub.s32 0, %v630
      %v658 = vsel %vm656, %v657, %v630
      %v659 = vshrl.u32 %v658, 5
      %v660 = vand.u32 %v658, 31
      %v661 = vsub.s32 0, %v660
      %v662 = vsel %vm656, %v661, %v660
      %vm663 = vcmp.lt.s32.totalorder %v631, 0
      %v664 = vsub.s32 0, %v631
      %v665 = vsel %vm663, %v664, %v631
      %v666 = vshrl.u32 %v665, 5
      %v667 = vand.u32 %v665, 31
      %v668 = vsub.s32 0, %v667
      %v669 = vsel %vm663, %v668, %v667
      %vm670 = vcmp.lt.s32.totalorder %v632, 0
      %v671 = vsub.s32 0, %v632
      %v672 = vsel %vm670, %v671, %v632
      %v673 = vshrl.u32 %v672, 5
      %v674 = vand.u32 %v672, 31
      %v675 = vsub.s32 0, %v674
      %v676 = vsel %vm670, %v675, %v674
      %vm677 = vcmp.lt.s32.totalorder %v633, 0
      %v678 = vsub.s32 0, %v633
      %v679 = vsel %vm677, %v678, %v633
      %v680 = vshrl.u32 %v679, 5
      %v681 = vand.u32 %v679, 31
      %v682 = vsub.s32 0, %v681
      %v683 = vsel %vm677, %v682, %v681
      %vm684 = vcmp.lt.s32.totalorder %v634, 0
      %v685 = vsub.s32 0, %v634
      %v686 = vsel %vm684, %v685, %v634
      %v687 = vshrl.u32 %v686, 5
      %v688 = vand.u32 %v686, 31
      %v689 = vsub.s32 0, %v688
      %v690 = vsel %vm684, %v689, %v688
      %vm691 = vcmp.ne.s32.totalorder %v641, 0
      %vm692 = vcmp.ne.s32.totalorder %v648, 0
      %vm693 = vcmp.ne.s32.totalorder %v655, 0
      %vm694 = vcmp.ne.s32.totalorder %v662, 0
      %vm695 = vcmp.ne.s32.totalorder %v669, 0
      %vm696 = vcmp.ne.s32.totalorder %v676, 0
      %vm697 = vcmp.ne.s32.totalorder %v683, 0
      %vm698 = vcmp.ne.s32.totalorder %v690, 0
      %vm699 = vcmp.lt.s32.totalorder %v641, 0
      %vm700 = vcmp.lt.s32.totalorder %v648, 0
      %vm701 = vcmp.lt.s32.totalorder %v655, 0
      %vm702 = vcmp.lt.s32.totalorder %v662, 0
      %vm703 = vcmp.lt.s32.totalorder %v669, 0
      %vm704 = vcmp.lt.s32.totalorder %v676, 0
      %vm705 = vcmp.lt.s32.totalorder %v683, 0
      %vm706 = vcmp.lt.s32.totalorder %v690, 0
      %vm707 = vmand %vm699, %vm691
      %vm708 = vmand %vm700, %vm692
      %vm709 = vmand %vm701, %vm693
      %vm710 = vmand %vm702, %vm694
      %vm711 = vmand %vm703, %vm695
      %vm712 = vmand %vm704, %vm696
      %vm713 = vmand %vm705, %vm697
      %vm714 = vmand %vm706, %vm698
      %v715 = vadd.s32 %v641, 32
      %v716 = vadd.s32 %v648, 32
      %v717 = vadd.s32 %v655, 32
      %v718 = vadd.s32 %v662, 32
      %v719 = vadd.s32 %v669, 32
      %v720 = vadd.s32 %v676, 32
      %v721 = vadd.s32 %v683, 32
      %v722 = vadd.s32 %v690, 32
      %v723 = vsel %vm707, %v715, %v641
      %v724 = vsel %vm708, %v716, %v648
      %v725 = vsel %vm709, %v717, %v655
      %v726 = vsel %vm710, %v718, %v662
      %v727 = vsel %vm711, %v719, %v669
      %v728 = vsel %vm712, %v720, %v676
      %v729 = vsel %vm713, %v721, %v683
      %v730 = vsel %vm714, %v722, %v690
      %v731 = vld [vmem:[#allocation2] sm:$0xff]
      %v732 = vld [vmem:[#allocation2 + $0x8] sm:$0xff]
      %v733 = vld [vmem:[#allocation2 + $0x10] sm:$0xff]
      %v734 = vld [vmem:[#allocation2 + $0x18] sm:$0xff]
      %v735 = vld [vmem:[#allocation2 + $0x24] sm:$0xff]
      %v736 = vld [vmem:[#allocation2 + $0x2c] sm:$0xff]
      %v737 = vld [vmem:[#allocation2 + $0x34] sm:$0xff]
      %v738 = vld [vmem:[#allocation2 + $0x3c] sm:$0xff]
      %vm739 = vcmp.ge.s32.totalorder %v723, 1
      %vm740 = vcmp.ge.s32.totalorder %v724, 1
      %vm741 = vcmp.ge.s32.totalorder %v725, 1
      %vm742 = vcmp.ge.s32.totalorder %v726, 1
      %vm743 = vcmp.ge.s32.totalorder %v727, 1
      %vm744 = vcmp.ge.s32.totalorder %v728, 1
      %vm745 = vcmp.ge.s32.totalorder %v729, 1
      %vm746 = vcmp.ge.s32.totalorder %v730, 1
      %v747 = vsel %vm739, 1, 0
      %v748 = vsel %vm740, 1, 0
      %v749 = vsel %vm741, 1, 0
      %v750 = vsel %vm742, 1, 0
      %v751 = vsel %vm743, 1, 0
      %v752 = vsel %vm744, 1, 0
      %v753 = vsel %vm745, 1, 0
      %v754 = vsel %vm746, 1, 0
      %vm755 = vcmp.eq.s32.totalorder %v747, 1
      %vm756 = vcmp.eq.s32.totalorder %v748, 1
      %vm757 = vcmp.eq.s32.totalorder %v749, 1
      %vm758 = vcmp.eq.s32.totalorder %v750, 1
      %vm759 = vcmp.eq.s32.totalorder %v751, 1
      %vm760 = vcmp.eq.s32.totalorder %v752, 1
      %vm761 = vcmp.eq.s32.totalorder %v753, 1
      %vm762 = vcmp.eq.s32.totalorder %v754, 1
      %vm763 = vmpackc.low %vm756, %vm755
      %vm764 = vmpackc.low %vm758, %vm757
      %vm765 = vmpackc.low %vm760, %vm759
      %vm766 = vmpackc.low %vm762, %vm761
      %v767 = vsel %vm763, %v731, 0
      %v768 = vsel %vm764, %v732, 0
      %v769 = vsel %vm765, %v733, 0
      %v770 = vsel %vm766, %v734, 0
      %v771 = vsel %vm763, %v735, 0
      %v772 = vsel %vm764, %v736, 0
      %v773 = vsel %vm765, %v737, 0
      %v774 = vsel %vm766, %v738, 0
      %v775 = vld [vmem:[#allocation2 + $0x20] sm:$0xf]
      %v776 = vld [vmem:[#allocation2 + $0x44] sm:$0xf]
      %vm777 = vcmp.lt.s32.totalorder %v723, 31
      %vm778 = vcmp.lt.s32.totalorder %v724, 31
      %vm779 = vcmp.lt.s32.totalorder %v725, 31
      %vm780 = vcmp.lt.s32.totalorder %v726, 31
      %vm781 = vcmp.lt.s32.totalorder %v727, 31
      %vm782 = vcmp.lt.s32.totalorder %v728, 31
      %vm783 = vcmp.lt.s32.totalorder %v729, 31
      %vm784 = vcmp.lt.s32.totalorder %v730, 31
      %v785 = vsel %vm777, 1, 0
      %v786 = vsel %vm778, 1, 0
      %v787 = vsel %vm779, 1, 0
      %v788 = vsel %vm780, 1, 0
      %v789 = vsel %vm781, 1, 0
      %v790 = vsel %vm782, 1, 0
      %v791 = vsel %vm783, 1, 0
      %v792 = vsel %vm784, 1, 0
      %vm793 = vcmp.eq.s32.totalorder %v785, 1
      %vm794 = vcmp.eq.s32.totalorder %v786, 1
      %vm795 = vcmp.eq.s32.totalorder %v787, 1
      %vm796 = vcmp.eq.s32.totalorder %v788, 1
      %vm797 = vcmp.eq.s32.totalorder %v789, 1
      %vm798 = vcmp.eq.s32.totalorder %v790, 1
      %vm799 = vcmp.eq.s32.totalorder %v791, 1
      %vm800 = vcmp.eq.s32.totalorder %v792, 1
      %vm801 = vmpackc.low %vm794, %vm793
      %vm802 = vmpackc.low %vm796, %vm795
      %vm803 = vmpackc.low %vm798, %vm797
      %vm804 = vmpackc.low %vm800, %vm799
      %v805 = vsel %vm801, 65537, 0
      %v806 = vsel %vm802, 65537, 0
      %v807 = vsel %vm803, 65537, 0
      %v808 = vsel %vm804, 65537, 0
      %809 = vrot.lane.b32.xlu0 %v805, 2
      %v810 = vpop.permute.xlu0 %809
      %811 = vrot.lane.b32.xlu0 %v806, 2
      %v812 = vpop.permute.xlu0 %811
      %813 = vrot.lane.b32.xlu0 %v807, 2
      %v814 = vpop.permute.xlu0 %813
      %815 = vrot.lane.b32.xlu0 %v808, 2
      %v816 = vpop.permute.xlu0 %815
      %v817 = vrot.slane %v810, 4
      %v818 = vrot.slane %v812, 4
      %v819 = vrot.slane %v814, 4
      %v820 = vrot.slane %v816, 4
      %vm821 = vcmask 15360
      %v822 = vsel %vm821, %v817, %v810
      %v823 = vsel %vm587, %v817, %v818
      %v824 = vsel %vm821, %v823, %v812
      %v825 = vsel %vm587, %v818, %v819
      %v826 = vsel %vm821, %v825, %v814
      %v827 = vsel %vm587, %v819, %v820
      %v828 = vsel %vm821, %v827, %v816
      %v829 = vunpack.c.l.b16 %v822
      %v830 = vunpack.c.h.b16 %v822
      %v831 = vunpack.c.l.b16 0
      %v832 = vunpack.c.h.b16 0
      %vm833 = vcmp.ne.s32.totalorder %v829, %v831
      %vm834 = vcmp.ne.s32.totalorder %v830, %v832
      %vm835 = vmpackc.low %vm834, %vm833
      %v836 = vunpack.c.l.b16 %v824
      %v837 = vunpack.c.h.b16 %v824
      %v838 = vunpack.c.l.b16 0
      %v839 = vunpack.c.h.b16 0
      %vm840 = vcmp.ne.s32.totalorder %v836, %v838
      %vm841 = vcmp.ne.s32.totalorder %v837, %v839
      %vm842 = vmpackc.low %vm841, %vm840
      %v843 = vunpack.c.l.b16 %v826
      %v844 = vunpack.c.h.b16 %v826
      %v845 = vunpack.c.l.b16 0
      %v846 = vunpack.c.h.b16 0
      %vm847 = vcmp.ne.s32.totalorder %v843, %v845
      %vm848 = vcmp.ne.s32.totalorder %v844, %v846
      %vm849 = vmpackc.low %vm848, %vm847
      %v850 = vunpack.c.l.b16 %v828
      %v851 = vunpack.c.h.b16 %v828
      %v852 = vunpack.c.l.b16 0
      %v853 = vunpack.c.h.b16 0
      %vm854 = vcmp.ne.s32.totalorder %v850, %v852
      %vm855 = vcmp.ne.s32.totalorder %v851, %v853
      %vm856 = vmpackc.low %vm855, %vm854
      %v857 = vunpack.c.l.b16 %v820
      %v858 = vunpack.c.h.b16 %v820
      %v859 = vunpack.c.l.b16 0
      %v860 = vunpack.c.h.b16 0
      %vm861 = vcmp.ne.s32.totalorder %v857, %v859
      %vm862 = vcmp.ne.s32.totalorder %v858, %v860
      %vm863 = vmpackc.low %vm862, %vm861
      %v864 = vsel %vm835, %v731, 0
      %v865 = vsel %vm842, %v732, 0
      %v866 = vsel %vm849, %v733, 0
      %v867 = vsel %vm856, %v734, 0
      %v868 = vsel %vm863, %v775, 0
      %v869 = vsel %vm835, %v735, 0
      %v870 = vsel %vm842, %v736, 0
      %v871 = vsel %vm849, %v737, 0
      %v872 = vsel %vm856, %v738, 0
      %v873 = vsel %vm863, %v776, 0
      %v874 = vsel %vm763, 65537, 0
      %v875 = vsel %vm764, 65537, 0
      %v876 = vsel %vm765, 65537, 0
      %v877 = vsel %vm766, 65537, 0
      %878 = vrot.lane.b32.xlu0 %v874, 32
      %v879 = vpop.permute.xlu0 %878
      %880 = vrot.lane.b32.xlu0 %v875, 32
      %v881 = vpop.permute.xlu0 %880
      %882 = vrot.lane.b32.xlu0 %v876, 32
      %v883 = vpop.permute.xlu0 %882
      %884 = vrot.lane.b32.xlu0 %v877, 32
      %v885 = vpop.permute.xlu0 %884
      %v886 = vrot.slane %v879, 4
      %v887 = vrot.slane %v881, 4
      %v888 = vrot.slane %v883, 4
      %v889 = vrot.slane %v885, 4
      %vm890 = vcmask 261120
      %v891 = vsel %vm890, %v886, %v879
      %v892 = vsel %vm587, %v886, %v887
      %v893 = vsel %vm890, %v892, %v881
      %v894 = vsel %vm587, %v887, %v888
      %v895 = vsel %vm890, %v894, %v883
      %v896 = vsel %vm587, %v888, %v889
      %v897 = vsel %vm890, %v896, %v885
      %v898 = vunpack.c.l.b16 %v891
      %v899 = vunpack.c.h.b16 %v891
      %v900 = vunpack.c.l.b16 0
      %v901 = vunpack.c.h.b16 0
      %vm902 = vcmp.ne.s32.totalorder %v898, %v900
      %vm903 = vcmp.ne.s32.totalorder %v899, %v901
      %vm904 = vmpackc.low %vm903, %vm902
      %v905 = vunpack.c.l.b16 %v893
      %v906 = vunpack.c.h.b16 %v893
      %v907 = vunpack.c.l.b16 0
      %v908 = vunpack.c.h.b16 0
      %vm909 = vcmp.ne.s32.totalorder %v905, %v907
      %vm910 = vcmp.ne.s32.totalorder %v906, %v908
      %vm911 = vmpackc.low %vm910, %vm909
      %v912 = vunpack.c.l.b16 %v895
      %v913 = vunpack.c.h.b16 %v895
      %v914 = vunpack.c.l.b16 0
      %v915 = vunpack.c.h.b16 0
      %vm916 = vcmp.ne.s32.totalorder %v912, %v914
      %vm917 = vcmp.ne.s32.totalorder %v913, %v915
      %vm918 = vmpackc.low %vm917, %vm916
      %v919 = vunpack.c.l.b16 %v897
      %v920 = vunpack.c.h.b16 %v897
      %v921 = vunpack.c.l.b16 0
      %v922 = vunpack.c.h.b16 0
      %vm923 = vcmp.ne.s32.totalorder %v919, %v921
      %vm924 = vcmp.ne.s32.totalorder %v920, %v922
      %vm925 = vmpackc.low %vm924, %vm923
      %v926 = vunpack.c.l.b16 %v889
      %v927 = vunpack.c.h.b16 %v889
      %v928 = vunpack.c.l.b16 0
      %v929 = vunpack.c.h.b16 0
      %vm930 = vcmp.ne.s32.totalorder %v926, %v928
      %vm931 = vcmp.ne.s32.totalorder %v927, %v929
      %vm932 = vmpackc.low %vm931, %vm930
      %v933 = vsel %vm904, %v731, 0
      %v934 = vsel %vm911, %v732, 0
      %v935 = vsel %vm918, %v733, 0
      %v936 = vsel %vm925, %v734, 0
      %v937 = vsel %vm932, %v775, 0
      %v938 = vsel %vm904, %v735, 0
      %v939 = vsel %vm911, %v736, 0
      %v940 = vsel %vm918, %v737, 0
      %v941 = vsel %vm925, %v738, 0
      %v942 = vsel %vm932, %v776, 0
      %943 = vrot.lane.b32.xlu0 %v805, 34
      %v944 = vpop.permute.xlu0 %943
      %945 = vrot.lane.b32.xlu0 %v806, 34
      %v946 = vpop.permute.xlu0 %945
      %947 = vrot.lane.b32.xlu0 %v807, 34
      %v948 = vpop.permute.xlu0 %947
      %949 = vrot.lane.b32.xlu0 %v808, 34
      %v950 = vpop.permute.xlu0 %949
      %v951 = vrot.slane %v944, 4
      %v952 = vrot.slane %v946, 4
      %v953 = vrot.slane %v948, 4
      %v954 = vrot.slane %v950, 4
      %vm955 = vcmask 277504
      %v956 = vsel %vm955, %v951, %v944
      %v957 = vsel %vm587, %v951, %v952
      %v958 = vsel %vm955, %v957, %v946
      %v959 = vsel %vm587, %v952, %v953
      %v960 = vsel %vm955, %v959, %v948
      %v961 = vsel %vm587, %v953, %v954
      %v962 = vsel %vm955, %v961, %v950
      %v963 = vunpack.c.l.b16 %v956
      %v964 = vunpack.c.h.b16 %v956
      %v965 = vunpack.c.l.b16 0
      %v966 = vunpack.c.h.b16 0
      %vm967 = vcmp.ne.s32.totalorder %v963, %v965
      %vm968 = vcmp.ne.s32.totalorder %v964, %v966
      %vm969 = vmpackc.low %vm968, %vm967
      %v970 = vunpack.c.l.b16 %v958
      %v971 = vunpack.c.h.b16 %v958
      %v972 = vunpack.c.l.b16 0
      %v973 = vunpack.c.h.b16 0
      %vm974 = vcmp.ne.s32.totalorder %v970, %v972
      %vm975 = vcmp.ne.s32.totalorder %v971, %v973
      %vm976 = vmpackc.low %vm975, %vm974
      %v977 = vunpack.c.l.b16 %v960
      %v978 = vunpack.c.h.b16 %v960
      %v979 = vunpack.c.l.b16 0
      %v980 = vunpack.c.h.b16 0
      %vm981 = vcmp.ne.s32.totalorder %v977, %v979
      %vm982 = vcmp.ne.s32.totalorder %v978, %v980
      %vm983 = vmpackc.low %vm982, %vm981
      %v984 = vunpack.c.l.b16 %v962
      %v985 = vunpack.c.h.b16 %v962
      %v986 = vunpack.c.l.b16 0
      %v987 = vunpack.c.h.b16 0
      %vm988 = vcmp.ne.s32.totalorder %v984, %v986
      %vm989 = vcmp.ne.s32.totalorder %v985, %v987
      %vm990 = vmpackc.low %vm989, %vm988
      %v991 = vunpack.c.l.b16 %v954
      %v992 = vunpack.c.h.b16 %v954
      %v993 = vunpack.c.l.b16 0
      %v994 = vunpack.c.h.b16 0
      %vm995 = vcmp.ne.s32.totalorder %v991, %v993
      %vm996 = vcmp.ne.s32.totalorder %v992, %v994
      %vm997 = vmpackc.low %vm996, %vm995
      %v998 = vsel %vm969, %v731, 0
      %v999 = vsel %vm976, %v732, 0
      %v1000 = vsel %vm983, %v733, 0
      %v1001 = vsel %vm990, %v734, 0
      %v1002 = vsel %vm997, %v775, 0
      %v1003 = vsel %vm969, %v735, 0
      %v1004 = vsel %vm976, %v736, 0
      %v1005 = vsel %vm983, %v737, 0
      %v1006 = vsel %vm990, %v738, 0
      %v1007 = vsel %vm997, %v776, 0
      %1008 = vrot.lane.b32.xlu0 %v874, 64
      %v1009 = vpop.permute.xlu0 %1008
      %1010 = vrot.lane.b32.xlu0 %v875, 64
      %v1011 = vpop.permute.xlu0 %1010
      %1012 = vrot.lane.b32.xlu0 %v876, 64
      %v1013 = vpop.permute.xlu0 %1012
      %1014 = vrot.lane.b32.xlu0 %v877, 64
      %v1015 = vpop.permute.xlu0 %1014
      %v1016 = vrot.slane %v1009, 4
      %v1017 = vrot.slane %v1011, 4
      %v1018 = vrot.slane %v1013, 4
      %v1019 = vrot.slane %v1015, 4
      %vm1020 = vcmask 523264
      %v1021 = vsel %vm1020, %v1016, %v1009
      %v1022 = vsel %vm587, %v1016, %v1017
      %v1023 = vsel %vm1020, %v1022, %v1011
      %v1024 = vsel %vm587, %v1017, %v1018
      %v1025 = vsel %vm1020, %v1024, %v1013
      %v1026 = vsel %vm587, %v1018, %v1019
      %v1027 = vsel %vm1020, %v1026, %v1015
      %v1028 = vunpack.c.l.b16 %v1021
      %v1029 = vunpack.c.h.b16 %v1021
      %v1030 = vunpack.c.l.b16 0
      %v1031 = vunpack.c.h.b16 0
      %vm1032 = vcmp.ne.s32.totalorder %v1028, %v1030
      %vm1033 = vcmp.ne.s32.totalorder %v1029, %v1031
      %vm1034 = vmpackc.low %vm1033, %vm1032
      %v1035 = vunpack.c.l.b16 %v1023
      %v1036 = vunpack.c.h.b16 %v1023
      %v1037 = vunpack.c.l.b16 0
      %v1038 = vunpack.c.h.b16 0
      %vm1039 = vcmp.ne.s32.totalorder %v1035, %v1037
      %vm1040 = vcmp.ne.s32.totalorder %v1036, %v1038
      %vm1041 = vmpackc.low %vm1040, %vm1039
      %v1042 = vunpack.c.l.b16 %v1025
      %v1043 = vunpack.c.h.b16 %v1025
      %v1044 = vunpack.c.l.b16 0
      %v1045 = vunpack.c.h.b16 0
      %vm1046 = vcmp.ne.s32.totalorder %v1042, %v1044
      %vm1047 = vcmp.ne.s32.totalorder %v1043, %v1045
      %vm1048 = vmpackc.low %vm1047, %vm1046
      %v1049 = vunpack.c.l.b16 %v1027
      %v1050 = vunpack.c.h.b16 %v1027
      %v1051 = vunpack.c.l.b16 0
      %v1052 = vunpack.c.h.b16 0
      %vm1053 = vcmp.ne.s32.totalorder %v1049, %v1051
      %vm1054 = vcmp.ne.s32.totalorder %v1050, %v1052
      %vm1055 = vmpackc.low %vm1054, %vm1053
      %v1056 = vunpack.c.l.b16 %v1019
      %v1057 = vunpack.c.h.b16 %v1019
      %v1058 = vunpack.c.l.b16 0
      %v1059 = vunpack.c.h.b16 0
      %vm1060 = vcmp.ne.s32.totalorder %v1056, %v1058
      %vm1061 = vcmp.ne.s32.totalorder %v1057, %v1059
      %vm1062 = vmpackc.low %vm1061, %vm1060
      %v1063 = vsel %vm1034, %v731, 0
      %v1064 = vsel %vm1041, %v732, 0
      %v1065 = vsel %vm1048, %v733, 0
      %v1066 = vsel %vm1055, %v734, 0
      %v1067 = vsel %vm1062, %v775, 0
      %v1068 = vsel %vm1034, %v735, 0
      %v1069 = vsel %vm1041, %v736, 0
      %v1070 = vsel %vm1048, %v737, 0
      %v1071 = vsel %vm1055, %v738, 0
      %v1072 = vsel %vm1062, %v776, 0
      %1073 = vrot.lane.b32.xlu0 %v805, 66
      %v1074 = vpop.permute.xlu0 %1073
      %1075 = vrot.lane.b32.xlu0 %v806, 66
      %v1076 = vpop.permute.xlu0 %1075
      %1077 = vrot.lane.b32.xlu0 %v807, 66
      %v1078 = vpop.permute.xlu0 %1077
      %1079 = vrot.lane.b32.xlu0 %v808, 66
      %v1080 = vpop.permute.xlu0 %1079
      %v1081 = vrot.slane %v1074, 4
      %v1082 = vrot.slane %v1076, 4
      %v1083 = vrot.slane %v1078, 4
      %v1084 = vrot.slane %v1080, 4
      %vm1085 = vcmask 539648
      %v1086 = vsel %vm1085, %v1081, %v1074
      %v1087 = vsel %vm587, %v1081, %v1082
      %v1088 = vsel %vm1085, %v1087, %v1076
      %v1089 = vsel %vm587, %v1082, %v1083
      %v1090 = vsel %vm1085, %v1089, %v1078
      %v1091 = vsel %vm587, %v1083, %v1084
      %v1092 = vsel %vm1085, %v1091, %v1080
      %v1093 = vunpack.c.l.b16 %v1086
      %v1094 = vunpack.c.h.b16 %v1086
      %v1095 = vunpack.c.l.b16 0
      %v1096 = vunpack.c.h.b16 0
      %vm1097 = vcmp.ne.s32.totalorder %v1093, %v1095
      %vm1098 = vcmp.ne.s32.totalorder %v1094, %v1096
      %vm1099 = vmpackc.low %vm1098, %vm1097
      %v1100 = vunpack.c.l.b16 %v1088
      %v1101 = vunpack.c.h.b16 %v1088
      %v1102 = vunpack.c.l.b16 0
      %v1103 = vunpack.c.h.b16 0
      %vm1104 = vcmp.ne.s32.totalorder %v1100, %v1102
      %vm1105 = vcmp.ne.s32.totalorder %v1101, %v1103
      %vm1106 = vmpackc.low %vm1105, %vm1104
      %v1107 = vunpack.c.l.b16 %v1090
      %v1108 = vunpack.c.h.b16 %v1090
      %v1109 = vunpack.c.l.b16 0
      %v1110 = vunpack.c.h.b16 0
      %vm1111 = vcmp.ne.s32.totalorder %v1107, %v1109
      %vm1112 = vcmp.ne.s32.totalorder %v1108, %v1110
      %vm1113 = vmpackc.low %vm1112, %vm1111
      %v1114 = vunpack.c.l.b16 %v1092
      %v1115 = vunpack.c.h.b16 %v1092
      %v1116 = vunpack.c.l.b16 0
      %v1117 = vunpack.c.h.b16 0
      %vm1118 = vcmp.ne.s32.totalorder %v1114, %v1116
      %vm1119 = vcmp.ne.s32.totalorder %v1115, %v1117
      %vm1120 = vmpackc.low %vm1119, %vm1118
      %v1121 = vunpack.c.l.b16 %v1084
      %v1122 = vunpack.c.h.b16 %v1084
      %v1123 = vunpack.c.l.b16 0
      %v1124 = vunpack.c.h.b16 0
      %vm1125 = vcmp.ne.s32.totalorder %v1121, %v1123
      %vm1126 = vcmp.ne.s32.totalorder %v1122, %v1124
      %vm1127 = vmpackc.low %vm1126, %vm1125
      %v1128 = vsel %vm1099, %v731, 0
      %v1129 = vsel %vm1106, %v732, 0
      %v1130 = vsel %vm1113, %v733, 0
      %v1131 = vsel %vm1120, %v734, 0
      %v1132 = vsel %vm1127, %v775, 0
      %v1133 = vsel %vm1099, %v735, 0
      %v1134 = vsel %vm1106, %v736, 0
      %v1135 = vsel %vm1113, %v737, 0
      %v1136 = vsel %vm1120, %v738, 0
      %v1137 = vsel %vm1127, %v776, 0
      %v1146 = vunpack.c.l.b16 %v767
      %v1147 = vunpack.c.h.b16 %v767
      %v1148 = vunpack.c.l.b16 %v768
      %v1149 = vunpack.c.h.b16 %v768
      %v1150 = vunpack.c.l.b16 %v769
      %v1151 = vunpack.c.h.b16 %v769
      %v1152 = vunpack.c.l.b16 %v770
      %v1153 = vunpack.c.h.b16 %v770
      %v1154 = vunpack.c.l.b16 %v771
      %v1155 = vunpack.c.h.b16 %v771
      %v1156 = vunpack.c.l.b16 %v772
      %v1157 = vunpack.c.h.b16 %v772
      %v1158 = vunpack.c.l.b16 %v773
      %v1159 = vunpack.c.h.b16 %v773
      %v1160 = vunpack.c.l.b16 %v774
      %v1161 = vunpack.c.h.b16 %v774
      %v1162 = vpack.c.b16 %v1154, %v1146
      %v1163 = vpack.c.b16 %v1155, %v1147
      %v1164 = vpack.c.b16 %v1156, %v1148
      %v1165 = vpack.c.b16 %v1157, %v1149
      %v1166 = vpack.c.b16 %v1158, %v1150
      %v1167 = vpack.c.b16 %v1159, %v1151
      %v1168 = vpack.c.b16 %v1160, %v1152
      %v1169 = vpack.c.b16 %v1161, %v1153
      %v1188 = vunpack.c.l.b16 %v731
      %v1189 = vunpack.c.h.b16 %v731
      %v1190 = vunpack.c.l.b16 %v732
      %v1191 = vunpack.c.h.b16 %v732
      %v1192 = vunpack.c.l.b16 %v733
      %v1193 = vunpack.c.h.b16 %v733
      %v1194 = vunpack.c.l.b16 %v734
      %v1195 = vunpack.c.h.b16 %v734
      %v1196 = vunpack.c.l.b16 %v775
      %v1197 = vunpack.c.l.b16 %v735
      %v1198 = vunpack.c.h.b16 %v735
      %v1199 = vunpack.c.l.b16 %v736
      %v1200 = vunpack.c.h.b16 %v736
      %v1201 = vunpack.c.l.b16 %v737
      %v1202 = vunpack.c.h.b16 %v737
      %v1203 = vunpack.c.l.b16 %v738
      %v1204 = vunpack.c.h.b16 %v738
      %v1205 = vunpack.c.l.b16 %v776
      %v1206 = vpack.c.b16 %v1197, %v1188
      %v1207 = vpack.c.b16 %v1198, %v1189
      %v1208 = vpack.c.b16 %v1199, %v1190
      %v1209 = vpack.c.b16 %v1200, %v1191
      %v1210 = vpack.c.b16 %v1201, %v1192
      %v1211 = vpack.c.b16 %v1202, %v1193
      %v1212 = vpack.c.b16 %v1203, %v1194
      %v1213 = vpack.c.b16 %v1204, %v1195
      %v1214 = vpack.c.b16 %v1205, %v1196
      %1215 = vrot.lane.b32.xlu0 %v1206, 127
      %v1216 = vpop.permute.xlu0 %1215
      %1217 = vrot.lane.b32.xlu0 %v1207, 127
      %v1218 = vpop.permute.xlu0 %1217
      %1219 = vrot.lane.b32.xlu0 %v1208, 127
      %v1220 = vpop.permute.xlu0 %1219
      %1221 = vrot.lane.b32.xlu0 %v1209, 127
      %v1222 = vpop.permute.xlu0 %1221
      %1223 = vrot.lane.b32.xlu0 %v1210, 127
      %v1224 = vpop.permute.xlu0 %1223
      %1225 = vrot.lane.b32.xlu0 %v1211, 127
      %v1226 = vpop.permute.xlu0 %1225
      %1227 = vrot.lane.b32.xlu0 %v1212, 127
      %v1228 = vpop.permute.xlu0 %1227
      %1229 = vrot.lane.b32.xlu0 %v1213, 127
      %v1230 = vpop.permute.xlu0 %1229
      %1231 = vrot.lane.b32.xlu0 %v1214, 127
      %v1232 = vpop.permute.xlu0 %1231
      %vm1233 = vcmask 1039360
      %v1234 = vsel %vm1233, %v1216, %v1218
      %v1235 = vsel %vm1233, %v1218, %v1220
      %v1236 = vsel %vm1233, %v1220, %v1222
      %v1237 = vsel %vm1233, %v1222, %v1224
      %v1238 = vsel %vm1233, %v1224, %v1226
      %v1239 = vsel %vm1233, %v1226, %v1228
      %v1240 = vsel %vm1233, %v1228, %v1230
      %v1241 = vsel %vm1233, %v1230, %v1232
      %v1260 = vunpack.c.l.b16 %v864
      %v1261 = vunpack.c.h.b16 %v864
      %v1262 = vunpack.c.l.b16 %v865
      %v1263 = vunpack.c.h.b16 %v865
      %v1264 = vunpack.c.l.b16 %v866
      %v1265 = vunpack.c.h.b16 %v866
      %v1266 = vunpack.c.l.b16 %v867
      %v1267 = vunpack.c.h.b16 %v867
      %v1268 = vunpack.c.l.b16 %v868
      %v1269 = vunpack.c.l.b16 %v869
      %v1270 = vunpack.c.h.b16 %v869
      %v1271 = vunpack.c.l.b16 %v870
      %v1272 = vunpack.c.h.b16 %v870
      %v1273 = vunpack.c.l.b16 %v871
      %v1274 = vunpack.c.h.b16 %v871
      %v1275 = vunpack.c.l.b16 %v872
      %v1276 = vunpack.c.h.b16 %v872
      %v1277 = vunpack.c.l.b16 %v873
      %v1278 = vpack.c.b16 %v1269, %v1260
      %v1279 = vpack.c.b16 %v1270, %v1261
      %v1280 = vpack.c.b16 %v1271, %v1262
      %v1281 = vpack.c.b16 %v1272, %v1263
      %v1282 = vpack.c.b16 %v1273, %v1264
      %v1283 = vpack.c.b16 %v1274, %v1265
      %v1284 = vpack.c.b16 %v1275, %v1266
      %v1285 = vpack.c.b16 %v1276, %v1267
      %v1286 = vpack.c.b16 %v1277, %v1268
      %1287 = vrot.lane.b32.xlu0 %v1278, 126
      %v1288 = vpop.permute.xlu0 %1287
      %1289 = vrot.lane.b32.xlu0 %v1279, 126
      %v1290 = vpop.permute.xlu0 %1289
      %1291 = vrot.lane.b32.xlu0 %v1280, 126
      %v1292 = vpop.permute.xlu0 %1291
      %1293 = vrot.lane.b32.xlu0 %v1281, 126
      %v1294 = vpop.permute.xlu0 %1293
      %1295 = vrot.lane.b32.xlu0 %v1282, 126
      %v1296 = vpop.permute.xlu0 %1295
      %1297 = vrot.lane.b32.xlu0 %v1283, 126
      %v1298 = vpop.permute.xlu0 %1297
      %1299 = vrot.lane.b32.xlu0 %v1284, 126
      %v1300 = vpop.permute.xlu0 %1299
      %1301 = vrot.lane.b32.xlu0 %v1285, 126
      %v1302 = vpop.permute.xlu0 %1301
      %1303 = vrot.lane.b32.xlu0 %v1286, 126
      %v1304 = vpop.permute.xlu0 %1303
      %vm1305 = vcmask 1031168
      %v1306 = vsel %vm1305, %v1288, %v1290
      %v1307 = vsel %vm1305, %v1290, %v1292
      %v1308 = vsel %vm1305, %v1292, %v1294
      %v1309 = vsel %vm1305, %v1294, %v1296
      %v1310 = vsel %vm1305, %v1296, %v1298
      %v1311 = vsel %vm1305, %v1298, %v1300
      %v1312 = vsel %vm1305, %v1300, %v1302
      %v1313 = vsel %vm1305, %v1302, %v1304
      %v1332 = vunpack.c.l.b16 %v933
      %v1333 = vunpack.c.h.b16 %v933
      %v1334 = vunpack.c.l.b16 %v934
      %v1335 = vunpack.c.h.b16 %v934
      %v1336 = vunpack.c.l.b16 %v935
      %v1337 = vunpack.c.h.b16 %v935
      %v1338 = vunpack.c.l.b16 %v936
      %v1339 = vunpack.c.h.b16 %v936
      %v1340 = vunpack.c.l.b16 %v937
      %v1341 = vunpack.c.l.b16 %v938
      %v1342 = vunpack.c.h.b16 %v938
      %v1343 = vunpack.c.l.b16 %v939
      %v1344 = vunpack.c.h.b16 %v939
      %v1345 = vunpack.c.l.b16 %v940
      %v1346 = vunpack.c.h.b16 %v940
      %v1347 = vunpack.c.l.b16 %v941
      %v1348 = vunpack.c.h.b16 %v941
      %v1349 = vunpack.c.l.b16 %v942
      %v1350 = vpack.c.b16 %v1341, %v1332
      %v1351 = vpack.c.b16 %v1342, %v1333
      %v1352 = vpack.c.b16 %v1343, %v1334
      %v1353 = vpack.c.b16 %v1344, %v1335
      %v1354 = vpack.c.b16 %v1345, %v1336
      %v1355 = vpack.c.b16 %v1346, %v1337
      %v1356 = vpack.c.b16 %v1347, %v1338
      %v1357 = vpack.c.b16 %v1348, %v1339
      %v1358 = vpack.c.b16 %v1349, %v1340
      %1359 = vrot.lane.b32.xlu0 %v1350, 96
      %v1360 = vpop.permute.xlu0 %1359
      %1361 = vrot.lane.b32.xlu0 %v1351, 96
      %v1362 = vpop.permute.xlu0 %1361
      %1363 = vrot.lane.b32.xlu0 %v1352, 96
      %v1364 = vpop.permute.xlu0 %1363
      %1365 = vrot.lane.b32.xlu0 %v1353, 96
      %v1366 = vpop.permute.xlu0 %1365
      %1367 = vrot.lane.b32.xlu0 %v1354, 96
      %v1368 = vpop.permute.xlu0 %1367
      %1369 = vrot.lane.b32.xlu0 %v1355, 96
      %v1370 = vpop.permute.xlu0 %1369
      %1371 = vrot.lane.b32.xlu0 %v1356, 96
      %v1372 = vpop.permute.xlu0 %1371
      %1373 = vrot.lane.b32.xlu0 %v1357, 96
      %v1374 = vpop.permute.xlu0 %1373
      %1375 = vrot.lane.b32.xlu0 %v1358, 96
      %v1376 = vpop.permute.xlu0 %1375
      %vm1377 = vcmask 785408
      %v1378 = vsel %vm1377, %v1360, %v1362
      %v1379 = vsel %vm1377, %v1362, %v1364
      %v1380 = vsel %vm1377, %v1364, %v1366
      %v1381 = vsel %vm1377, %v1366, %v1368
      %v1382 = vsel %vm1377, %v1368, %v1370
      %v1383 = vsel %vm1377, %v1370, %v1372
      %v1384 = vsel %vm1377, %v1372, %v1374
      %v1385 = vsel %vm1377, %v1374, %v1376
      %1394 = vrot.lane.b32.xlu0 %v1206, 95
      %v1395 = vpop.permute.xlu0 %1394
      %1396 = vrot.lane.b32.xlu0 %v1207, 95
      %v1397 = vpop.permute.xlu0 %1396
      %1398 = vrot.lane.b32.xlu0 %v1208, 95
      %v1399 = vpop.permute.xlu0 %1398
      %1400 = vrot.lane.b32.xlu0 %v1209, 95
      %v1401 = vpop.permute.xlu0 %1400
      %1402 = vrot.lane.b32.xlu0 %v1210, 95
      %v1403 = vpop.permute.xlu0 %1402
      %1404 = vrot.lane.b32.xlu0 %v1211, 95
      %v1405 = vpop.permute.xlu0 %1404
      %1406 = vrot.lane.b32.xlu0 %v1212, 95
      %v1407 = vpop.permute.xlu0 %1406
      %1408 = vrot.lane.b32.xlu0 %v1213, 95
      %v1409 = vpop.permute.xlu0 %1408
      %1410 = vrot.lane.b32.xlu0 %v1214, 95
      %v1411 = vpop.permute.xlu0 %1410
      %vm1412 = vcmask 777216
      %v1413 = vsel %vm1412, %v1395, %v1397
      %v1414 = vsel %vm1412, %v1397, %v1399
      %v1415 = vsel %vm1412, %v1399, %v1401
      %v1416 = vsel %vm1412, %v1401, %v1403
      %v1417 = vsel %vm1412, %v1403, %v1405
      %v1418 = vsel %vm1412, %v1405, %v1407
      %v1419 = vsel %vm1412, %v1407, %v1409
      %v1420 = vsel %vm1412, %v1409, %v1411
      %v1439 = vunpack.c.l.b16 %v998
      %v1440 = vunpack.c.h.b16 %v998
      %v1441 = vunpack.c.l.b16 %v999
      %v1442 = vunpack.c.h.b16 %v999
      %v1443 = vunpack.c.l.b16 %v1000
      %v1444 = vunpack.c.h.b16 %v1000
      %v1445 = vunpack.c.l.b16 %v1001
      %v1446 = vunpack.c.h.b16 %v1001
      %v1447 = vunpack.c.l.b16 %v1002
      %v1448 = vunpack.c.l.b16 %v1003
      %v1449 = vunpack.c.h.b16 %v1003
      %v1450 = vunpack.c.l.b16 %v1004
      %v1451 = vunpack.c.h.b16 %v1004
      %v1452 = vunpack.c.l.b16 %v1005
      %v1453 = vunpack.c.h.b16 %v1005
      %v1454 = vunpack.c.l.b16 %v1006
      %v1455 = vunpack.c.h.b16 %v1006
      %v1456 = vunpack.c.l.b16 %v1007
      %v1457 = vpack.c.b16 %v1448, %v1439
      %v1458 = vpack.c.b16 %v1449, %v1440
      %v1459 = vpack.c.b16 %v1450, %v1441
      %v1460 = vpack.c.b16 %v1451, %v1442
      %v1461 = vpack.c.b16 %v1452, %v1443
      %v1462 = vpack.c.b16 %v1453, %v1444
      %v1463 = vpack.c.b16 %v1454, %v1445
      %v1464 = vpack.c.b16 %v1455, %v1446
      %v1465 = vpack.c.b16 %v1456, %v1447
      %1466 = vrot.lane.b32.xlu0 %v1457, 94
      %v1467 = vpop.permute.xlu0 %1466
      %1468 = vrot.lane.b32.xlu0 %v1458, 94
      %v1469 = vpop.permute.xlu0 %1468
      %1470 = vrot.lane.b32.xlu0 %v1459, 94
      %v1471 = vpop.permute.xlu0 %1470
      %1472 = vrot.lane.b32.xlu0 %v1460, 94
      %v1473 = vpop.permute.xlu0 %1472
      %1474 = vrot.lane.b32.xlu0 %v1461, 94
      %v1475 = vpop.permute.xlu0 %1474
      %1476 = vrot.lane.b32.xlu0 %v1462, 94
      %v1477 = vpop.permute.xlu0 %1476
      %1478 = vrot.lane.b32.xlu0 %v1463, 94
      %v1479 = vpop.permute.xlu0 %1478
      %1480 = vrot.lane.b32.xlu0 %v1464, 94
      %v1481 = vpop.permute.xlu0 %1480
      %1482 = vrot.lane.b32.xlu0 %v1465, 94
      %v1483 = vpop.permute.xlu0 %1482
      %vm1484 = vcmask 769024
      %v1485 = vsel %vm1484, %v1467, %v1469
      %v1486 = vsel %vm1484, %v1469, %v1471
      %v1487 = vsel %vm1484, %v1471, %v1473
      %v1488 = vsel %vm1484, %v1473, %v1475
      %v1489 = vsel %vm1484, %v1475, %v1477
      %v1490 = vsel %vm1484, %v1477, %v1479
      %v1491 = vsel %vm1484, %v1479, %v1481
      %v1492 = vsel %vm1484, %v1481, %v1483
      %v1511 = vunpack.c.l.b16 %v1063
      %v1512 = vunpack.c.h.b16 %v1063
      %v1513 = vunpack.c.l.b16 %v1064
      %v1514 = vunpack.c.h.b16 %v1064
      %v1515 = vunpack.c.l.b16 %v1065
      %v1516 = vunpack.c.h.b16 %v1065
      %v1517 = vunpack.c.l.b16 %v1066
      %v1518 = vunpack.c.h.b16 %v1066
      %v1519 = vunpack.c.l.b16 %v1067
      %v1520 = vunpack.c.l.b16 %v1068
      %v1521 = vunpack.c.h.b16 %v1068
      %v1522 = vunpack.c.l.b16 %v1069
      %v1523 = vunpack.c.h.b16 %v1069
      %v1524 = vunpack.c.l.b16 %v1070
      %v1525 = vunpack.c.h.b16 %v1070
      %v1526 = vunpack.c.l.b16 %v1071
      %v1527 = vunpack.c.h.b16 %v1071
      %v1528 = vunpack.c.l.b16 %v1072
      %v1529 = vpack.c.b16 %v1520, %v1511
      %v1530 = vpack.c.b16 %v1521, %v1512
      %v1531 = vpack.c.b16 %v1522, %v1513
      %v1532 = vpack.c.b16 %v1523, %v1514
      %v1533 = vpack.c.b16 %v1524, %v1515
      %v1534 = vpack.c.b16 %v1525, %v1516
      %v1535 = vpack.c.b16 %v1526, %v1517
      %v1536 = vpack.c.b16 %v1527, %v1518
      %v1537 = vpack.c.b16 %v1528, %v1519
      %1538 = vrot.lane.b32.xlu0 %v1529, 64
      %v1539 = vpop.permute.xlu0 %1538
      %1540 = vrot.lane.b32.xlu0 %v1530, 64
      %v1541 = vpop.permute.xlu0 %1540
      %1542 = vrot.lane.b32.xlu0 %v1531, 64
      %v1543 = vpop.permute.xlu0 %1542
      %1544 = vrot.lane.b32.xlu0 %v1532, 64
      %v1545 = vpop.permute.xlu0 %1544
      %1546 = vrot.lane.b32.xlu0 %v1533, 64
      %v1547 = vpop.permute.xlu0 %1546
      %1548 = vrot.lane.b32.xlu0 %v1534, 64
      %v1549 = vpop.permute.xlu0 %1548
      %1550 = vrot.lane.b32.xlu0 %v1535, 64
      %v1551 = vpop.permute.xlu0 %1550
      %1552 = vrot.lane.b32.xlu0 %v1536, 64
      %v1553 = vpop.permute.xlu0 %1552
      %1554 = vrot.lane.b32.xlu0 %v1537, 64
      %v1555 = vpop.permute.xlu0 %1554
      %v1556 = vsel %vm1020, %v1539, %v1541
      %v1557 = vsel %vm1020, %v1541, %v1543
      %v1558 = vsel %vm1020, %v1543, %v1545
      %v1559 = vsel %vm1020, %v1545, %v1547
      %v1560 = vsel %vm1020, %v1547, %v1549
      %v1561 = vsel %vm1020, %v1549, %v1551
      %v1562 = vsel %vm1020, %v1551, %v1553
      %v1563 = vsel %vm1020, %v1553, %v1555
      %1572 = vrot.lane.b32.xlu0 %v1206, 63
      %v1573 = vpop.permute.xlu0 %1572
      %1574 = vrot.lane.b32.xlu0 %v1207, 63
      %v1575 = vpop.permute.xlu0 %1574
      %1576 = vrot.lane.b32.xlu0 %v1208, 63
      %v1577 = vpop.permute.xlu0 %1576
      %1578 = vrot.lane.b32.xlu0 %v1209, 63
      %v1579 = vpop.permute.xlu0 %1578
      %1580 = vrot.lane.b32.xlu0 %v1210, 63
      %v1581 = vpop.permute.xlu0 %1580
      %1582 = vrot.lane.b32.xlu0 %v1211, 63
      %v1583 = vpop.permute.xlu0 %1582
      %1584 = vrot.lane.b32.xlu0 %v1212, 63
      %v1585 = vpop.permute.xlu0 %1584
      %1586 = vrot.lane.b32.xlu0 %v1213, 63
      %v1587 = vpop.permute.xlu0 %1586
      %1588 = vrot.lane.b32.xlu0 %v1214, 63
      %v1589 = vpop.permute.xlu0 %1588
      %vm1590 = vcmask 515072
      %v1591 = vsel %vm1590, %v1573, %v1575
      %v1592 = vsel %vm1590, %v1575, %v1577
      %v1593 = vsel %vm1590, %v1577, %v1579
      %v1594 = vsel %vm1590, %v1579, %v1581
      %v1595 = vsel %vm1590, %v1581, %v1583
      %v1596 = vsel %vm1590, %v1583, %v1585
      %v1597 = vsel %vm1590, %v1585, %v1587
      %v1598 = vsel %vm1590, %v1587, %v1589
      %v1617 = vunpack.c.l.b16 %v1128
      %v1618 = vunpack.c.h.b16 %v1128
      %v1619 = vunpack.c.l.b16 %v1129
      %v1620 = vunpack.c.h.b16 %v1129
      %v1621 = vunpack.c.l.b16 %v1130
      %v1622 = vunpack.c.h.b16 %v1130
      %v1623 = vunpack.c.l.b16 %v1131
      %v1624 = vunpack.c.h.b16 %v1131
      %v1625 = vunpack.c.l.b16 %v1132
      %v1626 = vunpack.c.l.b16 %v1133
      %v1627 = vunpack.c.h.b16 %v1133
      %v1628 = vunpack.c.l.b16 %v1134
      %v1629 = vunpack.c.h.b16 %v1134
      %v1630 = vunpack.c.l.b16 %v1135
      %v1631 = vunpack.c.h.b16 %v1135
      %v1632 = vunpack.c.l.b16 %v1136
      %v1633 = vunpack.c.h.b16 %v1136
      %v1634 = vunpack.c.l.b16 %v1137
      %v1635 = vpack.c.b16 %v1626, %v1617
      %v1636 = vpack.c.b16 %v1627, %v1618
      %v1637 = vpack.c.b16 %v1628, %v1619
      %v1638 = vpack.c.b16 %v1629, %v1620
      %v1639 = vpack.c.b16 %v1630, %v1621
      %v1640 = vpack.c.b16 %v1631, %v1622
      %v1641 = vpack.c.b16 %v1632, %v1623
      %v1642 = vpack.c.b16 %v1633, %v1624
      %v1643 = vpack.c.b16 %v1634, %v1625
      %1644 = vrot.lane.b32.xlu0 %v1635, 62
      %v1645 = vpop.permute.xlu0 %1644
      %1646 = vrot.lane.b32.xlu0 %v1636, 62
      %v1647 = vpop.permute.xlu0 %1646
      %1648 = vrot.lane.b32.xlu0 %v1637, 62
      %v1649 = vpop.permute.xlu0 %1648
      %1650 = vrot.lane.b32.xlu0 %v1638, 62
      %v1651 = vpop.permute.xlu0 %1650
      %1652 = vrot.lane.b32.xlu0 %v1639, 62
      %v1653 = vpop.permute.xlu0 %1652
      %1654 = vrot.lane.b32.xlu0 %v1640, 62
      %v1655 = vpop.permute.xlu0 %1654
      %1656 = vrot.lane.b32.xlu0 %v1641, 62
      %v1657 = vpop.permute.xlu0 %1656
      %1658 = vrot.lane.b32.xlu0 %v1642, 62
      %v1659 = vpop.permute.xlu0 %1658
      %1660 = vrot.lane.b32.xlu0 %v1643, 62
      %v1661 = vpop.permute.xlu0 %1660
      %vm1662 = vcmask 506880
      %v1663 = vsel %vm1662, %v1645, %v1647
      %v1664 = vsel %vm1662, %v1647, %v1649
      %v1665 = vsel %vm1662, %v1649, %v1651
      %v1666 = vsel %vm1662, %v1651, %v1653
      %v1667 = vsel %vm1662, %v1653, %v1655
      %v1668 = vsel %vm1662, %v1655, %v1657
      %v1669 = vsel %vm1662, %v1657, %v1659
      %v1670 = vsel %vm1662, %v1659, %v1661
      %v1679 = vld [vmem:[%s1] sm:$0xff]
      %v1680 = vld [vmem:[%s1 + $0x8] sm:$0xff]
      %v1683 = vunpack.c.l.b16 %v1679
      %v1684 = vunpack.c.h.b16 %v1679
      %v1685 = vunpack.c.l.b16 %v1680
      %v1686 = vunpack.c.h.b16 %v1680
      %v1687 = vpack.c.b16 %v1685, %v1683
      %v1688 = vpack.c.b16 %v1686, %v1684
      %vm1690 = vcmask 130048
      %v1692 = vsel %vm1690, %v1688, 0
      %1694 = vmatpush.bf16.msra.mxu0 %v1591
      %1695 = vmatpush.bf16.msra.mxu0 %v1556
      %1696 = vmatpush.bf16.msra.mxu0 %v1485
      %1697 = vmatpush.bf16.msra.mxu0 %v1413
      %1698 = vmatpush.bf16.msra.mxu0 %v1378
      %1699 = vmatpush.bf16.msra.mxu0 %v1306
      %1700 = vmatpush.bf16.msra.mxu0 %v1234
      %1701 = vmatpush.bf16.msra.mxu0 %v1162
      %1702 = vmatmul.bf16.gmra.mxu0 %v1687
      %v1703 = vpop.f32.mrf.mxu0
      %v1704 = vadd.f32 0.0, %v1703
      %v1705 = vpop.f32.mrf.mxu0
      %v1706 = vadd.f32 0.0, %v1705
      %1707 = vdwg.mxu0
      %1708 = vmatpush.bf16.msra.mxu0 0
      %1709 = vmatpush.bf16.msra.mxu0 0
      %1710 = vmatpush.bf16.msra.mxu0 0
      %1711 = vmatpush.bf16.msra.mxu0 0
      %1712 = vmatpush.bf16.msra.mxu0 0
      %1713 = vmatpush.bf16.msra.mxu0 0
      %1714 = vmatpush.bf16.msra.mxu0 0
      %1715 = vmatpush.bf16.msra.mxu0 %v1663
      %1716 = vmatmul.bf16.gmra.mxu0 %v1692
      %v1717 = vpop.f32.mrf.mxu0
      %v1718 = vadd.f32 %v1704, %v1717
      %v1719 = vpop.f32.mrf.mxu0
      %v1720 = vadd.f32 %v1706, %v1719
      %1721 = vdwg.mxu0
      %1722 = vmatpush.bf16.msra.mxu0 %v1592
      %1723 = vmatpush.bf16.msra.mxu0 %v1557
      %1724 = vmatpush.bf16.msra.mxu0 %v1486
      %1725 = vmatpush.bf16.msra.mxu0 %v1414
      %1726 = vmatpush.bf16.msra.mxu0 %v1379
      %1727 = vmatpush.bf16.msra.mxu0 %v1307
      %1728 = vmatpush.bf16.msra.mxu0 %v1235
      %1729 = vmatpush.bf16.msra.mxu0 %v1163
      %1730 = vmatmul.bf16.gmra.mxu0 %v1687
      %v1731 = vpop.f32.mrf.mxu0
      %v1732 = vadd.f32 0.0, %v1731
      %v1733 = vpop.f32.mrf.mxu0
      %v1734 = vadd.f32 0.0, %v1733
      %1735 = vdwg.mxu0
      %1736 = vmatpush.bf16.msra.mxu0 0
      %1737 = vmatpush.bf16.msra.mxu0 0
      %1738 = vmatpush.bf16.msra.mxu0 0
      %1739 = vmatpush.bf16.msra.mxu0 0
      %1740 = vmatpush.bf16.msra.mxu0 0
      %1741 = vmatpush.bf16.msra.mxu0 0
      %1742 = vmatpush.bf16.msra.mxu0 0
      %1743 = vmatpush.bf16.msra.mxu0 %v1664
      %1744 = vmatmul.bf16.gmra.mxu0 %v1692
      %v1745 = vpop.f32.mrf.mxu0
      %v1746 = vadd.f32 %v1732, %v1745
      %v1747 = vpop.f32.mrf.mxu0
      %v1748 = vadd.f32 %v1734, %v1747
      %1749 = vdwg.mxu0
      %1750 = vmatpush.bf16.msra.mxu0 %v1593
      %1751 = vmatpush.bf16.msra.mxu0 %v1558
      %1752 = vmatpush.bf16.msra.mxu0 %v1487
      %1753 = vmatpush.bf16.msra.mxu0 %v1415
      %1754 = vmatpush.bf16.msra.mxu0 %v1380
      %1755 = vmatpush.bf16.msra.mxu0 %v1308
      %1756 = vmatpush.bf16.msra.mxu0 %v1236
      %1757 = vmatpush.bf16.msra.mxu0 %v1164
      %1758 = vmatmul.bf16.gmra.mxu0 %v1687
      %v1759 = vpop.f32.mrf.mxu0
      %v1760 = vadd.f32 0.0, %v1759
      %v1761 = vpop.f32.mrf.mxu0
      %v1762 = vadd.f32 0.0, %v1761
      %1763 = vdwg.mxu0
      %1764 = vmatpush.bf16.msra.mxu0 0
      %1765 = vmatpush.bf16.msra.mxu0 0
      %1766 = vmatpush.bf16.msra.mxu0 0
      %1767 = vmatpush.bf16.msra.mxu0 0
      %1768 = vmatpush.bf16.msra.mxu0 0
      %1769 = vmatpush.bf16.msra.mxu0 0
      %1770 = vmatpush.bf16.msra.mxu0 0
      %1771 = vmatpush.bf16.msra.mxu0 %v1665
      %1772 = vmatmul.bf16.gmra.mxu0 %v1692
      %v1773 = vpop.f32.mrf.mxu0
      %v1774 = vadd.f32 %v1760, %v1773
      %v1775 = vpop.f32.mrf.mxu0
      %v1776 = vadd.f32 %v1762, %v1775
      %1777 = vdwg.mxu0
      %1778 = vmatpush.bf16.msra.mxu0 %v1594
      %1779 = vmatpush.bf16.msra.mxu0 %v1559
      %1780 = vmatpush.bf16.msra.mxu0 %v1488
      %1781 = vmatpush.bf16.msra.mxu0 %v1416
      %1782 = vmatpush.bf16.msra.mxu0 %v1381
      %1783 = vmatpush.bf16.msra.mxu0 %v1309
      %1784 = vmatpush.bf16.msra.mxu0 %v1237
      %1785 = vmatpush.bf16.msra.mxu0 %v1165
      %1786 = vmatmul.bf16.gmra.mxu0 %v1687
      %v1787 = vpop.f32.mrf.mxu0
      %v1788 = vadd.f32 0.0, %v1787
      %v1789 = vpop.f32.mrf.mxu0
      %v1790 = vadd.f32 0.0, %v1789
      %1791 = vdwg.mxu0
      %1792 = vmatpush.bf16.msra.mxu0 0
      %1793 = vmatpush.bf16.msra.mxu0 0
      %1794 = vmatpush.bf16.msra.mxu0 0
      %1795 = vmatpush.bf16.msra.mxu0 0
      %1796 = vmatpush.bf16.msra.mxu0 0
      %1797 = vmatpush.bf16.msra.mxu0 0
      %1798 = vmatpush.bf16.msra.mxu0 0
      %1799 = vmatpush.bf16.msra.mxu0 %v1666
      %1800 = vmatmul.bf16.gmra.mxu0 %v1692
      %v1801 = vpop.f32.mrf.mxu0
      %v1802 = vadd.f32 %v1788, %v1801
      %v1803 = vpop.f32.mrf.mxu0
      %v1804 = vadd.f32 %v1790, %v1803
      %1805 = vdwg.mxu0
      %1806 = vmatpush.bf16.msra.mxu0 %v1595
      %1807 = vmatpush.bf16.msra.mxu0 %v1560
      %1808 = vmatpush.bf16.msra.mxu0 %v1489
      %1809 = vmatpush.bf16.msra.mxu0 %v1417
      %1810 = vmatpush.bf16.msra.mxu0 %v1382
      %1811 = vmatpush.bf16.msra.mxu0 %v1310
      %1812 = vmatpush.bf16.msra.mxu0 %v1238
      %1813 = vmatpush.bf16.msra.mxu0 %v1166
      %1814 = vmatmul.bf16.gmra.mxu0 %v1687
      %v1815 = vpop.f32.mrf.mxu0
      %v1816 = vadd.f32 0.0, %v1815
      %v1817 = vpop.f32.mrf.mxu0
      %v1818 = vadd.f32 0.0, %v1817
      %1819 = vdwg.mxu0
      %1820 = vmatpush.bf16.msra.mxu0 0
      %1821 = vmatpush.bf16.msra.mxu0 0
      %1822 = vmatpush.bf16.msra.mxu0 0
      %1823 = vmatpush.bf16.msra.mxu0 0
      %1824 = vmatpush.bf16.msra.mxu0 0
      %1825 = vmatpush.bf16.msra.mxu0 0
      %1826 = vmatpush.bf16.msra.mxu0 0
      %1827 = vmatpush.bf16.msra.mxu0 %v1667
      %1828 = vmatmul.bf16.gmra.mxu0 %v1692
      %v1829 = vpop.f32.mrf.mxu0
      %v1830 = vadd.f32 %v1816, %v1829
      %v1831 = vpop.f32.mrf.mxu0
      %v1832 = vadd.f32 %v1818, %v1831
      %1833 = vdwg.mxu0
      %1834 = vmatpush.bf16.msra.mxu0 %v1596
      %1835 = vmatpush.bf16.msra.mxu0 %v1561
      %1836 = vmatpush.bf16.msra.mxu0 %v1490
      %1837 = vmatpush.bf16.msra.mxu0 %v1418
      %1838 = vmatpush.bf16.msra.mxu0 %v1383
      %1839 = vmatpush.bf16.msra.mxu0 %v1311
      %1840 = vmatpush.bf16.msra.mxu0 %v1239
      %1841 = vmatpush.bf16.msra.mxu0 %v1167
      %1842 = vmatmul.bf16.gmra.mxu0 %v1687
      %v1843 = vpop.f32.mrf.mxu0
      %v1844 = vadd.f32 0.0, %v1843
      %v1845 = vpop.f32.mrf.mxu0
      %v1846 = vadd.f32 0.0, %v1845
      %1847 = vdwg.mxu0
      %1848 = vmatpush.bf16.msra.mxu0 0
      %1849 = vmatpush.bf16.msra.mxu0 0
      %1850 = vmatpush.bf16.msra.mxu0 0
      %1851 = vmatpush.bf16.msra.mxu0 0
      %1852 = vmatpush.bf16.msra.mxu0 0
      %1853 = vmatpush.bf16.msra.mxu0 0
      %1854 = vmatpush.bf16.msra.mxu0 0
      %1855 = vmatpush.bf16.msra.mxu0 %v1668
      %1856 = vmatmul.bf16.gmra.mxu0 %v1692
      %v1857 = vpop.f32.mrf.mxu0
      %v1858 = vadd.f32 %v1844, %v1857
      %v1859 = vpop.f32.mrf.mxu0
      %v1860 = vadd.f32 %v1846, %v1859
      %1861 = vdwg.mxu0
      %1862 = vmatpush.bf16.msra.mxu0 %v1597
      %1863 = vmatpush.bf16.msra.mxu0 %v1562
      %1864 = vmatpush.bf16.msra.mxu0 %v1491
      %1865 = vmatpush.bf16.msra.mxu0 %v1419
      %1866 = vmatpush.bf16.msra.mxu0 %v1384
      %1867 = vmatpush.bf16.msra.mxu0 %v1312
      %1868 = vmatpush.bf16.msra.mxu0 %v1240
      %1869 = vmatpush.bf16.msra.mxu0 %v1168
      %1870 = vmatmul.bf16.gmra.mxu0 %v1687
      %v1871 = vpop.f32.mrf.mxu0
      %v1872 = vadd.f32 0.0, %v1871
      %v1873 = vpop.f32.mrf.mxu0
      %v1874 = vadd.f32 0.0, %v1873
      %1875 = vdwg.mxu0
      %1876 = vmatpush.bf16.msra.mxu0 0
      %1877 = vmatpush.bf16.msra.mxu0 0
      %1878 = vmatpush.bf16.msra.mxu0 0
      %1879 = vmatpush.bf16.msra.mxu0 0
      %1880 = vmatpush.bf16.msra.mxu0 0
      %1881 = vmatpush.bf16.msra.mxu0 0
      %1882 = vmatpush.bf16.msra.mxu0 0
      %1883 = vmatpush.bf16.msra.mxu0 %v1669
      %1884 = vmatmul.bf16.gmra.mxu0 %v1692
      %v1885 = vpop.f32.mrf.mxu0
      %v1886 = vadd.f32 %v1872, %v1885
      %v1887 = vpop.f32.mrf.mxu0
      %v1888 = vadd.f32 %v1874, %v1887
      %1889 = vdwg.mxu0
      %1890 = vmatpush.bf16.msra.mxu0 %v1598
      %1891 = vmatpush.bf16.msra.mxu0 %v1563
      %1892 = vmatpush.bf16.msra.mxu0 %v1492
      %1893 = vmatpush.bf16.msra.mxu0 %v1420
      %1894 = vmatpush.bf16.msra.mxu0 %v1385
      %1895 = vmatpush.bf16.msra.mxu0 %v1313
      %1896 = vmatpush.bf16.msra.mxu0 %v1241
      %1897 = vmatpush.bf16.msra.mxu0 %v1169
      %1898 = vmatmul.bf16.gmra.mxu0 %v1687
      %v1899 = vpop.f32.mrf.mxu0
      %v1900 = vadd.f32 0.0, %v1899
      %v1901 = vpop.f32.mrf.mxu0
      %v1902 = vadd.f32 0.0, %v1901
      %1903 = vdwg.mxu0
      %1904 = vmatpush.bf16.msra.mxu0 0
      %1905 = vmatpush.bf16.msra.mxu0 0
      %1906 = vmatpush.bf16.msra.mxu0 0
      %1907 = vmatpush.bf16.msra.mxu0 0
      %1908 = vmatpush.bf16.msra.mxu0 0
      %1909 = vmatpush.bf16.msra.mxu0 0
      %1910 = vmatpush.bf16.msra.mxu0 0
      %1911 = vmatpush.bf16.msra.mxu0 %v1670
      %1912 = vmatmul.bf16.gmra.mxu0 %v1692
      %v1913 = vpop.f32.mrf.mxu0
      %v1914 = vadd.f32 %v1900, %v1913
      %v1915 = vpop.f32.mrf.mxu0
      %v1916 = vadd.f32 %v1902, %v1915
      %1917 = vdwg.mxu0
      %v1918 = vld [vmem:[%s2] sm:$0xff]
      %v1919 = vld [vmem:[%s2 + $0x8] sm:$0xff]
      %1921 = vset.pattern.permute.xlu0 0
      %1922 = vperm.xlu0 %1921, %v1918
      %v1923 = vpop.permute.xlu0 %1922
      %1926 = vset.pattern.permute.xlu0 0
      %1927 = vperm.xlu0 %1926, %v1919
      %v1928 = vpop.permute.xlu0 %1927
      %v1930 = vmul.f32 %v1718, %v1923
      %v1931 = vmul.f32 %v1746, %v1923
      %v1932 = vmul.f32 %v1774, %v1923
      %v1933 = vmul.f32 %v1802, %v1923
      %v1934 = vmul.f32 %v1830, %v1923
      %v1935 = vmul.f32 %v1858, %v1923
      %v1936 = vmul.f32 %v1886, %v1923
      %v1937 = vmul.f32 %v1914, %v1923
      %v1938 = vmul.f32 %v1720, %v1928
      %v1939 = vmul.f32 %v1748, %v1928
      %v1940 = vmul.f32 %v1776, %v1928
      %v1941 = vmul.f32 %v1804, %v1928
      %v1942 = vmul.f32 %v1832, %v1928
      %v1943 = vmul.f32 %v1860, %v1928
      %v1944 = vmul.f32 %v1888, %v1928
      %v1945 = vmul.f32 %v1916, %v1928
      %v1946 = vld [vmem:[%s3] sm:$0xff]
      %v1947 = vld [vmem:[%s3 + $0x8] sm:$0xff]
      %1949 = vset.pattern.permute.xlu0 0
      %1950 = vperm.xlu0 %1949, %v1946
      %v1951 = vpop.permute.xlu0 %1950
      %1954 = vset.pattern.permute.xlu0 0
      %1955 = vperm.xlu0 %1954, %v1947
      %v1956 = vpop.permute.xlu0 %1955
      %v1958 = vadd.f32 %v1930, %v1951
      %v1959 = vadd.f32 %v1931, %v1951
      %v1960 = vadd.f32 %v1932, %v1951
      %v1961 = vadd.f32 %v1933, %v1951
      %v1962 = vadd.f32 %v1934, %v1951
      %v1963 = vadd.f32 %v1935, %v1951
      %v1964 = vadd.f32 %v1936, %v1951
      %v1965 = vadd.f32 %v1937, %v1951
      %v1966 = vadd.f32 %v1938, %v1956
      %v1967 = vadd.f32 %v1939, %v1956
      %v1968 = vadd.f32 %v1940, %v1956
      %v1969 = vadd.f32 %v1941, %v1956
      %v1970 = vadd.f32 %v1942, %v1956
      %v1971 = vadd.f32 %v1943, %v1956
      %v1972 = vadd.f32 %v1944, %v1956
      %v1973 = vadd.f32 %v1945, %v1956
      %v1974 = vmax.f32 %v1958, 0.0
      %v1975 = vmax.f32 %v1959, 0.0
      %v1976 = vmax.f32 %v1960, 0.0
      %v1977 = vmax.f32 %v1961, 0.0
      %v1978 = vmax.f32 %v1962, 0.0
      %v1979 = vmax.f32 %v1963, 0.0
      %v1980 = vmax.f32 %v1964, 0.0
      %v1981 = vmax.f32 %v1965, 0.0
      %v1982 = vmax.f32 %v1966, 0.0
      %v1983 = vmax.f32 %v1967, 0.0
      %v1984 = vmax.f32 %v1968, 0.0
      %v1985 = vmax.f32 %v1969, 0.0
      %v1986 = vmax.f32 %v1970, 0.0
      %v1987 = vmax.f32 %v1971, 0.0
      %v1988 = vmax.f32 %v1972, 0.0
      %v1989 = vmax.f32 %v1973, 0.0
      %v1990 = vpack.c.bf16 %v1975, %v1974
      %v1991 = vpack.c.bf16 %v1977, %v1976
      %v1992 = vpack.c.bf16 %v1979, %v1978
      %v1993 = vpack.c.bf16 %v1981, %v1980
      %v1994 = vpack.c.bf16 %v1983, %v1982
      %v1995 = vpack.c.bf16 %v1985, %v1984
      %v1996 = vpack.c.bf16 %v1987, %v1986
      %v1997 = vpack.c.bf16 %v1989, %v1988
      %2006 = vrot.lane.b32.xlu0 %v1990, 66
      %v2007 = vpop.permute.xlu0 %2006
      %2008 = vrot.lane.b32.xlu0 %v1991, 66
      %v2009 = vpop.permute.xlu0 %2008
      %2010 = vrot.lane.b32.xlu0 %v1992, 66
      %v2011 = vpop.permute.xlu0 %2010
      %2012 = vrot.lane.b32.xlu0 %v1993, 66
      %v2013 = vpop.permute.xlu0 %2012
      %2014 = vrot.lane.b32.xlu0 %v1994, 66
      %v2015 = vpop.permute.xlu0 %2014
      %2016 = vrot.lane.b32.xlu0 %v1995, 66
      %v2017 = vpop.permute.xlu0 %2016
      %2018 = vrot.lane.b32.xlu0 %v1996, 66
      %v2019 = vpop.permute.xlu0 %2018
      %2020 = vrot.lane.b32.xlu0 %v1997, 66
      %v2021 = vpop.permute.xlu0 %2020
      %v2022 = vrot.slane %v2007, 4
      %v2023 = vrot.slane %v2009, 4
      %v2024 = vrot.slane %v2011, 4
      %v2025 = vrot.slane %v2013, 4
      %v2026 = vrot.slane %v2015, 4
      %v2027 = vrot.slane %v2017, 4
      %v2028 = vrot.slane %v2019, 4
      %v2029 = vrot.slane %v2021, 4
      %v2030 = vsel %vm1085, %v2022, %v2007
      %v2031 = vsel %vm587, %v2022, %v2023
      %v2032 = vsel %vm1085, %v2031, %v2009
      %v2033 = vsel %vm587, %v2023, %v2024
      %v2034 = vsel %vm1085, %v2033, %v2011
      %v2035 = vsel %vm587, %v2024, %v2025
      %v2036 = vsel %vm1085, %v2035, %v2013
      %v2037 = vsel %vm1085, %v2026, %v2015
      %v2038 = vsel %vm587, %v2026, %v2027
      %v2039 = vsel %vm1085, %v2038, %v2017
      %v2040 = vsel %vm587, %v2027, %v2028
      %v2041 = vsel %vm1085, %v2040, %v2019
      %v2042 = vsel %vm587, %v2028, %v2029
      %v2043 = vsel %vm1085, %v2042, %v2021
      %vm2054 = vmor %vm527, %vm507
      %2055 = vst.msk [vmem:[#allocation3] sm:$0xff] %vm2054, %v2030
      %2056 = vst [vmem:[#allocation3 + $0x8] sm:$0xff] %v2032
      %2057 = vst [vmem:[#allocation3 + $0x10] sm:$0xff] %v2034
      %2058 = vst [vmem:[#allocation3 + $0x18] sm:$0xff] %v2036
      %2059 = vst.msk [vmem:[#allocation3 + $0x20] sm:$0xf] %vm498, %v2025
      %2060 = vst.msk [vmem:[#allocation3 + $0x28] sm:$0xff] %vm2054, %v2037
      %2061 = vst [vmem:[#allocation3 + $0x30] sm:$0xff] %v2039
      %2062 = vst [vmem:[#allocation3 + $0x38] sm:$0xff] %v2041
      %2063 = vst [vmem:[#allocation3 + $0x40] sm:$0xff] %v2043
      %2064 = vst.msk [vmem:[#allocation3 + $0x48] sm:$0xf] %vm498, %v2029
      %v2065 = vld [vmem:[#allocation3] sm:$0xff]
      %v2066 = vld [vmem:[#allocation3 + $0x8] sm:$0xff]
      %v2067 = vld [vmem:[#allocation3 + $0x10] sm:$0xff]
      %v2068 = vld [vmem:[#allocation3 + $0x18] sm:$0xff]
      %v2069 = vld [vmem:[#allocation3 + $0x28] sm:$0xff]
      %v2070 = vld [vmem:[#allocation3 + $0x30] sm:$0xff]
      %v2071 = vld [vmem:[#allocation3 + $0x38] sm:$0xff]
      %v2072 = vld [vmem:[#allocation3 + $0x40] sm:$0xff]
      %vm2073 = vcmp.ge.s32.totalorder %v723, 2
      %vm2074 = vcmp.ge.s32.totalorder %v724, 2
      %vm2075 = vcmp.ge.s32.totalorder %v725, 2
      %vm2076 = vcmp.ge.s32.totalorder %v726, 2
      %vm2077 = vcmp.ge.s32.totalorder %v727, 2
      %vm2078 = vcmp.ge.s32.totalorder %v728, 2
      %vm2079 = vcmp.ge.s32.totalorder %v729, 2
      %vm2080 = vcmp.ge.s32.totalorder %v730, 2
      %v2081 = vsel %vm2073, 1, 0
      %v2082 = vsel %vm2074, 1, 0
      %v2083 = vsel %vm2075, 1, 0
      %v2084 = vsel %vm2076, 1, 0
      %v2085 = vsel %vm2077, 1, 0
      %v2086 = vsel %vm2078, 1, 0
      %v2087 = vsel %vm2079, 1, 0
      %v2088 = vsel %vm2080, 1, 0
      %vm2089 = vcmp.eq.s32.totalorder %v2081, 1
      %vm2090 = vcmp.eq.s32.totalorder %v2082, 1
      %vm2091 = vcmp.eq.s32.totalorder %v2083, 1
      %vm2092 = vcmp.eq.s32.totalorder %v2084, 1
      %vm2093 = vcmp.eq.s32.totalorder %v2085, 1
      %vm2094 = vcmp.eq.s32.totalorder %v2086, 1
      %vm2095 = vcmp.eq.s32.totalorder %v2087, 1
      %vm2096 = vcmp.eq.s32.totalorder %v2088, 1
      %vm2097 = vmpackc.low %vm2090, %vm2089
      %vm2098 = vmpackc.low %vm2092, %vm2091
      %vm2099 = vmpackc.low %vm2094, %vm2093
      %vm2100 = vmpackc.low %vm2096, %vm2095
      %v2101 = vsel %vm2097, %v2065, 0
      %v2102 = vsel %vm2098, %v2066, 0
      %v2103 = vsel %vm2099, %v2067, 0
      %v2104 = vsel %vm2100, %v2068, 0
      %v2105 = vsel %vm2097, %v2069, 0
      %v2106 = vsel %vm2098, %v2070, 0
      %v2107 = vsel %vm2099, %v2071, 0
      %v2108 = vsel %vm2100, %v2072, 0
      %v2109 = vld [vmem:[#allocation3 + $0x20] sm:$0xf]
      %v2110 = vld [vmem:[#allocation3 + $0x48] sm:$0xf]
      %vm2111 = vcmp.lt.s32.totalorder %v723, 30
      %vm2112 = vcmp.lt.s32.totalorder %v724, 30
      %vm2113 = vcmp.lt.s32.totalorder %v725, 30
      %vm2114 = vcmp.lt.s32.totalorder %v726, 30
      %vm2115 = vcmp.lt.s32.totalorder %v727, 30
      %vm2116 = vcmp.lt.s32.totalorder %v728, 30
      %vm2117 = vcmp.lt.s32.totalorder %v729, 30
      %vm2118 = vcmp.lt.s32.totalorder %v730, 30
      %v2119 = vsel %vm2111, 1, 0
      %v2120 = vsel %vm2112, 1, 0
      %v2121 = vsel %vm2113, 1, 0
      %v2122 = vsel %vm2114, 1, 0
      %v2123 = vsel %vm2115, 1, 0
      %v2124 = vsel %vm2116, 1, 0
      %v2125 = vsel %vm2117, 1, 0
      %v2126 = vsel %vm2118, 1, 0
      %vm2127 = vcmp.eq.s32.totalorder %v2119, 1
      %vm2128 = vcmp.eq.s32.totalorder %v2120, 1
      %vm2129 = vcmp.eq.s32.totalorder %v2121, 1
      %vm2130 = vcmp.eq.s32.totalorder %v2122, 1
      %vm2131 = vcmp.eq.s32.totalorder %v2123, 1
      %vm2132 = vcmp.eq.s32.totalorder %v2124, 1
      %vm2133 = vcmp.eq.s32.totalorder %v2125, 1
      %vm2134 = vcmp.eq.s32.totalorder %v2126, 1
      %vm2135 = vmpackc.low %vm2128, %vm2127
      %vm2136 = vmpackc.low %vm2130, %vm2129
      %vm2137 = vmpackc.low %vm2132, %vm2131
      %vm2138 = vmpackc.low %vm2134, %vm2133
      %v2139 = vsel %vm2135, 65537, 0
      %v2140 = vsel %vm2136, 65537, 0
      %v2141 = vsel %vm2137, 65537, 0
      %v2142 = vsel %vm2138, 65537, 0
      %2143 = vrot.lane.b32.xlu0 %v2139, 4
      %v2144 = vpop.permute.xlu0 %2143
      %2145 = vrot.lane.b32.xlu0 %v2140, 4
      %v2146 = vpop.permute.xlu0 %2145
      %2147 = vrot.lane.b32.xlu0 %v2141, 4
      %v2148 = vpop.permute.xlu0 %2147
      %2149 = vrot.lane.b32.xlu0 %v2142, 4
      %v2150 = vpop.permute.xlu0 %2149
      %v2151 = vrot.slane %v2144, 4
      %v2152 = vrot.slane %v2146, 4
      %v2153 = vrot.slane %v2148, 4
      %v2154 = vrot.slane %v2150, 4
      %vm2155 = vcmask 31744
      %v2156 = vsel %vm2155, %v2151, %v2144
      %v2157 = vsel %vm587, %v2151, %v2152
      %v2158 = vsel %vm2155, %v2157, %v2146
      %v2159 = vsel %vm587, %v2152, %v2153
      %v2160 = vsel %vm2155, %v2159, %v2148
      %v2161 = vsel %vm587, %v2153, %v2154
      %v2162 = vsel %vm2155, %v2161, %v2150
      %v2163 = vunpack.c.l.b16 %v2156
      %v2164 = vunpack.c.h.b16 %v2156
      %v2165 = vunpack.c.l.b16 0
      %v2166 = vunpack.c.h.b16 0
      %vm2167 = vcmp.ne.s32.totalorder %v2163, %v2165
      %vm2168 = vcmp.ne.s32.totalorder %v2164, %v2166
      %vm2169 = vmpackc.low %vm2168, %vm2167
      %v2170 = vunpack.c.l.b16 %v2158
      %v2171 = vunpack.c.h.b16 %v2158
      %v2172 = vunpack.c.l.b16 0
      %v2173 = vunpack.c.h.b16 0
      %vm2174 = vcmp.ne.s32.totalorder %v2170, %v2172
      %vm2175 = vcmp.ne.s32.totalorder %v2171, %v2173
      %vm2176 = vmpackc.low %vm2175, %vm2174
      %v2177 = vunpack.c.l.b16 %v2160
      %v2178 = vunpack.c.h.b16 %v2160
      %v2179 = vunpack.c.l.b16 0
      %v2180 = vunpack.c.h.b16 0
      %vm2181 = vcmp.ne.s32.totalorder %v2177, %v2179
      %vm2182 = vcmp.ne.s32.totalorder %v2178, %v2180
      %vm2183 = vmpackc.low %vm2182, %vm2181
      %v2184 = vunpack.c.l.b16 %v2162
      %v2185 = vunpack.c.h.b16 %v2162
      %v2186 = vunpack.c.l.b16 0
      %v2187 = vunpack.c.h.b16 0
      %vm2188 = vcmp.ne.s32.totalorder %v2184, %v2186
      %vm2189 = vcmp.ne.s32.totalorder %v2185, %v2187
      %vm2190 = vmpackc.low %vm2189, %vm2188
      %v2191 = vunpack.c.l.b16 %v2154
      %v2192 = vunpack.c.h.b16 %v2154
      %v2193 = vunpack.c.l.b16 0
      %v2194 = vunpack.c.h.b16 0
      %vm2195 = vcmp.ne.s32.totalorder %v2191, %v2193
      %vm2196 = vcmp.ne.s32.totalorder %v2192, %v2194
      %vm2197 = vmpackc.low %vm2196, %vm2195
      %v2198 = vsel %vm2169, %v2065, 0
      %v2199 = vsel %vm2176, %v2066, 0
      %v2200 = vsel %vm2183, %v2067, 0
      %v2201 = vsel %vm2190, %v2068, 0
      %v2202 = vsel %vm2197, %v2109, 0
      %v2203 = vsel %vm2169, %v2069, 0
      %v2204 = vsel %vm2176, %v2070, 0
      %v2205 = vsel %vm2183, %v2071, 0
      %v2206 = vsel %vm2190, %v2072, 0
      %v2207 = vsel %vm2197, %v2110, 0
      %v2208 = vsel %vm2097, 65537, 0
      %v2209 = vsel %vm2098, 65537, 0
      %v2210 = vsel %vm2099, 65537, 0
      %v2211 = vsel %vm2100, 65537, 0
      %2212 = vrot.lane.b32.xlu0 %v2208, 64
      %v2213 = vpop.permute.xlu0 %2212
      %2214 = vrot.lane.b32.xlu0 %v2209, 64
      %v2215 = vpop.permute.xlu0 %2214
      %2216 = vrot.lane.b32.xlu0 %v2210, 64
      %v2217 = vpop.permute.xlu0 %2216
      %2218 = vrot.lane.b32.xlu0 %v2211, 64
      %v2219 = vpop.permute.xlu0 %2218
      %v2220 = vrot.slane %v2213, 4
      %v2221 = vrot.slane %v2215, 4
      %v2222 = vrot.slane %v2217, 4
      %v2223 = vrot.slane %v2219, 4
      %v2224 = vsel %vm1020, %v2220, %v2213
      %v2225 = vsel %vm587, %v2220, %v2221
      %v2226 = vsel %vm1020, %v2225, %v2215
      %v2227 = vsel %vm587, %v2221, %v2222
      %v2228 = vsel %vm1020, %v2227, %v2217
      %v2229 = vsel %vm587, %v2222, %v2223
      %v2230 = vsel %vm1020, %v2229, %v2219
      %v2231 = vunpack.c.l.b16 %v2224
      %v2232 = vunpack.c.h.b16 %v2224
      %v2233 = vunpack.c.l.b16 0
      %v2234 = vunpack.c.h.b16 0
      %vm2235 = vcmp.ne.s32.totalorder %v2231, %v2233
      %vm2236 = vcmp.ne.s32.totalorder %v2232, %v2234
      %vm2237 = vmpackc.low %vm2236, %vm2235
      %v2238 = vunpack.c.l.b16 %v2226
      %v2239 = vunpack.c.h.b16 %v2226
      %v2240 = vunpack.c.l.b16 0
      %v2241 = vunpack.c.h.b16 0
      %vm2242 = vcmp.ne.s32.totalorder %v2238, %v2240
      %vm2243 = vcmp.ne.s32.totalorder %v2239, %v2241
      %vm2244 = vmpackc.low %vm2243, %vm2242
      %v2245 = vunpack.c.l.b16 %v2228
      %v2246 = vunpack.c.h.b16 %v2228
      %v2247 = vunpack.c.l.b16 0
      %v2248 = vunpack.c.h.b16 0
      %vm2249 = vcmp.ne.s32.totalorder %v2245, %v2247
      %vm2250 = vcmp.ne.s32.totalorder %v2246, %v2248
      %vm2251 = vmpackc.low %vm2250, %vm2249
      %v2252 = vunpack.c.l.b16 %v2230
      %v2253 = vunpack.c.h.b16 %v2230
      %v2254 = vunpack.c.l.b16 0
      %v2255 = vunpack.c.h.b16 0
      %vm2256 = vcmp.ne.s32.totalorder %v2252, %v2254
      %vm2257 = vcmp.ne.s32.totalorder %v2253, %v2255
      %vm2258 = vmpackc.low %vm2257, %vm2256
      %v2259 = vunpack.c.l.b16 %v2223
      %v2260 = vunpack.c.h.b16 %v2223
      %v2261 = vunpack.c.l.b16 0
      %v2262 = vunpack.c.h.b16 0
      %vm2263 = vcmp.ne.s32.totalorder %v2259, %v2261
      %vm2264 = vcmp.ne.s32.totalorder %v2260, %v2262
      %vm2265 = vmpackc.low %vm2264, %vm2263
      %v2266 = vsel %vm2237, %v2065, 0
      %v2267 = vsel %vm2244, %v2066, 0
      %v2268 = vsel %vm2251, %v2067, 0
      %v2269 = vsel %vm2258, %v2068, 0
      %v2270 = vsel %vm2265, %v2109, 0
      %v2271 = vsel %vm2237, %v2069, 0
      %v2272 = vsel %vm2244, %v2070, 0
      %v2273 = vsel %vm2251, %v2071, 0
      %v2274 = vsel %vm2258, %v2072, 0
      %v2275 = vsel %vm2265, %v2110, 0
      %2276 = vrot.lane.b32.xlu0 %v2139, 68
      %v2277 = vpop.permute.xlu0 %2276
      %2278 = vrot.lane.b32.xlu0 %v2140, 68
      %v2279 = vpop.permute.xlu0 %2278
      %2280 = vrot.lane.b32.xlu0 %v2141, 68
      %v2281 = vpop.permute.xlu0 %2280
      %2282 = vrot.lane.b32.xlu0 %v2142, 68
      %v2283 = vpop.permute.xlu0 %2282
      %v2284 = vrot.slane %v2277, 4
      %v2285 = vrot.slane %v2279, 4
      %v2286 = vrot.slane %v2281, 4
      %v2287 = vrot.slane %v2283, 4
      %vm2288 = vcmask 556032
      %v2289 = vsel %vm2288, %v2284, %v2277
      %v2290 = vsel %vm587, %v2284, %v2285
      %v2291 = vsel %vm2288, %v2290, %v2279
      %v2292 = vsel %vm587, %v2285, %v2286
      %v2293 = vsel %vm2288, %v2292, %v2281
      %v2294 = vsel %vm587, %v2286, %v2287
      %v2295 = vsel %vm2288, %v2294, %v2283
      %v2296 = vunpack.c.l.b16 %v2289
      %v2297 = vunpack.c.h.b16 %v2289
      %v2298 = vunpack.c.l.b16 0
      %v2299 = vunpack.c.h.b16 0
      %vm2300 = vcmp.ne.s32.totalorder %v2296, %v2298
      %vm2301 = vcmp.ne.s32.totalorder %v2297, %v2299
      %vm2302 = vmpackc.low %vm2301, %vm2300
      %v2303 = vunpack.c.l.b16 %v2291
      %v2304 = vunpack.c.h.b16 %v2291
      %v2305 = vunpack.c.l.b16 0
      %v2306 = vunpack.c.h.b16 0
      %vm2307 = vcmp.ne.s32.totalorder %v2303, %v2305
      %vm2308 = vcmp.ne.s32.totalorder %v2304, %v2306
      %vm2309 = vmpackc.low %vm2308, %vm2307
      %v2310 = vunpack.c.l.b16 %v2293
      %v2311 = vunpack.c.h.b16 %v2293
      %v2312 = vunpack.c.l.b16 0
      %v2313 = vunpack.c.h.b16 0
      %vm2314 = vcmp.ne.s32.totalorder %v2310, %v2312
      %vm2315 = vcmp.ne.s32.totalorder %v2311, %v2313
      %vm2316 = vmpackc.low %vm2315, %vm2314
      %v2317 = vunpack.c.l.b16 %v2295
      %v2318 = vunpack.c.h.b16 %v2295
      %v2319 = vunpack.c.l.b16 0
      %v2320 = vunpack.c.h.b16 0
      %vm2321 = vcmp.ne.s32.totalorder %v2317, %v2319
      %vm2322 = vcmp.ne.s32.totalorder %v2318, %v2320
      %vm2323 = vmpackc.low %vm2322, %vm2321
      %v2324 = vunpack.c.l.b16 %v2287
      %v2325 = vunpack.c.h.b16 %v2287
      %v2326 = vunpack.c.l.b16 0
      %v2327 = vunpack.c.h.b16 0
      %vm2328 = vcmp.ne.s32.totalorder %v2324, %v2326
      %vm2329 = vcmp.ne.s32.totalorder %v2325, %v2327
      %vm2330 = vmpackc.low %vm2329, %vm2328
      %v2331 = vsel %vm2302, %v2065, 0
      %v2332 = vsel %vm2309, %v2066, 0
      %v2333 = vsel %vm2316, %v2067, 0
      %v2334 = vsel %vm2323, %v2068, 0
      %v2335 = vsel %vm2330, %v2109, 0
      %v2336 = vsel %vm2302, %v2069, 0
      %v2337 = vsel %vm2309, %v2070, 0
      %v2338 = vsel %vm2316, %v2071, 0
      %v2339 = vsel %vm2323, %v2072, 0
      %v2340 = vsel %vm2330, %v2110, 0
      %v2341 = vld [vmem:[#allocation3 + $0x4] sm:$0xff]
      %v2342 = vld [vmem:[#allocation3 + $0xc] sm:$0xff]
      %v2343 = vld [vmem:[#allocation3 + $0x14] sm:$0xff]
      %v2344 = vld [vmem:[#allocation3 + $0x1c] sm:$0xff]
      %v2345 = vld [vmem:[#allocation3 + $0x2c] sm:$0xff]
      %v2346 = vld [vmem:[#allocation3 + $0x34] sm:$0xff]
      %v2347 = vld [vmem:[#allocation3 + $0x3c] sm:$0xff]
      %v2348 = vld [vmem:[#allocation3 + $0x44] sm:$0xff]
      %v2349 = vsel %vm2097, %v2341, 0
      %v2350 = vsel %vm2098, %v2342, 0
      %v2351 = vsel %vm2099, %v2343, 0
      %v2352 = vsel %vm2100, %v2344, 0
      %v2353 = vsel %vm2097, %v2345, 0
      %v2354 = vsel %vm2098, %v2346, 0
      %v2355 = vsel %vm2099, %v2347, 0
      %v2356 = vsel %vm2100, %v2348, 0
      %v2357 = vld [vmem:[#allocation3 + $0x24] sm:$0xf]
      %v2358 = vld [vmem:[#allocation3 + $0x4c] sm:$0xf]
      %v2359 = vsel %vm2169, %v2341, 0
      %v2360 = vsel %vm2176, %v2342, 0
      %v2361 = vsel %vm2183, %v2343, 0
      %v2362 = vsel %vm2190, %v2344, 0
      %v2363 = vsel %vm2197, %v2357, 0
      %v2364 = vsel %vm2169, %v2345, 0
      %v2365 = vsel %vm2176, %v2346, 0
      %v2366 = vsel %vm2183, %v2347, 0
      %v2367 = vsel %vm2190, %v2348, 0
      %v2368 = vsel %vm2197, %v2358, 0
      %v2377 = vunpack.c.l.b16 %v2101
      %v2378 = vunpack.c.h.b16 %v2101
      %v2379 = vunpack.c.l.b16 %v2102
      %v2380 = vunpack.c.h.b16 %v2102
      %v2381 = vunpack.c.l.b16 %v2103
      %v2382 = vunpack.c.h.b16 %v2103
      %v2383 = vunpack.c.l.b16 %v2104
      %v2384 = vunpack.c.h.b16 %v2104
      %v2385 = vunpack.c.l.b16 %v2105
      %v2386 = vunpack.c.h.b16 %v2105
      %v2387 = vunpack.c.l.b16 %v2106
      %v2388 = vunpack.c.h.b16 %v2106
      %v2389 = vunpack.c.l.b16 %v2107
      %v2390 = vunpack.c.h.b16 %v2107
      %v2391 = vunpack.c.l.b16 %v2108
      %v2392 = vunpack.c.h.b16 %v2108
      %v2393 = vpack.c.b16 %v2385, %v2377
      %v2394 = vpack.c.b16 %v2386, %v2378
      %v2395 = vpack.c.b16 %v2387, %v2379
      %v2396 = vpack.c.b16 %v2388, %v2380
      %v2397 = vpack.c.b16 %v2389, %v2381
      %v2398 = vpack.c.b16 %v2390, %v2382
      %v2399 = vpack.c.b16 %v2391, %v2383
      %v2400 = vpack.c.b16 %v2392, %v2384
      %v2419 = vunpack.c.l.b16 %v2065
      %v2420 = vunpack.c.h.b16 %v2065
      %v2421 = vunpack.c.l.b16 %v2066
      %v2422 = vunpack.c.h.b16 %v2066
      %v2423 = vunpack.c.l.b16 %v2067
      %v2424 = vunpack.c.h.b16 %v2067
      %v2425 = vunpack.c.l.b16 %v2068
      %v2426 = vunpack.c.h.b16 %v2068
      %v2427 = vunpack.c.l.b16 %v2109
      %v2428 = vunpack.c.l.b16 %v2069
      %v2429 = vunpack.c.h.b16 %v2069
      %v2430 = vunpack.c.l.b16 %v2070
      %v2431 = vunpack.c.h.b16 %v2070
      %v2432 = vunpack.c.l.b16 %v2071
      %v2433 = vunpack.c.h.b16 %v2071
      %v2434 = vunpack.c.l.b16 %v2072
      %v2435 = vunpack.c.h.b16 %v2072
      %v2436 = vunpack.c.l.b16 %v2110
      %v2437 = vpack.c.b16 %v2428, %v2419
      %v2438 = vpack.c.b16 %v2429, %v2420
      %v2439 = vpack.c.b16 %v2430, %v2421
      %v2440 = vpack.c.b16 %v2431, %v2422
      %v2441 = vpack.c.b16 %v2432, %v2423
      %v2442 = vpack.c.b16 %v2433, %v2424
      %v2443 = vpack.c.b16 %v2434, %v2425
      %v2444 = vpack.c.b16 %v2435, %v2426
      %v2445 = vpack.c.b16 %v2436, %v2427
      %2446 = vrot.lane.b32.xlu0 %v2437, 126
      %v2447 = vpop.permute.xlu0 %2446
      %2448 = vrot.lane.b32.xlu0 %v2438, 126
      %v2449 = vpop.permute.xlu0 %2448
      %2450 = vrot.lane.b32.xlu0 %v2439, 126
      %v2451 = vpop.permute.xlu0 %2450
      %2452 = vrot.lane.b32.xlu0 %v2440, 126
      %v2453 = vpop.permute.xlu0 %2452
      %2454 = vrot.lane.b32.xlu0 %v2441, 126
      %v2455 = vpop.permute.xlu0 %2454
      %2456 = vrot.lane.b32.xlu0 %v2442, 126
      %v2457 = vpop.permute.xlu0 %2456
      %2458 = vrot.lane.b32.xlu0 %v2443, 126
      %v2459 = vpop.permute.xlu0 %2458
      %2460 = vrot.lane.b32.xlu0 %v2444, 126
      %v2461 = vpop.permute.xlu0 %2460
      %2462 = vrot.lane.b32.xlu0 %v2445, 126
      %v2463 = vpop.permute.xlu0 %2462
      %v2464 = vsel %vm1305, %v2447, %v2449
      %v2465 = vsel %vm1305, %v2449, %v2451
      %v2466 = vsel %vm1305, %v2451, %v2453
      %v2467 = vsel %vm1305, %v2453, %v2455
      %v2468 = vsel %vm1305, %v2455, %v2457
      %v2469 = vsel %vm1305, %v2457, %v2459
      %v2470 = vsel %vm1305, %v2459, %v2461
      %v2471 = vsel %vm1305, %v2461, %v2463
      %v2490 = vunpack.c.l.b16 %v2198
      %v2491 = vunpack.c.h.b16 %v2198
      %v2492 = vunpack.c.l.b16 %v2199
      %v2493 = vunpack.c.h.b16 %v2199
      %v2494 = vunpack.c.l.b16 %v2200
      %v2495 = vunpack.c.h.b16 %v2200
      %v2496 = vunpack.c.l.b16 %v2201
      %v2497 = vunpack.c.h.b16 %v2201
      %v2498 = vunpack.c.l.b16 %v2202
      %v2499 = vunpack.c.l.b16 %v2203
      %v2500 = vunpack.c.h.b16 %v2203
      %v2501 = vunpack.c.l.b16 %v2204
      %v2502 = vunpack.c.h.b16 %v2204
      %v2503 = vunpack.c.l.b16 %v2205
      %v2504 = vunpack.c.h.b16 %v2205
      %v2505 = vunpack.c.l.b16 %v2206
      %v2506 = vunpack.c.h.b16 %v2206
      %v2507 = vunpack.c.l.b16 %v2207
      %v2508 = vpack.c.b16 %v2499, %v2490
      %v2509 = vpack.c.b16 %v2500, %v2491
      %v2510 = vpack.c.b16 %v2501, %v2492
      %v2511 = vpack.c.b16 %v2502, %v2493
      %v2512 = vpack.c.b16 %v2503, %v2494
      %v2513 = vpack.c.b16 %v2504, %v2495
      %v2514 = vpack.c.b16 %v2505, %v2496
      %v2515 = vpack.c.b16 %v2506, %v2497
      %v2516 = vpack.c.b16 %v2507, %v2498
      %2517 = vrot.lane.b32.xlu0 %v2508, 124
      %v2518 = vpop.permute.xlu0 %2517
      %2519 = vrot.lane.b32.xlu0 %v2509, 124
      %v2520 = vpop.permute.xlu0 %2519
      %2521 = vrot.lane.b32.xlu0 %v2510, 124
      %v2522 = vpop.permute.xlu0 %2521
      %2523 = vrot.lane.b32.xlu0 %v2511, 124
      %v2524 = vpop.permute.xlu0 %2523
      %2525 = vrot.lane.b32.xlu0 %v2512, 124
      %v2526 = vpop.permute.xlu0 %2525
      %2527 = vrot.lane.b32.xlu0 %v2513, 124
      %v2528 = vpop.permute.xlu0 %2527
      %2529 = vrot.lane.b32.xlu0 %v2514, 124
      %v2530 = vpop.permute.xlu0 %2529
      %2531 = vrot.lane.b32.xlu0 %v2515, 124
      %v2532 = vpop.permute.xlu0 %2531
      %2533 = vrot.lane.b32.xlu0 %v2516, 124
      %v2534 = vpop.permute.xlu0 %2533
      %vm2535 = vcmask 1014784
      %v2536 = vsel %vm2535, %v2518, %v2520
      %v2537 = vsel %vm2535, %v2520, %v2522
      %v2538 = vsel %vm2535, %v2522, %v2524
      %v2539 = vsel %vm2535, %v2524, %v2526
      %v2540 = vsel %vm2535, %v2526, %v2528
      %v2541 = vsel %vm2535, %v2528, %v2530
      %v2542 = vsel %vm2535, %v2530, %v2532
      %v2543 = vsel %vm2535, %v2532, %v2534
      %v2562 = vunpack.c.l.b16 %v2266
      %v2563 = vunpack.c.h.b16 %v2266
      %v2564 = vunpack.c.l.b16 %v2267
      %v2565 = vunpack.c.h.b16 %v2267
      %v2566 = vunpack.c.l.b16 %v2268
      %v2567 = vunpack.c.h.b16 %v2268
      %v2568 = vunpack.c.l.b16 %v2269
      %v2569 = vunpack.c.h.b16 %v2269
      %v2570 = vunpack.c.l.b16 %v2270
      %v2571 = vunpack.c.l.b16 %v2271
      %v2572 = vunpack.c.h.b16 %v2271
      %v2573 = vunpack.c.l.b16 %v2272
      %v2574 = vunpack.c.h.b16 %v2272
      %v2575 = vunpack.c.l.b16 %v2273
      %v2576 = vunpack.c.h.b16 %v2273
      %v2577 = vunpack.c.l.b16 %v2274
      %v2578 = vunpack.c.h.b16 %v2274
      %v2579 = vunpack.c.l.b16 %v2275
      %v2580 = vpack.c.b16 %v2571, %v2562
      %v2581 = vpack.c.b16 %v2572, %v2563
      %v2582 = vpack.c.b16 %v2573, %v2564
      %v2583 = vpack.c.b16 %v2574, %v2565
      %v2584 = vpack.c.b16 %v2575, %v2566
      %v2585 = vpack.c.b16 %v2576, %v2567
      %v2586 = vpack.c.b16 %v2577, %v2568
      %v2587 = vpack.c.b16 %v2578, %v2569
      %v2588 = vpack.c.b16 %v2579, %v2570
      %2589 = vrot.lane.b32.xlu0 %v2580, 64
      %v2590 = vpop.permute.xlu0 %2589
      %2591 = vrot.lane.b32.xlu0 %v2581, 64
      %v2592 = vpop.permute.xlu0 %2591
      %2593 = vrot.lane.b32.xlu0 %v2582, 64
      %v2594 = vpop.permute.xlu0 %2593
      %2595 = vrot.lane.b32.xlu0 %v2583, 64
      %v2596 = vpop.permute.xlu0 %2595
      %2597 = vrot.lane.b32.xlu0 %v2584, 64
      %v2598 = vpop.permute.xlu0 %2597
      %2599 = vrot.lane.b32.xlu0 %v2585, 64
      %v2600 = vpop.permute.xlu0 %2599
      %2601 = vrot.lane.b32.xlu0 %v2586, 64
      %v2602 = vpop.permute.xlu0 %2601
      %2603 = vrot.lane.b32.xlu0 %v2587, 64
      %v2604 = vpop.permute.xlu0 %2603
      %2605 = vrot.lane.b32.xlu0 %v2588, 64
      %v2606 = vpop.permute.xlu0 %2605
      %v2607 = vsel %vm1020, %v2590, %v2592
      %v2608 = vsel %vm1020, %v2592, %v2594
      %v2609 = vsel %vm1020, %v2594, %v2596
      %v2610 = vsel %vm1020, %v2596, %v2598
      %v2611 = vsel %vm1020, %v2598, %v2600
      %v2612 = vsel %vm1020, %v2600, %v2602
      %v2613 = vsel %vm1020, %v2602, %v2604
      %v2614 = vsel %vm1020, %v2604, %v2606
      %2623 = vrot.lane.b32.xlu0 %v2437, 62
      %v2624 = vpop.permute.xlu0 %2623
      %2625 = vrot.lane.b32.xlu0 %v2438, 62
      %v2626 = vpop.permute.xlu0 %2625
      %2627 = vrot.lane.b32.xlu0 %v2439, 62
      %v2628 = vpop.permute.xlu0 %2627
      %2629 = vrot.lane.b32.xlu0 %v2440, 62
      %v2630 = vpop.permute.xlu0 %2629
      %2631 = vrot.lane.b32.xlu0 %v2441, 62
      %v2632 = vpop.permute.xlu0 %2631
      %2633 = vrot.lane.b32.xlu0 %v2442, 62
      %v2634 = vpop.permute.xlu0 %2633
      %2635 = vrot.lane.b32.xlu0 %v2443, 62
      %v2636 = vpop.permute.xlu0 %2635
      %2637 = vrot.lane.b32.xlu0 %v2444, 62
      %v2638 = vpop.permute.xlu0 %2637
      %2639 = vrot.lane.b32.xlu0 %v2445, 62
      %v2640 = vpop.permute.xlu0 %2639
      %v2641 = vsel %vm1662, %v2624, %v2626
      %v2642 = vsel %vm1662, %v2626, %v2628
      %v2643 = vsel %vm1662, %v2628, %v2630
      %v2644 = vsel %vm1662, %v2630, %v2632
      %v2645 = vsel %vm1662, %v2632, %v2634
      %v2646 = vsel %vm1662, %v2634, %v2636
      %v2647 = vsel %vm1662, %v2636, %v2638
      %v2648 = vsel %vm1662, %v2638, %v2640
      %v2667 = vunpack.c.l.b16 %v2331
      %v2668 = vunpack.c.h.b16 %v2331
      %v2669 = vunpack.c.l.b16 %v2332
      %v2670 = vunpack.c.h.b16 %v2332
      %v2671 = vunpack.c.l.b16 %v2333
      %v2672 = vunpack.c.h.b16 %v2333
      %v2673 = vunpack.c.l.b16 %v2334
      %v2674 = vunpack.c.h.b16 %v2334
      %v2675 = vunpack.c.l.b16 %v2335
      %v2676 = vunpack.c.l.b16 %v2336
      %v2677 = vunpack.c.h.b16 %v2336
      %v2678 = vunpack.c.l.b16 %v2337
      %v2679 = vunpack.c.h.b16 %v2337
      %v2680 = vunpack.c.l.b16 %v2338
      %v2681 = vunpack.c.h.b16 %v2338
      %v2682 = vunpack.c.l.b16 %v2339
      %v2683 = vunpack.c.h.b16 %v2339
      %v2684 = vunpack.c.l.b16 %v2340
      %v2685 = vpack.c.b16 %v2676, %v2667
      %v2686 = vpack.c.b16 %v2677, %v2668
      %v2687 = vpack.c.b16 %v2678, %v2669
      %v2688 = vpack.c.b16 %v2679, %v2670
      %v2689 = vpack.c.b16 %v2680, %v2671
      %v2690 = vpack.c.b16 %v2681, %v2672
      %v2691 = vpack.c.b16 %v2682, %v2673
      %v2692 = vpack.c.b16 %v2683, %v2674
      %v2693 = vpack.c.b16 %v2684, %v2675
      %2694 = vrot.lane.b32.xlu0 %v2685, 60
      %v2695 = vpop.permute.xlu0 %2694
      %2696 = vrot.lane.b32.xlu0 %v2686, 60
      %v2697 = vpop.permute.xlu0 %2696
      %2698 = vrot.lane.b32.xlu0 %v2687, 60
      %v2699 = vpop.permute.xlu0 %2698
      %2700 = vrot.lane.b32.xlu0 %v2688, 60
      %v2701 = vpop.permute.xlu0 %2700
      %2702 = vrot.lane.b32.xlu0 %v2689, 60
      %v2703 = vpop.permute.xlu0 %2702
      %2704 = vrot.lane.b32.xlu0 %v2690, 60
      %v2705 = vpop.permute.xlu0 %2704
      %2706 = vrot.lane.b32.xlu0 %v2691, 60
      %v2707 = vpop.permute.xlu0 %2706
      %2708 = vrot.lane.b32.xlu0 %v2692, 60
      %v2709 = vpop.permute.xlu0 %2708
      %2710 = vrot.lane.b32.xlu0 %v2693, 60
      %v2711 = vpop.permute.xlu0 %2710
      %vm2712 = vcmask 490496
      %v2713 = vsel %vm2712, %v2695, %v2697
      %v2714 = vsel %vm2712, %v2697, %v2699
      %v2715 = vsel %vm2712, %v2699, %v2701
      %v2716 = vsel %vm2712, %v2701, %v2703
      %v2717 = vsel %vm2712, %v2703, %v2705
      %v2718 = vsel %vm2712, %v2705, %v2707
      %v2719 = vsel %vm2712, %v2707, %v2709
      %v2720 = vsel %vm2712, %v2709, %v2711
      %v2737 = vunpack.c.l.b16 %v2349
      %v2738 = vunpack.c.h.b16 %v2349
      %v2739 = vunpack.c.l.b16 %v2350
      %v2740 = vunpack.c.h.b16 %v2350
      %v2741 = vunpack.c.l.b16 %v2351
      %v2742 = vunpack.c.h.b16 %v2351
      %v2743 = vunpack.c.l.b16 %v2352
      %v2744 = vunpack.c.h.b16 %v2352
      %v2745 = vunpack.c.l.b16 %v2353
      %v2746 = vunpack.c.h.b16 %v2353
      %v2747 = vunpack.c.l.b16 %v2354
      %v2748 = vunpack.c.h.b16 %v2354
      %v2749 = vunpack.c.l.b16 %v2355
      %v2750 = vunpack.c.h.b16 %v2355
      %v2751 = vunpack.c.l.b16 %v2356
      %v2752 = vunpack.c.h.b16 %v2356
      %v2753 = vpack.c.b16 %v2745, %v2737
      %v2754 = vpack.c.b16 %v2746, %v2738
      %v2755 = vpack.c.b16 %v2747, %v2739
      %v2756 = vpack.c.b16 %v2748, %v2740
      %v2757 = vpack.c.b16 %v2749, %v2741
      %v2758 = vpack.c.b16 %v2750, %v2742
      %v2759 = vpack.c.b16 %v2751, %v2743
      %v2760 = vpack.c.b16 %v2752, %v2744
      %v2779 = vunpack.c.l.b16 %v2341
      %v2780 = vunpack.c.h.b16 %v2341
      %v2781 = vunpack.c.l.b16 %v2342
      %v2782 = vunpack.c.h.b16 %v2342
      %v2783 = vunpack.c.l.b16 %v2343
      %v2784 = vunpack.c.h.b16 %v2343
      %v2785 = vunpack.c.l.b16 %v2344
      %v2786 = vunpack.c.h.b16 %v2344
      %v2787 = vunpack.c.l.b16 %v2357
      %v2788 = vunpack.c.l.b16 %v2345
      %v2789 = vunpack.c.h.b16 %v2345
      %v2790 = vunpack.c.l.b16 %v2346
      %v2791 = vunpack.c.h.b16 %v2346
      %v2792 = vunpack.c.l.b16 %v2347
      %v2793 = vunpack.c.h.b16 %v2347
      %v2794 = vunpack.c.l.b16 %v2348
      %v2795 = vunpack.c.h.b16 %v2348
      %v2796 = vunpack.c.l.b16 %v2358
      %v2797 = vpack.c.b16 %v2788, %v2779
      %v2798 = vpack.c.b16 %v2789, %v2780
      %v2799 = vpack.c.b16 %v2790, %v2781
      %v2800 = vpack.c.b16 %v2791, %v2782
      %v2801 = vpack.c.b16 %v2792, %v2783
      %v2802 = vpack.c.b16 %v2793, %v2784
      %v2803 = vpack.c.b16 %v2794, %v2785
      %v2804 = vpack.c.b16 %v2795, %v2786
      %v2805 = vpack.c.b16 %v2796, %v2787
      %2806 = vrot.lane.b32.xlu0 %v2797, 126
      %v2807 = vpop.permute.xlu0 %2806
      %2808 = vrot.lane.b32.xlu0 %v2798, 126
      %v2809 = vpop.permute.xlu0 %2808
      %2810 = vrot.lane.b32.xlu0 %v2799, 126
      %v2811 = vpop.permute.xlu0 %2810
      %2812 = vrot.lane.b32.xlu0 %v2800, 126
      %v2813 = vpop.permute.xlu0 %2812
      %2814 = vrot.lane.b32.xlu0 %v2801, 126
      %v2815 = vpop.permute.xlu0 %2814
      %2816 = vrot.lane.b32.xlu0 %v2802, 126
      %v2817 = vpop.permute.xlu0 %2816
      %2818 = vrot.lane.b32.xlu0 %v2803, 126
      %v2819 = vpop.permute.xlu0 %2818
      %2820 = vrot.lane.b32.xlu0 %v2804, 126
      %v2821 = vpop.permute.xlu0 %2820
      %2822 = vrot.lane.b32.xlu0 %v2805, 126
      %v2823 = vpop.permute.xlu0 %2822
      %v2824 = vsel %vm1305, %v2807, %v2809
      %v2825 = vsel %vm1305, %v2809, %v2811
      %v2826 = vsel %vm1305, %v2811, %v2813
      %v2827 = vsel %vm1305, %v2813, %v2815
      %v2828 = vsel %vm1305, %v2815, %v2817
      %v2829 = vsel %vm1305, %v2817, %v2819
      %v2830 = vsel %vm1305, %v2819, %v2821
      %v2831 = vsel %vm1305, %v2821, %v2823
      %v2850 = vunpack.c.l.b16 %v2359
      %v2851 = vunpack.c.h.b16 %v2359
      %v2852 = vunpack.c.l.b16 %v2360
      %v2853 = vunpack.c.h.b16 %v2360
      %v2854 = vunpack.c.l.b16 %v2361
      %v2855 = vunpack.c.h.b16 %v2361
      %v2856 = vunpack.c.l.b16 %v2362
      %v2857 = vunpack.c.h.b16 %v2362
      %v2858 = vunpack.c.l.b16 %v2363
      %v2859 = vunpack.c.l.b16 %v2364
      %v2860 = vunpack.c.h.b16 %v2364
      %v2861 = vunpack.c.l.b16 %v2365
      %v2862 = vunpack.c.h.b16 %v2365
      %v2863 = vunpack.c.l.b16 %v2366
      %v2864 = vunpack.c.h.b16 %v2366
      %v2865 = vunpack.c.l.b16 %v2367
      %v2866 = vunpack.c.h.b16 %v2367
      %v2867 = vunpack.c.l.b16 %v2368
      %v2868 = vpack.c.b16 %v2859, %v2850
      %v2869 = vpack.c.b16 %v2860, %v2851
      %v2870 = vpack.c.b16 %v2861, %v2852
      %v2871 = vpack.c.b16 %v2862, %v2853
      %v2872 = vpack.c.b16 %v2863, %v2854
      %v2873 = vpack.c.b16 %v2864, %v2855
      %v2874 = vpack.c.b16 %v2865, %v2856
      %v2875 = vpack.c.b16 %v2866, %v2857
      %v2876 = vpack.c.b16 %v2867, %v2858
      %2877 = vrot.lane.b32.xlu0 %v2868, 124
      %v2878 = vpop.permute.xlu0 %2877
      %2879 = vrot.lane.b32.xlu0 %v2869, 124
      %v2880 = vpop.permute.xlu0 %2879
      %2881 = vrot.lane.b32.xlu0 %v2870, 124
      %v2882 = vpop.permute.xlu0 %2881
      %2883 = vrot.lane.b32.xlu0 %v2871, 124
      %v2884 = vpop.permute.xlu0 %2883
      %2885 = vrot.lane.b32.xlu0 %v2872, 124
      %v2886 = vpop.permute.xlu0 %2885
      %2887 = vrot.lane.b32.xlu0 %v2873, 124
      %v2888 = vpop.permute.xlu0 %2887
      %2889 = vrot.lane.b32.xlu0 %v2874, 124
      %v2890 = vpop.permute.xlu0 %2889
      %2891 = vrot.lane.b32.xlu0 %v2875, 124
      %v2892 = vpop.permute.xlu0 %2891
      %2893 = vrot.lane.b32.xlu0 %v2876, 124
      %v2894 = vpop.permute.xlu0 %2893
      %v2895 = vsel %vm2535, %v2878, %v2880
      %v2896 = vsel %vm2535, %v2880, %v2882
      %v2897 = vsel %vm2535, %v2882, %v2884
      %v2898 = vsel %vm2535, %v2884, %v2886
      %v2899 = vsel %vm2535, %v2886, %v2888
      %v2900 = vsel %vm2535, %v2888, %v2890
      %v2901 = vsel %vm2535, %v2890, %v2892
      %v2902 = vsel %vm2535, %v2892, %v2894
      %v2911 = vld [vmem:[%s4] sm:$0xff]
      %v2912 = vld [vmem:[%s4 + $0x8] sm:$0xff]
      %v2915 = vunpack.c.l.b16 %v2911
      %v2916 = vunpack.c.h.b16 %v2911
      %v2917 = vunpack.c.l.b16 %v2912
      %v2918 = vunpack.c.h.b16 %v2912
      %v2919 = vpack.c.b16 %v2917, %v2915
      %v2920 = vpack.c.b16 %v2918, %v2916
      %v2923 = vsel %vm1690, %v2920, 0
      %2925 = vmatpush.bf16.msra.mxu0 %v2824
      %2926 = vmatpush.bf16.msra.mxu0 %v2753
      %2927 = vmatpush.bf16.msra.mxu0 %v2713
      %2928 = vmatpush.bf16.msra.mxu0 %v2641
      %2929 = vmatpush.bf16.msra.mxu0 %v2607
      %2930 = vmatpush.bf16.msra.mxu0 %v2536
      %2931 = vmatpush.bf16.msra.mxu0 %v2464
      %2932 = vmatpush.bf16.msra.mxu0 %v2393
      %2933 = vmatmul.bf16.gmra.mxu0 %v2919
      %v2934 = vpop.f32.mrf.mxu0
      %v2935 = vadd.f32 0.0, %v2934
      %v2936 = vpop.f32.mrf.mxu0
      %v2937 = vadd.f32 0.0, %v2936
      %2938 = vdwg.mxu0
      %2939 = vmatpush.bf16.msra.mxu0 0
      %2940 = vmatpush.bf16.msra.mxu0 0
      %2941 = vmatpush.bf16.msra.mxu0 0
      %2942 = vmatpush.bf16.msra.mxu0 0
      %2943 = vmatpush.bf16.msra.mxu0 0
      %2944 = vmatpush.bf16.msra.mxu0 0
      %2945 = vmatpush.bf16.msra.mxu0 0
      %2946 = vmatpush.bf16.msra.mxu0 %v2895
      %2947 = vmatmul.bf16.gmra.mxu0 %v2923
      %v2948 = vpop.f32.mrf.mxu0
      %v2949 = vadd.f32 %v2935, %v2948
      %v2950 = vpop.f32.mrf.mxu0
      %v2951 = vadd.f32 %v2937, %v2950
      %2952 = vdwg.mxu0
      %2953 = vmatpush.bf16.msra.mxu0 %v2825
      %2954 = vmatpush.bf16.msra.mxu0 %v2754
      %2955 = vmatpush.bf16.msra.mxu0 %v2714
      %2956 = vmatpush.bf16.msra.mxu0 %v2642
      %2957 = vmatpush.bf16.msra.mxu0 %v2608
      %2958 = vmatpush.bf16.msra.mxu0 %v2537
      %2959 = vmatpush.bf16.msra.mxu0 %v2465
      %2960 = vmatpush.bf16.msra.mxu0 %v2394
      %2961 = vmatmul.bf16.gmra.mxu0 %v2919
      %v2962 = vpop.f32.mrf.mxu0
      %v2963 = vadd.f32 0.0, %v2962
      %v2964 = vpop.f32.mrf.mxu0
      %v2965 = vadd.f32 0.0, %v2964
      %2966 = vdwg.mxu0
      %2967 = vmatpush.bf16.msra.mxu0 0
      %2968 = vmatpush.bf16.msra.mxu0 0
      %2969 = vmatpush.bf16.msra.mxu0 0
      %2970 = vmatpush.bf16.msra.mxu0 0
      %2971 = vmatpush.bf16.msra.mxu0 0
      %2972 = vmatpush.bf16.msra.mxu0 0
      %2973 = vmatpush.bf16.msra.mxu0 0
      %2974 = vmatpush.bf16.msra.mxu0 %v2896
      %2975 = vmatmul.bf16.gmra.mxu0 %v2923
      %v2976 = vpop.f32.mrf.mxu0
      %v2977 = vadd.f32 %v2963, %v2976
      %v2978 = vpop.f32.mrf.mxu0
      %v2979 = vadd.f32 %v2965, %v2978
      %2980 = vdwg.mxu0
      %2981 = vmatpush.bf16.msra.mxu0 %v2826
      %2982 = vmatpush.bf16.msra.mxu0 %v2755
      %2983 = vmatpush.bf16.msra.mxu0 %v2715
      %2984 = vmatpush.bf16.msra.mxu0 %v2643
      %2985 = vmatpush.bf16.msra.mxu0 %v2609
      %2986 = vmatpush.bf16.msra.mxu0 %v2538
      %2987 = vmatpush.bf16.msra.mxu0 %v2466
      %2988 = vmatpush.bf16.msra.mxu0 %v2395
      %2989 = vmatmul.bf16.gmra.mxu0 %v2919
      %v2990 = vpop.f32.mrf.mxu0
      %v2991 = vadd.f32 0.0, %v2990
      %v2992 = vpop.f32.mrf.mxu0
      %v2993 = vadd.f32 0.0, %v2992
      %2994 = vdwg.mxu0
      %2995 = vmatpush.bf16.msra.mxu0 0
      %2996 = vmatpush.bf16.msra.mxu0 0
      %2997 = vmatpush.bf16.msra.mxu0 0
      %2998 = vmatpush.bf16.msra.mxu0 0
      %2999 = vmatpush.bf16.msra.mxu0 0
      %3000 = vmatpush.bf16.msra.mxu0 0
      %3001 = vmatpush.bf16.msra.mxu0 0
      %3002 = vmatpush.bf16.msra.mxu0 %v2897
      %3003 = vmatmul.bf16.gmra.mxu0 %v2923
      %v3004 = vpop.f32.mrf.mxu0
      %v3005 = vadd.f32 %v2991, %v3004
      %v3006 = vpop.f32.mrf.mxu0
      %v3007 = vadd.f32 %v2993, %v3006
      %3008 = vdwg.mxu0
      %3009 = vmatpush.bf16.msra.mxu0 %v2827
      %3010 = vmatpush.bf16.msra.mxu0 %v2756
      %3011 = vmatpush.bf16.msra.mxu0 %v2716
      %3012 = vmatpush.bf16.msra.mxu0 %v2644
      %3013 = vmatpush.bf16.msra.mxu0 %v2610
      %3014 = vmatpush.bf16.msra.mxu0 %v2539
      %3015 = vmatpush.bf16.msra.mxu0 %v2467
      %3016 = vmatpush.bf16.msra.mxu0 %v2396
      %3017 = vmatmul.bf16.gmra.mxu0 %v2919
      %v3018 = vpop.f32.mrf.mxu0
      %v3019 = vadd.f32 0.0, %v3018
      %v3020 = vpop.f32.mrf.mxu0
      %v3021 = vadd.f32 0.0, %v3020
      %3022 = vdwg.mxu0
      %3023 = vmatpush.bf16.msra.mxu0 0
      %3024 = vmatpush.bf16.msra.mxu0 0
      %3025 = vmatpush.bf16.msra.mxu0 0
      %3026 = vmatpush.bf16.msra.mxu0 0
      %3027 = vmatpush.bf16.msra.mxu0 0
      %3028 = vmatpush.bf16.msra.mxu0 0
      %3029 = vmatpush.bf16.msra.mxu0 0
      %3030 = vmatpush.bf16.msra.mxu0 %v2898
      %3031 = vmatmul.bf16.gmra.mxu0 %v2923
      %v3032 = vpop.f32.mrf.mxu0
      %v3033 = vadd.f32 %v3019, %v3032
      %v3034 = vpop.f32.mrf.mxu0
      %v3035 = vadd.f32 %v3021, %v3034
      %3036 = vdwg.mxu0
      %3037 = vmatpush.bf16.msra.mxu0 %v2828
      %3038 = vmatpush.bf16.msra.mxu0 %v2757
      %3039 = vmatpush.bf16.msra.mxu0 %v2717
      %3040 = vmatpush.bf16.msra.mxu0 %v2645
      %3041 = vmatpush.bf16.msra.mxu0 %v2611
      %3042 = vmatpush.bf16.msra.mxu0 %v2540
      %3043 = vmatpush.bf16.msra.mxu0 %v2468
      %3044 = vmatpush.bf16.msra.mxu0 %v2397
      %3045 = vmatmul.bf16.gmra.mxu0 %v2919
      %v3046 = vpop.f32.mrf.mxu0
      %v3047 = vadd.f32 0.0, %v3046
      %v3048 = vpop.f32.mrf.mxu0
      %v3049 = vadd.f32 0.0, %v3048
      %3050 = vdwg.mxu0
      %3051 = vmatpush.bf16.msra.mxu0 0
      %3052 = vmatpush.bf16.msra.mxu0 0
      %3053 = vmatpush.bf16.msra.mxu0 0
      %3054 = vmatpush.bf16.msra.mxu0 0
      %3055 = vmatpush.bf16.msra.mxu0 0
      %3056 = vmatpush.bf16.msra.mxu0 0
      %3057 = vmatpush.bf16.msra.mxu0 0
      %3058 = vmatpush.bf16.msra.mxu0 %v2899
      %3059 = vmatmul.bf16.gmra.mxu0 %v2923
      %v3060 = vpop.f32.mrf.mxu0
      %v3061 = vadd.f32 %v3047, %v3060
      %v3062 = vpop.f32.mrf.mxu0
      %v3063 = vadd.f32 %v3049, %v3062
      %3064 = vdwg.mxu0
      %3065 = vmatpush.bf16.msra.mxu0 %v2829
      %3066 = vmatpush.bf16.msra.mxu0 %v2758
      %3067 = vmatpush.bf16.msra.mxu0 %v2718
      %3068 = vmatpush.bf16.msra.mxu0 %v2646
      %3069 = vmatpush.bf16.msra.mxu0 %v2612
      %3070 = vmatpush.bf16.msra.mxu0 %v2541
      %3071 = vmatpush.bf16.msra.mxu0 %v2469
      %3072 = vmatpush.bf16.msra.mxu0 %v2398
      %3073 = vmatmul.bf16.gmra.mxu0 %v2919
      %v3074 = vpop.f32.mrf.mxu0
      %v3075 = vadd.f32 0.0, %v3074
      %v3076 = vpop.f32.mrf.mxu0
      %v3077 = vadd.f32 0.0, %v3076
      %3078 = vdwg.mxu0
      %3079 = vmatpush.bf16.msra.mxu0 0
      %3080 = vmatpush.bf16.msra.mxu0 0
      %3081 = vmatpush.bf16.msra.mxu0 0
      %3082 = vmatpush.bf16.msra.mxu0 0
      %3083 = vmatpush.bf16.msra.mxu0 0
      %3084 = vmatpush.bf16.msra.mxu0 0
      %3085 = vmatpush.bf16.msra.mxu0 0
      %3086 = vmatpush.bf16.msra.mxu0 %v2900
      %3087 = vmatmul.bf16.gmra.mxu0 %v2923
      %v3088 = vpop.f32.mrf.mxu0
      %v3089 = vadd.f32 %v3075, %v3088
      %v3090 = vpop.f32.mrf.mxu0
      %v3091 = vadd.f32 %v3077, %v3090
      %3092 = vdwg.mxu0
      %3093 = vmatpush.bf16.msra.mxu0 %v2830
      %3094 = vmatpush.bf16.msra.mxu0 %v2759
      %3095 = vmatpush.bf16.msra.mxu0 %v2719
      %3096 = vmatpush.bf16.msra.mxu0 %v2647
      %3097 = vmatpush.bf16.msra.mxu0 %v2613
      %3098 = vmatpush.bf16.msra.mxu0 %v2542
      %3099 = vmatpush.bf16.msra.mxu0 %v2470
      %3100 = vmatpush.bf16.msra.mxu0 %v2399
      %3101 = vmatmul.bf16.gmra.mxu0 %v2919
      %v3102 = vpop.f32.mrf.mxu0
      %v3103 = vadd.f32 0.0, %v3102
      %v3104 = vpop.f32.mrf.mxu0
      %v3105 = vadd.f32 0.0, %v3104
      %3106 = vdwg.mxu0
      %3107 = vmatpush.bf16.msra.mxu0 0
      %3108 = vmatpush.bf16.msra.mxu0 0
      %3109 = vmatpush.bf16.msra.mxu0 0
      %3110 = vmatpush.bf16.msra.mxu0 0
      %3111 = vmatpush.bf16.msra.mxu0 0
      %3112 = vmatpush.bf16.msra.mxu0 0
      %3113 = vmatpush.bf16.msra.mxu0 0
      %3114 = vmatpush.bf16.msra.mxu0 %v2901
      %3115 = vmatmul.bf16.gmra.mxu0 %v2923
      %v3116 = vpop.f32.mrf.mxu0
      %v3117 = vadd.f32 %v3103, %v3116
      %v3118 = vpop.f32.mrf.mxu0
      %v3119 = vadd.f32 %v3105, %v3118
      %3120 = vdwg.mxu0
      %3121 = vmatpush.bf16.msra.mxu0 %v2831
      %3122 = vmatpush.bf16.msra.mxu0 %v2760
      %3123 = vmatpush.bf16.msra.mxu0 %v2720
      %3124 = vmatpush.bf16.msra.mxu0 %v2648
      %3125 = vmatpush.bf16.msra.mxu0 %v2614
      %3126 = vmatpush.bf16.msra.mxu0 %v2543
      %3127 = vmatpush.bf16.msra.mxu0 %v2471
      %3128 = vmatpush.bf16.msra.mxu0 %v2400
      %3129 = vmatmul.bf16.gmra.mxu0 %v2919
      %v3130 = vpop.f32.mrf.mxu0
      %v3131 = vadd.f32 0.0, %v3130
      %v3132 = vpop.f32.mrf.mxu0
      %v3133 = vadd.f32 0.0, %v3132
      %3134 = vdwg.mxu0
      %3135 = vmatpush.bf16.msra.mxu0 0
      %3136 = vmatpush.bf16.msra.mxu0 0
      %3137 = vmatpush.bf16.msra.mxu0 0
      %3138 = vmatpush.bf16.msra.mxu0 0
      %3139 = vmatpush.bf16.msra.mxu0 0
      %3140 = vmatpush.bf16.msra.mxu0 0
      %3141 = vmatpush.bf16.msra.mxu0 0
      %3142 = vmatpush.bf16.msra.mxu0 %v2902
      %3143 = vmatmul.bf16.gmra.mxu0 %v2923
      %v3144 = vpop.f32.mrf.mxu0
      %v3145 = vadd.f32 %v3131, %v3144
      %v3146 = vpop.f32.mrf.mxu0
      %v3147 = vadd.f32 %v3133, %v3146
      %3148 = vdwg.mxu0
      %v3149 = vld [vmem:[%s5] sm:$0xff]
      %v3150 = vld [vmem:[%s5 + $0x8] sm:$0xff]
      %3152 = vset.pattern.permute.xlu0 0
      %3153 = vperm.xlu0 %3152, %v3149
      %v3154 = vpop.permute.xlu0 %3153
      %3157 = vset.pattern.permute.xlu0 0
      %3158 = vperm.xlu0 %3157, %v3150
      %v3159 = vpop.permute.xlu0 %3158
      %v3161 = vmul.f32 %v2949, %v3154
      %v3162 = vmul.f32 %v2977, %v3154
      %v3163 = vmul.f32 %v3005, %v3154
      %v3164 = vmul.f32 %v3033, %v3154
      %v3165 = vmul.f32 %v3061, %v3154
      %v3166 = vmul.f32 %v3089, %v3154
      %v3167 = vmul.f32 %v3117, %v3154
      %v3168 = vmul.f32 %v3145, %v3154
      %v3169 = vmul.f32 %v2951, %v3159
      %v3170 = vmul.f32 %v2979, %v3159
      %v3171 = vmul.f32 %v3007, %v3159
      %v3172 = vmul.f32 %v3035, %v3159
      %v3173 = vmul.f32 %v3063, %v3159
      %v3174 = vmul.f32 %v3091, %v3159
      %v3175 = vmul.f32 %v3119, %v3159
      %v3176 = vmul.f32 %v3147, %v3159
      %v3177 = vld [vmem:[%s6] sm:$0xff]
      %v3178 = vld [vmem:[%s6 + $0x8] sm:$0xff]
      %3180 = vset.pattern.permute.xlu0 0
      %3181 = vperm.xlu0 %3180, %v3177
      %v3182 = vpop.permute.xlu0 %3181
      %3185 = vset.pattern.permute.xlu0 0
      %3186 = vperm.xlu0 %3185, %v3178
      %v3187 = vpop.permute.xlu0 %3186
      %v3189 = vadd.f32 %v3161, %v3182
      %v3190 = vadd.f32 %v3162, %v3182
      %v3191 = vadd.f32 %v3163, %v3182
      %v3192 = vadd.f32 %v3164, %v3182
      %v3193 = vadd.f32 %v3165, %v3182
      %v3194 = vadd.f32 %v3166, %v3182
      %v3195 = vadd.f32 %v3167, %v3182
      %v3196 = vadd.f32 %v3168, %v3182
      %v3197 = vadd.f32 %v3169, %v3187
      %v3198 = vadd.f32 %v3170, %v3187
      %v3199 = vadd.f32 %v3171, %v3187
      %v3200 = vadd.f32 %v3172, %v3187
      %v3201 = vadd.f32 %v3173, %v3187
      %v3202 = vadd.f32 %v3174, %v3187
      %v3203 = vadd.f32 %v3175, %v3187
      %v3204 = vadd.f32 %v3176, %v3187
      %v3205 = vmax.f32 %v3189, 0.0
      %v3206 = vmax.f32 %v3190, 0.0
      %v3207 = vmax.f32 %v3191, 0.0
      %v3208 = vmax.f32 %v3192, 0.0
      %v3209 = vmax.f32 %v3193, 0.0
      %v3210 = vmax.f32 %v3194, 0.0
      %v3211 = vmax.f32 %v3195, 0.0
      %v3212 = vmax.f32 %v3196, 0.0
      %v3213 = vmax.f32 %v3197, 0.0
      %v3214 = vmax.f32 %v3198, 0.0
      %v3215 = vmax.f32 %v3199, 0.0
      %v3216 = vmax.f32 %v3200, 0.0
      %v3217 = vmax.f32 %v3201, 0.0
      %v3218 = vmax.f32 %v3202, 0.0
      %v3219 = vmax.f32 %v3203, 0.0
      %v3220 = vmax.f32 %v3204, 0.0
      %v3221 = vpack.c.bf16 %v3206, %v3205
      %v3222 = vpack.c.bf16 %v3208, %v3207
      %v3223 = vpack.c.bf16 %v3210, %v3209
      %v3224 = vpack.c.bf16 %v3212, %v3211
      %v3225 = vpack.c.bf16 %v3214, %v3213
      %v3226 = vpack.c.bf16 %v3216, %v3215
      %v3227 = vpack.c.bf16 %v3218, %v3217
      %v3228 = vpack.c.bf16 %v3220, %v3219
      %3237 = vrot.lane.b32.xlu0 %v3221, 4
      %v3238 = vpop.permute.xlu0 %3237
      %3239 = vrot.lane.b32.xlu0 %v3222, 4
      %v3240 = vpop.permute.xlu0 %3239
      %3241 = vrot.lane.b32.xlu0 %v3223, 4
      %v3242 = vpop.permute.xlu0 %3241
      %3243 = vrot.lane.b32.xlu0 %v3224, 4
      %v3244 = vpop.permute.xlu0 %3243
      %3245 = vrot.lane.b32.xlu0 %v3225, 4
      %v3246 = vpop.permute.xlu0 %3245
      %3247 = vrot.lane.b32.xlu0 %v3226, 4
      %v3248 = vpop.permute.xlu0 %3247
      %3249 = vrot.lane.b32.xlu0 %v3227, 4
      %v3250 = vpop.permute.xlu0 %3249
      %3251 = vrot.lane.b32.xlu0 %v3228, 4
      %v3252 = vpop.permute.xlu0 %3251
      %v3253 = vrot.slane %v3238, 4
      %v3254 = vrot.slane %v3240, 4
      %v3255 = vrot.slane %v3242, 4
      %v3256 = vrot.slane %v3244, 4
      %v3257 = vrot.slane %v3246, 4
      %v3258 = vrot.slane %v3248, 4
      %v3259 = vrot.slane %v3250, 4
      %v3260 = vrot.slane %v3252, 4
      %v3261 = vsel %vm2155, %v3253, %v3238
      %v3262 = vsel %vm587, %v3253, %v3254
      %v3263 = vsel %vm2155, %v3262, %v3240
      %v3264 = vsel %vm587, %v3254, %v3255
      %v3265 = vsel %vm2155, %v3264, %v3242
      %v3266 = vsel %vm587, %v3255, %v3256
      %v3267 = vsel %vm2155, %v3266, %v3244
      %v3268 = vsel %vm2155, %v3257, %v3246
      %v3269 = vsel %vm587, %v3257, %v3258
      %v3270 = vsel %vm2155, %v3269, %v3248
      %v3271 = vsel %vm587, %v3258, %v3259
      %v3272 = vsel %vm2155, %v3271, %v3250
      %v3273 = vsel %vm587, %v3259, %v3260
      %v3274 = vsel %vm2155, %v3273, %v3252
      %vm3285 = vmor %vm527, %vm516
      %3286 = vst.msk [vmem:[#allocation4 + $0x4] sm:$0xff] %vm3285, %v3261
      %3287 = vst [vmem:[#allocation4 + $0xc] sm:$0xff] %v3263
      %3288 = vst [vmem:[#allocation4 + $0x14] sm:$0xff] %v3265
      %3289 = vst [vmem:[#allocation4 + $0x1c] sm:$0xff] %v3267
      %vm3290 = vcmask 27648
      %3291 = vst.msk [vmem:[#allocation4 + $0x24] sm:$0xf] %vm3290, %v3256
      %3292 = vst.msk [vmem:[#allocation4 + $0x30] sm:$0xff] %vm3285, %v3268
      %3293 = vst [vmem:[#allocation4 + $0x38] sm:$0xff] %v3270
      %3294 = vst [vmem:[#allocation4 + $0x40] sm:$0xff] %v3272
      %3295 = vst [vmem:[#allocation4 + $0x48] sm:$0xff] %v3274
      %3296 = vst.msk [vmem:[#allocation4 + $0x50] sm:$0xf] %vm3290, %v3260
      %v3297 = vld [vmem:[#allocation4] sm:$0xff]
      %v3298 = vld [vmem:[#allocation4 + $0x8] sm:$0xff]
      %v3299 = vld [vmem:[#allocation4 + $0x10] sm:$0xff]
      %v3300 = vld [vmem:[#allocation4 + $0x18] sm:$0xff]
      %v3301 = vld [vmem:[#allocation4 + $0x2c] sm:$0xff]
      %v3302 = vld [vmem:[#allocation4 + $0x34] sm:$0xff]
      %v3303 = vld [vmem:[#allocation4 + $0x3c] sm:$0xff]
      %v3304 = vld [vmem:[#allocation4 + $0x44] sm:$0xff]
      %vm3305 = vcmp.ge.s32.totalorder %v723, 4
      %vm3306 = vcmp.ge.s32.totalorder %v724, 4
      %vm3307 = vcmp.ge.s32.totalorder %v725, 4
      %vm3308 = vcmp.ge.s32.totalorder %v726, 4
      %vm3309 = vcmp.ge.s32.totalorder %v727, 4
      %vm3310 = vcmp.ge.s32.totalorder %v728, 4
      %vm3311 = vcmp.ge.s32.totalorder %v729, 4
      %vm3312 = vcmp.ge.s32.totalorder %v730, 4
      %v3313 = vsel %vm3305, 1, 0
      %v3314 = vsel %vm3306, 1, 0
      %v3315 = vsel %vm3307, 1, 0
      %v3316 = vsel %vm3308, 1, 0
      %v3317 = vsel %vm3309, 1, 0
      %v3318 = vsel %vm3310, 1, 0
      %v3319 = vsel %vm3311, 1, 0
      %v3320 = vsel %vm3312, 1, 0
      %vm3321 = vcmp.eq.s32.totalorder %v3313, 1
      %vm3322 = vcmp.eq.s32.totalorder %v3314, 1
      %vm3323 = vcmp.eq.s32.totalorder %v3315, 1
      %vm3324 = vcmp.eq.s32.totalorder %v3316, 1
      %vm3325 = vcmp.eq.s32.totalorder %v3317, 1
      %vm3326 = vcmp.eq.s32.totalorder %v3318, 1
      %vm3327 = vcmp.eq.s32.totalorder %v3319, 1
      %vm3328 = vcmp.eq.s32.totalorder %v3320, 1
      %vm3329 = vmpackc.low %vm3322, %vm3321
      %vm3330 = vmpackc.low %vm3324, %vm3323
      %vm3331 = vmpackc.low %vm3326, %vm3325
      %vm3332 = vmpackc.low %vm3328, %vm3327
      %v3333 = vsel %vm3329, %v3297, 0
      %v3334 = vsel %vm3330, %v3298, 0
      %v3335 = vsel %vm3331, %v3299, 0
      %v3336 = vsel %vm3332, %v3300, 0
      %v3337 = vsel %vm3329, %v3301, 0
      %v3338 = vsel %vm3330, %v3302, 0
      %v3339 = vsel %vm3331, %v3303, 0
      %v3340 = vsel %vm3332, %v3304, 0
      %v3341 = vld [vmem:[#allocation4 + $0x20] sm:$0xf]
      %v3342 = vld [vmem:[#allocation4 + $0x4c] sm:$0xf]
      %vm3343 = vcmp.lt.s32.totalorder %v723, 28
      %vm3344 = vcmp.lt.s32.totalorder %v724, 28
      %vm3345 = vcmp.lt.s32.totalorder %v725, 28
      %vm3346 = vcmp.lt.s32.totalorder %v726, 28
      %vm3347 = vcmp.lt.s32.totalorder %v727, 28
      %vm3348 = vcmp.lt.s32.totalorder %v728, 28
      %vm3349 = vcmp.lt.s32.totalorder %v729, 28
      %vm3350 = vcmp.lt.s32.totalorder %v730, 28
      %v3351 = vsel %vm3343, 1, 0
      %v3352 = vsel %vm3344, 1, 0
      %v3353 = vsel %vm3345, 1, 0
      %v3354 = vsel %vm3346, 1, 0
      %v3355 = vsel %vm3347, 1, 0
      %v3356 = vsel %vm3348, 1, 0
      %v3357 = vsel %vm3349, 1, 0
      %v3358 = vsel %vm3350, 1, 0
      %vm3359 = vcmp.eq.s32.totalorder %v3351, 1
      %vm3360 = vcmp.eq.s32.totalorder %v3352, 1
      %vm3361 = vcmp.eq.s32.totalorder %v3353, 1
      %vm3362 = vcmp.eq.s32.totalorder %v3354, 1
      %vm3363 = vcmp.eq.s32.totalorder %v3355, 1
      %vm3364 = vcmp.eq.s32.totalorder %v3356, 1
      %vm3365 = vcmp.eq.s32.totalorder %v3357, 1
      %vm3366 = vcmp.eq.s32.totalorder %v3358, 1
      %vm3367 = vmpackc.low %vm3360, %vm3359
      %vm3368 = vmpackc.low %vm3362, %vm3361
      %vm3369 = vmpackc.low %vm3364, %vm3363
      %vm3370 = vmpackc.low %vm3366, %vm3365
      %v3371 = vsel %vm3367, 65537, 0
      %v3372 = vsel %vm3368, 65537, 0
      %v3373 = vsel %vm3369, 65537, 0
      %v3374 = vsel %vm3370, 65537, 0
      %3375 = vrot.lane.b32.xlu0 %v3371, 8
      %v3376 = vpop.permute.xlu0 %3375
      %3377 = vrot.lane.b32.xlu0 %v3372, 8
      %v3378 = vpop.permute.xlu0 %3377
      %3379 = vrot.lane.b32.xlu0 %v3373, 8
      %v3380 = vpop.permute.xlu0 %3379
      %3381 = vrot.lane.b32.xlu0 %v3374, 8
      %v3382 = vpop.permute.xlu0 %3381
      %v3383 = vrot.slane %v3376, 4
      %v3384 = vrot.slane %v3378, 4
      %v3385 = vrot.slane %v3380, 4
      %v3386 = vrot.slane %v3382, 4
      %vm3387 = vcmask 64512
      %v3388 = vsel %vm3387, %v3383, %v3376
      %v3389 = vsel %vm587, %v3383, %v3384
      %v3390 = vsel %vm3387, %v3389, %v3378
      %v3391 = vsel %vm587, %v3384, %v3385
      %v3392 = vsel %vm3387, %v3391, %v3380
      %v3393 = vsel %vm587, %v3385, %v3386
      %v3394 = vsel %vm3387, %v3393, %v3382
      %v3395 = vunpack.c.l.b16 %v3388
      %v3396 = vunpack.c.h.b16 %v3388
      %v3397 = vunpack.c.l.b16 0
      %v3398 = vunpack.c.h.b16 0
      %vm3399 = vcmp.ne.s32.totalorder %v3395, %v3397
      %vm3400 = vcmp.ne.s32.totalorder %v3396, %v3398
      %vm3401 = vmpackc.low %vm3400, %vm3399
      %v3402 = vunpack.c.l.b16 %v3390
      %v3403 = vunpack.c.h.b16 %v3390
      %v3404 = vunpack.c.l.b16 0
      %v3405 = vunpack.c.h.b16 0
      %vm3406 = vcmp.ne.s32.totalorder %v3402, %v3404
      %vm3407 = vcmp.ne.s32.totalorder %v3403, %v3405
      %vm3408 = vmpackc.low %vm3407, %vm3406
      %v3409 = vunpack.c.l.b16 %v3392
      %v3410 = vunpack.c.h.b16 %v3392
      %v3411 = vunpack.c.l.b16 0
      %v3412 = vunpack.c.h.b16 0
      %vm3413 = vcmp.ne.s32.totalorder %v3409, %v3411
      %vm3414 = vcmp.ne.s32.totalorder %v3410, %v3412
      %vm3415 = vmpackc.low %vm3414, %vm3413
      %v3416 = vunpack.c.l.b16 %v3394
      %v3417 = vunpack.c.h.b16 %v3394
      %v3418 = vunpack.c.l.b16 0
      %v3419 = vunpack.c.h.b16 0
      %vm3420 = vcmp.ne.s32.totalorder %v3416, %v3418
      %vm3421 = vcmp.ne.s32.totalorder %v3417, %v3419
      %vm3422 = vmpackc.low %vm3421, %vm3420
      %v3423 = vunpack.c.l.b16 %v3386
      %v3424 = vunpack.c.h.b16 %v3386
      %v3425 = vunpack.c.l.b16 0
      %v3426 = vunpack.c.h.b16 0
      %vm3427 = vcmp.ne.s32.totalorder %v3423, %v3425
      %vm3428 = vcmp.ne.s32.totalorder %v3424, %v3426
      %vm3429 = vmpackc.low %vm3428, %vm3427
      %v3430 = vsel %vm3401, %v3297, 0
      %v3431 = vsel %vm3408, %v3298, 0
      %v3432 = vsel %vm3415, %v3299, 0
      %v3433 = vsel %vm3422, %v3300, 0
      %v3434 = vsel %vm3429, %v3341, 0
      %v3435 = vsel %vm3401, %v3301, 0
      %v3436 = vsel %vm3408, %v3302, 0
      %v3437 = vsel %vm3415, %v3303, 0
      %v3438 = vsel %vm3422, %v3304, 0
      %v3439 = vsel %vm3429, %v3342, 0
      %v3440 = vld [vmem:[#allocation4 + $0x4] sm:$0xff]
      %v3441 = vld [vmem:[#allocation4 + $0xc] sm:$0xff]
      %v3442 = vld [vmem:[#allocation4 + $0x14] sm:$0xff]
      %v3443 = vld [vmem:[#allocation4 + $0x1c] sm:$0xff]
      %v3444 = vld [vmem:[#allocation4 + $0x30] sm:$0xff]
      %v3445 = vld [vmem:[#allocation4 + $0x38] sm:$0xff]
      %v3446 = vld [vmem:[#allocation4 + $0x40] sm:$0xff]
      %v3447 = vld [vmem:[#allocation4 + $0x48] sm:$0xff]
      %v3448 = vsel %vm3329, %v3440, 0
      %v3449 = vsel %vm3330, %v3441, 0
      %v3450 = vsel %vm3331, %v3442, 0
      %v3451 = vsel %vm3332, %v3443, 0
      %v3452 = vsel %vm3329, %v3444, 0
      %v3453 = vsel %vm3330, %v3445, 0
      %v3454 = vsel %vm3331, %v3446, 0
      %v3455 = vsel %vm3332, %v3447, 0
      %v3456 = vld [vmem:[#allocation4 + $0x24] sm:$0xf]
      %v3457 = vld [vmem:[#allocation4 + $0x50] sm:$0xf]
      %v3458 = vsel %vm3401, %v3440, 0
      %v3459 = vsel %vm3408, %v3441, 0
      %v3460 = vsel %vm3415, %v3442, 0
      %v3461 = vsel %vm3422, %v3443, 0
      %v3462 = vsel %vm3429, %v3456, 0
      %v3463 = vsel %vm3401, %v3444, 0
      %v3464 = vsel %vm3408, %v3445, 0
      %v3465 = vsel %vm3415, %v3446, 0
      %v3466 = vsel %vm3422, %v3447, 0
      %v3467 = vsel %vm3429, %v3457, 0
      %v3468 = vld [vmem:[#allocation4 + $0x20] sm:$0xff]
      %v3469 = vld [vmem:[#allocation4 + $0x4c] sm:$0xff]
      %v3470 = vsel %vm3329, %v3298, 0
      %v3471 = vsel %vm3330, %v3299, 0
      %v3472 = vsel %vm3331, %v3300, 0
      %v3473 = vsel %vm3332, %v3468, 0
      %v3474 = vsel %vm3329, %v3302, 0
      %v3475 = vsel %vm3330, %v3303, 0
      %v3476 = vsel %vm3331, %v3304, 0
      %v3477 = vsel %vm3332, %v3469, 0
      %v3478 = vld [vmem:[#allocation4 + $0x28] sm:$0xf]
      %v3479 = vld [vmem:[#allocation4 + $0x54] sm:$0xf]
      %v3480 = vsel %vm3401, %v3298, 0
      %v3481 = vsel %vm3408, %v3299, 0
      %v3482 = vsel %vm3415, %v3300, 0
      %v3483 = vsel %vm3422, %v3468, 0
      %v3484 = vsel %vm3429, %v3478, 0
      %v3485 = vsel %vm3401, %v3302, 0
      %v3486 = vsel %vm3408, %v3303, 0
      %v3487 = vsel %vm3415, %v3304, 0
      %v3488 = vsel %vm3422, %v3469, 0
      %v3489 = vsel %vm3429, %v3479, 0
      %v3498 = vunpack.c.l.b16 %v3333
      %v3499 = vunpack.c.h.b16 %v3333
      %v3500 = vunpack.c.l.b16 %v3334
      %v3501 = vunpack.c.h.b16 %v3334
      %v3502 = vunpack.c.l.b16 %v3335
      %v3503 = vunpack.c.h.b16 %v3335
      %v3504 = vunpack.c.l.b16 %v3336
      %v3505 = vunpack.c.h.b16 %v3336
      %v3506 = vunpack.c.l.b16 %v3337
      %v3507 = vunpack.c.h.b16 %v3337
      %v3508 = vunpack.c.l.b16 %v3338
      %v3509 = vunpack.c.h.b16 %v3338
      %v3510 = vunpack.c.l.b16 %v3339
      %v3511 = vunpack.c.h.b16 %v3339
      %v3512 = vunpack.c.l.b16 %v3340
      %v3513 = vunpack.c.h.b16 %v3340
      %v3514 = vpack.c.b16 %v3506, %v3498
      %v3515 = vpack.c.b16 %v3507, %v3499
      %v3516 = vpack.c.b16 %v3508, %v3500
      %v3517 = vpack.c.b16 %v3509, %v3501
      %v3518 = vpack.c.b16 %v3510, %v3502
      %v3519 = vpack.c.b16 %v3511, %v3503
      %v3520 = vpack.c.b16 %v3512, %v3504
      %v3521 = vpack.c.b16 %v3513, %v3505
      %v3540 = vunpack.c.l.b16 %v3297
      %v3541 = vunpack.c.h.b16 %v3297
      %v3542 = vunpack.c.l.b16 %v3298
      %v3543 = vunpack.c.h.b16 %v3298
      %v3544 = vunpack.c.l.b16 %v3299
      %v3545 = vunpack.c.h.b16 %v3299
      %v3546 = vunpack.c.l.b16 %v3300
      %v3547 = vunpack.c.h.b16 %v3300
      %v3548 = vunpack.c.l.b16 %v3341
      %v3549 = vunpack.c.l.b16 %v3301
      %v3550 = vunpack.c.h.b16 %v3301
      %v3551 = vunpack.c.l.b16 %v3302
      %v3552 = vunpack.c.h.b16 %v3302
      %v3553 = vunpack.c.l.b16 %v3303
      %v3554 = vunpack.c.h.b16 %v3303
      %v3555 = vunpack.c.l.b16 %v3304
      %v3556 = vunpack.c.h.b16 %v3304
      %v3557 = vunpack.c.l.b16 %v3342
      %v3558 = vpack.c.b16 %v3549, %v3540
      %v3559 = vpack.c.b16 %v3550, %v3541
      %v3560 = vpack.c.b16 %v3551, %v3542
      %v3561 = vpack.c.b16 %v3552, %v3543
      %v3562 = vpack.c.b16 %v3553, %v3544
      %v3563 = vpack.c.b16 %v3554, %v3545
      %v3564 = vpack.c.b16 %v3555, %v3546
      %v3565 = vpack.c.b16 %v3556, %v3547
      %v3566 = vpack.c.b16 %v3557, %v3548
      %3567 = vrot.lane.b32.xlu0 %v3558, 124
      %v3568 = vpop.permute.xlu0 %3567
      %3569 = vrot.lane.b32.xlu0 %v3559, 124
      %v3570 = vpop.permute.xlu0 %3569
      %3571 = vrot.lane.b32.xlu0 %v3560, 124
      %v3572 = vpop.permute.xlu0 %3571
      %3573 = vrot.lane.b32.xlu0 %v3561, 124
      %v3574 = vpop.permute.xlu0 %3573
      %3575 = vrot.lane.b32.xlu0 %v3562, 124
      %v3576 = vpop.permute.xlu0 %3575
      %3577 = vrot.lane.b32.xlu0 %v3563, 124
      %v3578 = vpop.permute.xlu0 %3577
      %3579 = vrot.lane.b32.xlu0 %v3564, 124
      %v3580 = vpop.permute.xlu0 %3579
      %3581 = vrot.lane.b32.xlu0 %v3565, 124
      %v3582 = vpop.permute.xlu0 %3581
      %3583 = vrot.lane.b32.xlu0 %v3566, 124
      %v3584 = vpop.permute.xlu0 %3583
      %v3585 = vsel %vm2535, %v3568, %v3570
      %v3586 = vsel %vm2535, %v3570, %v3572
      %v3587 = vsel %vm2535, %v3572, %v3574
      %v3588 = vsel %vm2535, %v3574, %v3576
      %v3589 = vsel %vm2535, %v3576, %v3578
      %v3590 = vsel %vm2535, %v3578, %v3580
      %v3591 = vsel %vm2535, %v3580, %v3582
      %v3592 = vsel %vm2535, %v3582, %v3584
      %v3611 = vunpack.c.l.b16 %v3430
      %v3612 = vunpack.c.h.b16 %v3430
      %v3613 = vunpack.c.l.b16 %v3431
      %v3614 = vunpack.c.h.b16 %v3431
      %v3615 = vunpack.c.l.b16 %v3432
      %v3616 = vunpack.c.h.b16 %v3432
      %v3617 = vunpack.c.l.b16 %v3433
      %v3618 = vunpack.c.h.b16 %v3433
      %v3619 = vunpack.c.l.b16 %v3434
      %v3620 = vunpack.c.l.b16 %v3435
      %v3621 = vunpack.c.h.b16 %v3435
      %v3622 = vunpack.c.l.b16 %v3436
      %v3623 = vunpack.c.h.b16 %v3436
      %v3624 = vunpack.c.l.b16 %v3437
      %v3625 = vunpack.c.h.b16 %v3437
      %v3626 = vunpack.c.l.b16 %v3438
      %v3627 = vunpack.c.h.b16 %v3438
      %v3628 = vunpack.c.l.b16 %v3439
      %v3629 = vpack.c.b16 %v3620, %v3611
      %v3630 = vpack.c.b16 %v3621, %v3612
      %v3631 = vpack.c.b16 %v3622, %v3613
      %v3632 = vpack.c.b16 %v3623, %v3614
      %v3633 = vpack.c.b16 %v3624, %v3615
      %v3634 = vpack.c.b16 %v3625, %v3616
      %v3635 = vpack.c.b16 %v3626, %v3617
      %v3636 = vpack.c.b16 %v3627, %v3618
      %v3637 = vpack.c.b16 %v3628, %v3619
      %3638 = vrot.lane.b32.xlu0 %v3629, 120
      %v3639 = vpop.permute.xlu0 %3638
      %3640 = vrot.lane.b32.xlu0 %v3630, 120
      %v3641 = vpop.permute.xlu0 %3640
      %3642 = vrot.lane.b32.xlu0 %v3631, 120
      %v3643 = vpop.permute.xlu0 %3642
      %3644 = vrot.lane.b32.xlu0 %v3632, 120
      %v3645 = vpop.permute.xlu0 %3644
      %3646 = vrot.lane.b32.xlu0 %v3633, 120
      %v3647 = vpop.permute.xlu0 %3646
      %3648 = vrot.lane.b32.xlu0 %v3634, 120
      %v3649 = vpop.permute.xlu0 %3648
      %3650 = vrot.lane.b32.xlu0 %v3635, 120
      %v3651 = vpop.permute.xlu0 %3650
      %3652 = vrot.lane.b32.xlu0 %v3636, 120
      %v3653 = vpop.permute.xlu0 %3652
      %3654 = vrot.lane.b32.xlu0 %v3637, 120
      %v3655 = vpop.permute.xlu0 %3654
      %vm3656 = vcmask 982016
      %v3657 = vsel %vm3656, %v3639, %v3641
      %v3658 = vsel %vm3656, %v3641, %v3643
      %v3659 = vsel %vm3656, %v3643, %v3645
      %v3660 = vsel %vm3656, %v3645, %v3647
      %v3661 = vsel %vm3656, %v3647, %v3649
      %v3662 = vsel %vm3656, %v3649, %v3651
      %v3663 = vsel %vm3656, %v3651, %v3653
      %v3664 = vsel %vm3656, %v3653, %v3655
      %v3681 = vunpack.c.l.b16 %v3448
      %v3682 = vunpack.c.h.b16 %v3448
      %v3683 = vunpack.c.l.b16 %v3449
      %v3684 = vunpack.c.h.b16 %v3449
      %v3685 = vunpack.c.l.b16 %v3450
      %v3686 = vunpack.c.h.b16 %v3450
      %v3687 = vunpack.c.l.b16 %v3451
      %v3688 = vunpack.c.h.b16 %v3451
      %v3689 = vunpack.c.l.b16 %v3452
      %v3690 = vunpack.c.h.b16 %v3452
      %v3691 = vunpack.c.l.b16 %v3453
      %v3692 = vunpack.c.h.b16 %v3453
      %v3693 = vunpack.c.l.b16 %v3454
      %v3694 = vunpack.c.h.b16 %v3454
      %v3695 = vunpack.c.l.b16 %v3455
      %v3696 = vunpack.c.h.b16 %v3455
      %v3697 = vpack.c.b16 %v3689, %v3681
      %v3698 = vpack.c.b16 %v3690, %v3682
      %v3699 = vpack.c.b16 %v3691, %v3683
      %v3700 = vpack.c.b16 %v3692, %v3684
      %v3701 = vpack.c.b16 %v3693, %v3685
      %v3702 = vpack.c.b16 %v3694, %v3686
      %v3703 = vpack.c.b16 %v3695, %v3687
      %v3704 = vpack.c.b16 %v3696, %v3688
      %v3723 = vunpack.c.l.b16 %v3440
      %v3724 = vunpack.c.h.b16 %v3440
      %v3725 = vunpack.c.l.b16 %v3441
      %v3726 = vunpack.c.h.b16 %v3441
      %v3727 = vunpack.c.l.b16 %v3442
      %v3728 = vunpack.c.h.b16 %v3442
      %v3729 = vunpack.c.l.b16 %v3443
      %v3730 = vunpack.c.h.b16 %v3443
      %v3731 = vunpack.c.l.b16 %v3456
      %v3732 = vunpack.c.l.b16 %v3444
      %v3733 = vunpack.c.h.b16 %v3444
      %v3734 = vunpack.c.l.b16 %v3445
      %v3735 = vunpack.c.h.b16 %v3445
      %v3736 = vunpack.c.l.b16 %v3446
      %v3737 = vunpack.c.h.b16 %v3446
      %v3738 = vunpack.c.l.b16 %v3447
      %v3739 = vunpack.c.h.b16 %v3447
      %v3740 = vunpack.c.l.b16 %v3457
      %v3741 = vpack.c.b16 %v3732, %v3723
      %v3742 = vpack.c.b16 %v3733, %v3724
      %v3743 = vpack.c.b16 %v3734, %v3725
      %v3744 = vpack.c.b16 %v3735, %v3726
      %v3745 = vpack.c.b16 %v3736, %v3727
      %v3746 = vpack.c.b16 %v3737, %v3728
      %v3747 = vpack.c.b16 %v3738, %v3729
      %v3748 = vpack.c.b16 %v3739, %v3730
      %v3749 = vpack.c.b16 %v3740, %v3731
      %3750 = vrot.lane.b32.xlu0 %v3741, 124
      %v3751 = vpop.permute.xlu0 %3750
      %3752 = vrot.lane.b32.xlu0 %v3742, 124
      %v3753 = vpop.permute.xlu0 %3752
      %3754 = vrot.lane.b32.xlu0 %v3743, 124
      %v3755 = vpop.permute.xlu0 %3754
      %3756 = vrot.lane.b32.xlu0 %v3744, 124
      %v3757 = vpop.permute.xlu0 %3756
      %3758 = vrot.lane.b32.xlu0 %v3745, 124
      %v3759 = vpop.permute.xlu0 %3758
      %3760 = vrot.lane.b32.xlu0 %v3746, 124
      %v3761 = vpop.permute.xlu0 %3760
      %3762 = vrot.lane.b32.xlu0 %v3747, 124
      %v3763 = vpop.permute.xlu0 %3762
      %3764 = vrot.lane.b32.xlu0 %v3748, 124
      %v3765 = vpop.permute.xlu0 %3764
      %3766 = vrot.lane.b32.xlu0 %v3749, 124
      %v3767 = vpop.permute.xlu0 %3766
      %v3768 = vsel %vm2535, %v3751, %v3753
      %v3769 = vsel %vm2535, %v3753, %v3755
      %v3770 = vsel %vm2535, %v3755, %v3757
      %v3771 = vsel %vm2535, %v3757, %v3759
      %v3772 = vsel %vm2535, %v3759, %v3761
      %v3773 = vsel %vm2535, %v3761, %v3763
      %v3774 = vsel %vm2535, %v3763, %v3765
      %v3775 = vsel %vm2535, %v3765, %v3767
      %v3794 = vunpack.c.l.b16 %v3458
      %v3795 = vunpack.c.h.b16 %v3458
      %v3796 = vunpack.c.l.b16 %v3459
      %v3797 = vunpack.c.h.b16 %v3459
      %v3798 = vunpack.c.l.b16 %v3460
      %v3799 = vunpack.c.h.b16 %v3460
      %v3800 = vunpack.c.l.b16 %v3461
      %v3801 = vunpack.c.h.b16 %v3461
      %v3802 = vunpack.c.l.b16 %v3462
      %v3803 = vunpack.c.l.b16 %v3463
      %v3804 = vunpack.c.h.b16 %v3463
      %v3805 = vunpack.c.l.b16 %v3464
      %v3806 = vunpack.c.h.b16 %v3464
      %v3807 = vunpack.c.l.b16 %v3465
      %v3808 = vunpack.c.h.b16 %v3465
      %v3809 = vunpack.c.l.b16 %v3466
      %v3810 = vunpack.c.h.b16 %v3466
      %v3811 = vunpack.c.l.b16 %v3467
      %v3812 = vpack.c.b16 %v3803, %v3794
      %v3813 = vpack.c.b16 %v3804, %v3795
      %v3814 = vpack.c.b16 %v3805, %v3796
      %v3815 = vpack.c.b16 %v3806, %v3797
      %v3816 = vpack.c.b16 %v3807, %v3798
      %v3817 = vpack.c.b16 %v3808, %v3799
      %v3818 = vpack.c.b16 %v3809, %v3800
      %v3819 = vpack.c.b16 %v3810, %v3801
      %v3820 = vpack.c.b16 %v3811, %v3802
      %3821 = vrot.lane.b32.xlu0 %v3812, 120
      %v3822 = vpop.permute.xlu0 %3821
      %3823 = vrot.lane.b32.xlu0 %v3813, 120
      %v3824 = vpop.permute.xlu0 %3823
      %3825 = vrot.lane.b32.xlu0 %v3814, 120
      %v3826 = vpop.permute.xlu0 %3825
      %3827 = vrot.lane.b32.xlu0 %v3815, 120
      %v3828 = vpop.permute.xlu0 %3827
      %3829 = vrot.lane.b32.xlu0 %v3816, 120
      %v3830 = vpop.permute.xlu0 %3829
      %3831 = vrot.lane.b32.xlu0 %v3817, 120
      %v3832 = vpop.permute.xlu0 %3831
      %3833 = vrot.lane.b32.xlu0 %v3818, 120
      %v3834 = vpop.permute.xlu0 %3833
      %3835 = vrot.lane.b32.xlu0 %v3819, 120
      %v3836 = vpop.permute.xlu0 %3835
      %3837 = vrot.lane.b32.xlu0 %v3820, 120
      %v3838 = vpop.permute.xlu0 %3837
      %v3839 = vsel %vm3656, %v3822, %v3824
      %v3840 = vsel %vm3656, %v3824, %v3826
      %v3841 = vsel %vm3656, %v3826, %v3828
      %v3842 = vsel %vm3656, %v3828, %v3830
      %v3843 = vsel %vm3656, %v3830, %v3832
      %v3844 = vsel %vm3656, %v3832, %v3834
      %v3845 = vsel %vm3656, %v3834, %v3836
      %v3846 = vsel %vm3656, %v3836, %v3838
      %v3863 = vunpack.c.l.b16 %v3470
      %v3864 = vunpack.c.h.b16 %v3470
      %v3865 = vunpack.c.l.b16 %v3471
      %v3866 = vunpack.c.h.b16 %v3471
      %v3867 = vunpack.c.l.b16 %v3472
      %v3868 = vunpack.c.h.b16 %v3472
      %v3869 = vunpack.c.l.b16 %v3473
      %v3870 = vunpack.c.h.b16 %v3473
      %v3871 = vunpack.c.l.b16 %v3474
      %v3872 = vunpack.c.h.b16 %v3474
      %v3873 = vunpack.c.l.b16 %v3475
      %v3874 = vunpack.c.h.b16 %v3475
      %v3875 = vunpack.c.l.b16 %v3476
      %v3876 = vunpack.c.h.b16 %v3476
      %v3877 = vunpack.c.l.b16 %v3477
      %v3878 = vunpack.c.h.b16 %v3477
      %v3879 = vpack.c.b16 %v3871, %v3863
      %v3880 = vpack.c.b16 %v3872, %v3864
      %v3881 = vpack.c.b16 %v3873, %v3865
      %v3882 = vpack.c.b16 %v3874, %v3866
      %v3883 = vpack.c.b16 %v3875, %v3867
      %v3884 = vpack.c.b16 %v3876, %v3868
      %v3885 = vpack.c.b16 %v3877, %v3869
      %v3886 = vpack.c.b16 %v3878, %v3870
      %v3899 = vunpack.c.l.b16 %v3468
      %v3900 = vunpack.c.h.b16 %v3468
      %v3901 = vunpack.c.l.b16 %v3478
      %v3902 = vunpack.c.l.b16 %v3469
      %v3903 = vunpack.c.h.b16 %v3469
      %v3904 = vunpack.c.l.b16 %v3479
      %v3905 = vpack.c.b16 %v3902, %v3899
      %v3906 = vpack.c.b16 %v3903, %v3900
      %v3907 = vpack.c.b16 %v3904, %v3901
      %3908 = vrot.lane.b32.xlu0 %v3905, 124
      %v3909 = vpop.permute.xlu0 %3908
      %3910 = vrot.lane.b32.xlu0 %v3906, 124
      %v3911 = vpop.permute.xlu0 %3910
      %3912 = vrot.lane.b32.xlu0 %v3907, 124
      %v3913 = vpop.permute.xlu0 %3912
      %v3914 = vsel %vm2535, %v3582, %v3909
      %v3915 = vsel %vm2535, %v3909, %v3911
      %v3916 = vsel %vm2535, %v3911, %v3913
      %v3930 = vunpack.c.l.b16 %v3480
      %v3931 = vunpack.c.h.b16 %v3480
      %v3932 = vunpack.c.l.b16 %v3481
      %v3933 = vunpack.c.h.b16 %v3481
      %v3934 = vunpack.c.l.b16 %v3482
      %v3935 = vunpack.c.h.b16 %v3482
      %v3936 = vunpack.c.l.b16 %v3483
      %v3937 = vunpack.c.h.b16 %v3483
      %v3938 = vunpack.c.l.b16 %v3484
      %v3939 = vunpack.c.l.b16 %v3485
      %v3940 = vunpack.c.h.b16 %v3485
      %v3941 = vunpack.c.l.b16 %v3486
      %v3942 = vunpack.c.h.b16 %v3486
      %v3943 = vunpack.c.l.b16 %v3487
      %v3944 = vunpack.c.h.b16 %v3487
      %v3945 = vunpack.c.l.b16 %v3488
      %v3946 = vunpack.c.h.b16 %v3488
      %v3947 = vunpack.c.l.b16 %v3489
      %v3948 = vpack.c.b16 %v3939, %v3930
      %v3949 = vpack.c.b16 %v3940, %v3931
      %v3950 = vpack.c.b16 %v3941, %v3932
      %v3951 = vpack.c.b16 %v3942, %v3933
      %v3952 = vpack.c.b16 %v3943, %v3934
      %v3953 = vpack.c.b16 %v3944, %v3935
      %v3954 = vpack.c.b16 %v3945, %v3936
      %v3955 = vpack.c.b16 %v3946, %v3937
      %v3956 = vpack.c.b16 %v3947, %v3938
      %3957 = vrot.lane.b32.xlu0 %v3948, 120
      %v3958 = vpop.permute.xlu0 %3957
      %3959 = vrot.lane.b32.xlu0 %v3949, 120
      %v3960 = vpop.permute.xlu0 %3959
      %3961 = vrot.lane.b32.xlu0 %v3950, 120
      %v3962 = vpop.permute.xlu0 %3961
      %3963 = vrot.lane.b32.xlu0 %v3951, 120
      %v3964 = vpop.permute.xlu0 %3963
      %3965 = vrot.lane.b32.xlu0 %v3952, 120
      %v3966 = vpop.permute.xlu0 %3965
      %3967 = vrot.lane.b32.xlu0 %v3953, 120
      %v3968 = vpop.permute.xlu0 %3967
      %3969 = vrot.lane.b32.xlu0 %v3954, 120
      %v3970 = vpop.permute.xlu0 %3969
      %3971 = vrot.lane.b32.xlu0 %v3955, 120
      %v3972 = vpop.permute.xlu0 %3971
      %3973 = vrot.lane.b32.xlu0 %v3956, 120
      %v3974 = vpop.permute.xlu0 %3973
      %v3975 = vsel %vm3656, %v3958, %v3960
      %v3976 = vsel %vm3656, %v3960, %v3962
      %v3977 = vsel %vm3656, %v3962, %v3964
      %v3978 = vsel %vm3656, %v3964, %v3966
      %v3979 = vsel %vm3656, %v3966, %v3968
      %v3980 = vsel %vm3656, %v3968, %v3970
      %v3981 = vsel %vm3656, %v3970, %v3972
      %v3982 = vsel %vm3656, %v3972, %v3974
      %v3991 = vld [vmem:[%s7] sm:$0xff]
      %v3992 = vld [vmem:[%s7 + $0x8] sm:$0xff]
      %v3995 = vunpack.c.l.b16 %v3991
      %v3996 = vunpack.c.h.b16 %v3991
      %v3997 = vunpack.c.l.b16 %v3992
      %v3998 = vunpack.c.h.b16 %v3992
      %v3999 = vpack.c.b16 %v3997, %v3995
      %v4000 = vpack.c.b16 %v3998, %v3996
      %v4003 = vsel %vm1690, %v4000, 0
      %4005 = vmatpush.bf16.msra.mxu0 %v3587
      %4006 = vmatpush.bf16.msra.mxu0 %v3879
      %4007 = vmatpush.bf16.msra.mxu0 %v3839
      %4008 = vmatpush.bf16.msra.mxu0 %v3768
      %4009 = vmatpush.bf16.msra.mxu0 %v3697
      %4010 = vmatpush.bf16.msra.mxu0 %v3657
      %4011 = vmatpush.bf16.msra.mxu0 %v3585
      %4012 = vmatpush.bf16.msra.mxu0 %v3514
      %4013 = vmatmul.bf16.gmra.mxu0 %v3999
      %v4014 = vpop.f32.mrf.mxu0
      %v4015 = vadd.f32 0.0, %v4014
      %v4016 = vpop.f32.mrf.mxu0
      %v4017 = vadd.f32 0.0, %v4016
      %4018 = vdwg.mxu0
      %4019 = vmatpush.bf16.msra.mxu0 0
      %4020 = vmatpush.bf16.msra.mxu0 0
      %4021 = vmatpush.bf16.msra.mxu0 0
      %4022 = vmatpush.bf16.msra.mxu0 0
      %4023 = vmatpush.bf16.msra.mxu0 0
      %4024 = vmatpush.bf16.msra.mxu0 0
      %4025 = vmatpush.bf16.msra.mxu0 0
      %4026 = vmatpush.bf16.msra.mxu0 %v3975
      %4027 = vmatmul.bf16.gmra.mxu0 %v4003
      %v4028 = vpop.f32.mrf.mxu0
      %v4029 = vadd.f32 %v4015, %v4028
      %v4030 = vpop.f32.mrf.mxu0
      %v4031 = vadd.f32 %v4017, %v4030
      %4032 = vdwg.mxu0
      %4033 = vmatpush.bf16.msra.mxu0 %v3588
      %4034 = vmatpush.bf16.msra.mxu0 %v3880
      %4035 = vmatpush.bf16.msra.mxu0 %v3840
      %4036 = vmatpush.bf16.msra.mxu0 %v3769
      %4037 = vmatpush.bf16.msra.mxu0 %v3698
      %4038 = vmatpush.bf16.msra.mxu0 %v3658
      %4039 = vmatpush.bf16.msra.mxu0 %v3586
      %4040 = vmatpush.bf16.msra.mxu0 %v3515
      %4041 = vmatmul.bf16.gmra.mxu0 %v3999
      %v4042 = vpop.f32.mrf.mxu0
      %v4043 = vadd.f32 0.0, %v4042
      %v4044 = vpop.f32.mrf.mxu0
      %v4045 = vadd.f32 0.0, %v4044
      %4046 = vdwg.mxu0
      %4047 = vmatpush.bf16.msra.mxu0 0
      %4048 = vmatpush.bf16.msra.mxu0 0
      %4049 = vmatpush.bf16.msra.mxu0 0
      %4050 = vmatpush.bf16.msra.mxu0 0
      %4051 = vmatpush.bf16.msra.mxu0 0
      %4052 = vmatpush.bf16.msra.mxu0 0
      %4053 = vmatpush.bf16.msra.mxu0 0
      %4054 = vmatpush.bf16.msra.mxu0 %v3976
      %4055 = vmatmul.bf16.gmra.mxu0 %v4003
      %v4056 = vpop.f32.mrf.mxu0
      %v4057 = vadd.f32 %v4043, %v4056
      %v4058 = vpop.f32.mrf.mxu0
      %v4059 = vadd.f32 %v4045, %v4058
      %4060 = vdwg.mxu0
      %4061 = vmatpush.bf16.msra.mxu0 %v3589
      %4062 = vmatpush.bf16.msra.mxu0 %v3881
      %4063 = vmatpush.bf16.msra.mxu0 %v3841
      %4064 = vmatpush.bf16.msra.mxu0 %v3770
      %4065 = vmatpush.bf16.msra.mxu0 %v3699
      %4066 = vmatpush.bf16.msra.mxu0 %v3659
      %4067 = vmatpush.bf16.msra.mxu0 %v3587
      %4068 = vmatpush.bf16.msra.mxu0 %v3516
      %4069 = vmatmul.bf16.gmra.mxu0 %v3999
      %v4070 = vpop.f32.mrf.mxu0
      %v4071 = vadd.f32 0.0, %v4070
      %v4072 = vpop.f32.mrf.mxu0
      %v4073 = vadd.f32 0.0, %v4072
      %4074 = vdwg.mxu0
      %4075 = vmatpush.bf16.msra.mxu0 0
      %4076 = vmatpush.bf16.msra.mxu0 0
      %4077 = vmatpush.bf16.msra.mxu0 0
      %4078 = vmatpush.bf16.msra.mxu0 0
      %4079 = vmatpush.bf16.msra.mxu0 0
      %4080 = vmatpush.bf16.msra.mxu0 0
      %4081 = vmatpush.bf16.msra.mxu0 0
      %4082 = vmatpush.bf16.msra.mxu0 %v3977
      %4083 = vmatmul.bf16.gmra.mxu0 %v4003
      %v4084 = vpop.f32.mrf.mxu0
      %v4085 = vadd.f32 %v4071, %v4084
      %v4086 = vpop.f32.mrf.mxu0
      %v4087 = vadd.f32 %v4073, %v4086
      %4088 = vdwg.mxu0
      %4089 = vmatpush.bf16.msra.mxu0 %v3590
      %4090 = vmatpush.bf16.msra.mxu0 %v3882
      %4091 = vmatpush.bf16.msra.mxu0 %v3842
      %4092 = vmatpush.bf16.msra.mxu0 %v3771
      %4093 = vmatpush.bf16.msra.mxu0 %v3700
      %4094 = vmatpush.bf16.msra.mxu0 %v3660
      %4095 = vmatpush.bf16.msra.mxu0 %v3588
      %4096 = vmatpush.bf16.msra.mxu0 %v3517
      %4097 = vmatmul.bf16.gmra.mxu0 %v3999
      %v4098 = vpop.f32.mrf.mxu0
      %v4099 = vadd.f32 0.0, %v4098
      %v4100 = vpop.f32.mrf.mxu0
      %v4101 = vadd.f32 0.0, %v4100
      %4102 = vdwg.mxu0
      %4103 = vmatpush.bf16.msra.mxu0 0
      %4104 = vmatpush.bf16.msra.mxu0 0
      %4105 = vmatpush.bf16.msra.mxu0 0
      %4106 = vmatpush.bf16.msra.mxu0 0
      %4107 = vmatpush.bf16.msra.mxu0 0
      %4108 = vmatpush.bf16.msra.mxu0 0
      %4109 = vmatpush.bf16.msra.mxu0 0
      %4110 = vmatpush.bf16.msra.mxu0 %v3978
      %4111 = vmatmul.bf16.gmra.mxu0 %v4003
      %v4112 = vpop.f32.mrf.mxu0
      %v4113 = vadd.f32 %v4099, %v4112
      %v4114 = vpop.f32.mrf.mxu0
      %v4115 = vadd.f32 %v4101, %v4114
      %4116 = vdwg.mxu0
      %4117 = vmatpush.bf16.msra.mxu0 %v3591
      %4118 = vmatpush.bf16.msra.mxu0 %v3883
      %4119 = vmatpush.bf16.msra.mxu0 %v3843
      %4120 = vmatpush.bf16.msra.mxu0 %v3772
      %4121 = vmatpush.bf16.msra.mxu0 %v3701
      %4122 = vmatpush.bf16.msra.mxu0 %v3661
      %4123 = vmatpush.bf16.msra.mxu0 %v3589
      %4124 = vmatpush.bf16.msra.mxu0 %v3518
      %4125 = vmatmul.bf16.gmra.mxu0 %v3999
      %v4126 = vpop.f32.mrf.mxu0
      %v4127 = vadd.f32 0.0, %v4126
      %v4128 = vpop.f32.mrf.mxu0
      %v4129 = vadd.f32 0.0, %v4128
      %4130 = vdwg.mxu0
      %4131 = vmatpush.bf16.msra.mxu0 0
      %4132 = vmatpush.bf16.msra.mxu0 0
      %4133 = vmatpush.bf16.msra.mxu0 0
      %4134 = vmatpush.bf16.msra.mxu0 0
      %4135 = vmatpush.bf16.msra.mxu0 0
      %4136 = vmatpush.bf16.msra.mxu0 0
      %4137 = vmatpush.bf16.msra.mxu0 0
      %4138 = vmatpush.bf16.msra.mxu0 %v3979
      %4139 = vmatmul.bf16.gmra.mxu0 %v4003
      %v4140 = vpop.f32.mrf.mxu0
      %v4141 = vadd.f32 %v4127, %v4140
      %v4142 = vpop.f32.mrf.mxu0
      %v4143 = vadd.f32 %v4129, %v4142
      %4144 = vdwg.mxu0
      %4145 = vmatpush.bf16.msra.mxu0 %v3914
      %4146 = vmatpush.bf16.msra.mxu0 %v3884
      %4147 = vmatpush.bf16.msra.mxu0 %v3844
      %4148 = vmatpush.bf16.msra.mxu0 %v3773
      %4149 = vmatpush.bf16.msra.mxu0 %v3702
      %4150 = vmatpush.bf16.msra.mxu0 %v3662
      %4151 = vmatpush.bf16.msra.mxu0 %v3590
      %4152 = vmatpush.bf16.msra.mxu0 %v3519
      %4153 = vmatmul.bf16.gmra.mxu0 %v3999
      %v4154 = vpop.f32.mrf.mxu0
      %v4155 = vadd.f32 0.0, %v4154
      %v4156 = vpop.f32.mrf.mxu0
      %v4157 = vadd.f32 0.0, %v4156
      %4158 = vdwg.mxu0
      %4159 = vmatpush.bf16.msra.mxu0 0
      %4160 = vmatpush.bf16.msra.mxu0 0
      %4161 = vmatpush.bf16.msra.mxu0 0
      %4162 = vmatpush.bf16.msra.mxu0 0
      %4163 = vmatpush.bf16.msra.mxu0 0
      %4164 = vmatpush.bf16.msra.mxu0 0
      %4165 = vmatpush.bf16.msra.mxu0 0
      %4166 = vmatpush.bf16.msra.mxu0 %v3980
      %4167 = vmatmul.bf16.gmra.mxu0 %v4003
      %v4168 = vpop.f32.mrf.mxu0
      %v4169 = vadd.f32 %v4155, %v4168
      %v4170 = vpop.f32.mrf.mxu0
      %v4171 = vadd.f32 %v4157, %v4170
      %4172 = vdwg.mxu0
      %4173 = vmatpush.bf16.msra.mxu0 %v3915
      %4174 = vmatpush.bf16.msra.mxu0 %v3885
      %4175 = vmatpush.bf16.msra.mxu0 %v3845
      %4176 = vmatpush.bf16.msra.mxu0 %v3774
      %4177 = vmatpush.bf16.msra.mxu0 %v3703
      %4178 = vmatpush.bf16.msra.mxu0 %v3663
      %4179 = vmatpush.bf16.msra.mxu0 %v3591
      %4180 = vmatpush.bf16.msra.mxu0 %v3520
      %4181 = vmatmul.bf16.gmra.mxu0 %v3999
      %v4182 = vpop.f32.mrf.mxu0
      %v4183 = vadd.f32 0.0, %v4182
      %v4184 = vpop.f32.mrf.mxu0
      %v4185 = vadd.f32 0.0, %v4184
      %4186 = vdwg.mxu0
      %4187 = vmatpush.bf16.msra.mxu0 0
      %4188 = vmatpush.bf16.msra.mxu0 0
      %4189 = vmatpush.bf16.msra.mxu0 0
      %4190 = vmatpush.bf16.msra.mxu0 0
      %4191 = vmatpush.bf16.msra.mxu0 0
      %4192 = vmatpush.bf16.msra.mxu0 0
      %4193 = vmatpush.bf16.msra.mxu0 0
      %4194 = vmatpush.bf16.msra.mxu0 %v3981
      %4195 = vmatmul.bf16.gmra.mxu0 %v4003
      %v4196 = vpop.f32.mrf.mxu0
      %v4197 = vadd.f32 %v4183, %v4196
      %v4198 = vpop.f32.mrf.mxu0
      %v4199 = vadd.f32 %v4185, %v4198
      %4200 = vdwg.mxu0
      %4201 = vmatpush.bf16.msra.mxu0 %v3916
      %4202 = vmatpush.bf16.msra.mxu0 %v3886
      %4203 = vmatpush.bf16.msra.mxu0 %v3846
      %4204 = vmatpush.bf16.msra.mxu0 %v3775
      %4205 = vmatpush.bf16.msra.mxu0 %v3704
      %4206 = vmatpush.bf16.msra.mxu0 %v3664
      %4207 = vmatpush.bf16.msra.mxu0 %v3592
      %4208 = vmatpush.bf16.msra.mxu0 %v3521
      %4209 = vmatmul.bf16.gmra.mxu0 %v3999
      %v4210 = vpop.f32.mrf.mxu0
      %v4211 = vadd.f32 0.0, %v4210
      %v4212 = vpop.f32.mrf.mxu0
      %v4213 = vadd.f32 0.0, %v4212
      %4214 = vdwg.mxu0
      %4215 = vmatpush.bf16.msra.mxu0 0
      %4216 = vmatpush.bf16.msra.mxu0 0
      %4217 = vmatpush.bf16.msra.mxu0 0
      %4218 = vmatpush.bf16.msra.mxu0 0
      %4219 = vmatpush.bf16.msra.mxu0 0
      %4220 = vmatpush.bf16.msra.mxu0 0
      %4221 = vmatpush.bf16.msra.mxu0 0
      %4222 = vmatpush.bf16.msra.mxu0 %v3982
      %4223 = vmatmul.bf16.gmra.mxu0 %v4003
      %v4224 = vpop.f32.mrf.mxu0
      %v4225 = vadd.f32 %v4211, %v4224
      %v4226 = vpop.f32.mrf.mxu0
      %v4227 = vadd.f32 %v4213, %v4226
      %4228 = vdwg.mxu0
      %v4229 = vld [vmem:[%s8] sm:$0xff]
      %v4230 = vld [vmem:[%s8 + $0x8] sm:$0xff]
      %4232 = vset.pattern.permute.xlu0 0
      %4233 = vperm.xlu0 %4232, %v4229
      %v4234 = vpop.permute.xlu0 %4233
      %4237 = vset.pattern.permute.xlu0 0
      %4238 = vperm.xlu0 %4237, %v4230
      %v4239 = vpop.permute.xlu0 %4238
      %v4241 = vmul.f32 %v4029, %v4234
      %v4242 = vmul.f32 %v4057, %v4234
      %v4243 = vmul.f32 %v4085, %v4234
      %v4244 = vmul.f32 %v4113, %v4234
      %v4245 = vmul.f32 %v4141, %v4234
      %v4246 = vmul.f32 %v4169, %v4234
      %v4247 = vmul.f32 %v4197, %v4234
      %v4248 = vmul.f32 %v4225, %v4234
      %v4249 = vmul.f32 %v4031, %v4239
      %v4250 = vmul.f32 %v4059, %v4239
      %v4251 = vmul.f32 %v4087, %v4239
      %v4252 = vmul.f32 %v4115, %v4239
      %v4253 = vmul.f32 %v4143, %v4239
      %v4254 = vmul.f32 %v4171, %v4239
      %v4255 = vmul.f32 %v4199, %v4239
      %v4256 = vmul.f32 %v4227, %v4239
      %v4257 = vld [vmem:[%s9] sm:$0xff]
      %v4258 = vld [vmem:[%s9 + $0x8] sm:$0xff]
      %4260 = vset.pattern.permute.xlu0 0
      %4261 = vperm.xlu0 %4260, %v4257
      %v4262 = vpop.permute.xlu0 %4261
      %4265 = vset.pattern.permute.xlu0 0
      %4266 = vperm.xlu0 %4265, %v4258
      %v4267 = vpop.permute.xlu0 %4266
      %v4269 = vadd.f32 %v4241, %v4262
      %v4270 = vadd.f32 %v4242, %v4262
      %v4271 = vadd.f32 %v4243, %v4262
      %v4272 = vadd.f32 %v4244, %v4262
      %v4273 = vadd.f32 %v4245, %v4262
      %v4274 = vadd.f32 %v4246, %v4262
      %v4275 = vadd.f32 %v4247, %v4262
      %v4276 = vadd.f32 %v4248, %v4262
      %v4277 = vadd.f32 %v4249, %v4267
      %v4278 = vadd.f32 %v4250, %v4267
      %v4279 = vadd.f32 %v4251, %v4267
      %v4280 = vadd.f32 %v4252, %v4267
      %v4281 = vadd.f32 %v4253, %v4267
      %v4282 = vadd.f32 %v4254, %v4267
      %v4283 = vadd.f32 %v4255, %v4267
      %v4284 = vadd.f32 %v4256, %v4267
      %v4285 = vmax.f32 %v4269, 0.0
      %v4286 = vmax.f32 %v4270, 0.0
      %v4287 = vmax.f32 %v4271, 0.0
      %v4288 = vmax.f32 %v4272, 0.0
      %v4289 = vmax.f32 %v4273, 0.0
      %v4290 = vmax.f32 %v4274, 0.0
      %v4291 = vmax.f32 %v4275, 0.0
      %v4292 = vmax.f32 %v4276, 0.0
      %v4293 = vmax.f32 %v4277, 0.0
      %v4294 = vmax.f32 %v4278, 0.0
      %v4295 = vmax.f32 %v4279, 0.0
      %v4296 = vmax.f32 %v4280, 0.0
      %v4297 = vmax.f32 %v4281, 0.0
      %v4298 = vmax.f32 %v4282, 0.0
      %v4299 = vmax.f32 %v4283, 0.0
      %v4300 = vmax.f32 %v4284, 0.0
      %v4301 = vpack.c.bf16 %v4286, %v4285
      %v4302 = vpack.c.bf16 %v4288, %v4287
      %v4303 = vpack.c.bf16 %v4290, %v4289
      %v4304 = vpack.c.bf16 %v4292, %v4291
      %v4305 = vpack.c.bf16 %v4294, %v4293
      %v4306 = vpack.c.bf16 %v4296, %v4295
      %v4307 = vpack.c.bf16 %v4298, %v4297
      %v4308 = vpack.c.bf16 %v4300, %v4299
      %4317 = vrot.lane.b32.xlu0 %v4301, 8
      %v4318 = vpop.permute.xlu0 %4317
      %4319 = vrot.lane.b32.xlu0 %v4302, 8
      %v4320 = vpop.permute.xlu0 %4319
      %4321 = vrot.lane.b32.xlu0 %v4303, 8
      %v4322 = vpop.permute.xlu0 %4321
      %4323 = vrot.lane.b32.xlu0 %v4304, 8
      %v4324 = vpop.permute.xlu0 %4323
      %4325 = vrot.lane.b32.xlu0 %v4305, 8
      %v4326 = vpop.permute.xlu0 %4325
      %4327 = vrot.lane.b32.xlu0 %v4306, 8
      %v4328 = vpop.permute.xlu0 %4327
      %4329 = vrot.lane.b32.xlu0 %v4307, 8
      %v4330 = vpop.permute.xlu0 %4329
      %4331 = vrot.lane.b32.xlu0 %v4308, 8
      %v4332 = vpop.permute.xlu0 %4331
      %v4333 = vrot.slane %v4318, 4
      %v4334 = vrot.slane %v4320, 4
      %v4335 = vrot.slane %v4322, 4
      %v4336 = vrot.slane %v4324, 4
      %v4337 = vrot.slane %v4326, 4
      %v4338 = vrot.slane %v4328, 4
      %v4339 = vrot.slane %v4330, 4
      %v4340 = vrot.slane %v4332, 4
      %v4341 = vsel %vm3387, %v4333, %v4318
      %v4342 = vsel %vm587, %v4333, %v4334
      %v4343 = vsel %vm3387, %v4342, %v4320
      %v4344 = vsel %vm587, %v4334, %v4335
      %v4345 = vsel %vm3387, %v4344, %v4322
      %v4346 = vsel %vm587, %v4335, %v4336
      %v4347 = vsel %vm3387, %v4346, %v4324
      %v4348 = vsel %vm3387, %v4337, %v4326
      %v4349 = vsel %vm587, %v4337, %v4338
      %v4350 = vsel %vm3387, %v4349, %v4328
      %v4351 = vsel %vm587, %v4338, %v4339
      %v4352 = vsel %vm3387, %v4351, %v4330
      %v4353 = vsel %vm587, %v4339, %v4340
      %v4354 = vsel %vm3387, %v4353, %v4332
      %4365 = vst.msk [vmem:[#allocation5 + $0x8] sm:$0xff] %vm528, %v4341
      %4366 = vst [vmem:[#allocation5 + $0x10] sm:$0xff] %v4343
      %4367 = vst [vmem:[#allocation5 + $0x18] sm:$0xff] %v4345
      %4368 = vst [vmem:[#allocation5 + $0x20] sm:$0xff] %v4347
      %4369 = vst.msk [vmem:[#allocation5 + $0x28] sm:$0xf] %vm522, %v4336
      %4370 = vst.msk [vmem:[#allocation5 + $0x3c] sm:$0xff] %vm528, %v4348
      %4371 = vst [vmem:[#allocation5 + $0x44] sm:$0xff] %v4350
      %4372 = vst [vmem:[#allocation5 + $0x4c] sm:$0xff] %v4352
      %4373 = vst [vmem:[#allocation5 + $0x54] sm:$0xff] %v4354
      %4374 = vst.msk [vmem:[#allocation5 + $0x5c] sm:$0xf] %vm522, %v4340
      %v4375 = vld [vmem:[#allocation5] sm:$0xff]
      %v4376 = vld [vmem:[#allocation5 + $0x10] sm:$0xff]
      %v4377 = vld [vmem:[#allocation5 + $0x34] sm:$0xff]
      %v4378 = vld [vmem:[#allocation5 + $0x44] sm:$0xff]
      %vm4379 = vcmp.ge.s32.totalorder %v723, 8
      %vm4380 = vcmp.ge.s32.totalorder %v724, 8
      %vm4381 = vcmp.ge.s32.totalorder %v727, 8
      %vm4382 = vcmp.ge.s32.totalorder %v728, 8
      %v4383 = vsel %vm4379, 1, 0
      %v4384 = vsel %vm4380, 1, 0
      %v4385 = vsel %vm4381, 1, 0
      %v4386 = vsel %vm4382, 1, 0
      %vm4387 = vcmp.eq.s32.totalorder %v4383, 1
      %vm4388 = vcmp.eq.s32.totalorder %v4384, 1
      %vm4389 = vcmp.eq.s32.totalorder %v4385, 1
      %vm4390 = vcmp.eq.s32.totalorder %v4386, 1
      %vm4391 = vmpackc.low %vm4388, %vm4387
      %vm4392 = vmpackc.low %vm4390, %vm4389
      %v4393 = vsel %vm4391, %v4375, 0
      %v4394 = vsel %vm4392, %v4376, 0
      %v4395 = vsel %vm4391, %v4377, 0
      %v4396 = vsel %vm4392, %v4378, 0
      %v4397 = vld [vmem:[#allocation5 + $0x8] sm:$0xff]
      %v4398 = vld [vmem:[#allocation5 + $0x18] sm:$0xff]
      %v4399 = vld [vmem:[#allocation5 + $0x3c] sm:$0xff]
      %v4400 = vld [vmem:[#allocation5 + $0x4c] sm:$0xff]
      %vm4401 = vcmp.lt.s32.totalorder %v723, 24
      %vm4402 = vcmp.lt.s32.totalorder %v724, 24
      %vm4403 = vcmp.lt.s32.totalorder %v725, 24
      %vm4404 = vcmp.lt.s32.totalorder %v726, 24
      %vm4405 = vcmp.lt.s32.totalorder %v727, 24
      %vm4406 = vcmp.lt.s32.totalorder %v728, 24
      %vm4407 = vcmp.lt.s32.totalorder %v729, 24
      %vm4408 = vcmp.lt.s32.totalorder %v730, 24
      %v4409 = vsel %vm4401, 1, 0
      %v4410 = vsel %vm4402, 1, 0
      %v4411 = vsel %vm4403, 1, 0
      %v4412 = vsel %vm4404, 1, 0
      %v4413 = vsel %vm4405, 1, 0
      %v4414 = vsel %vm4406, 1, 0
      %v4415 = vsel %vm4407, 1, 0
      %v4416 = vsel %vm4408, 1, 0
      %vm4417 = vcmp.eq.s32.totalorder %v4409, 1
      %vm4418 = vcmp.eq.s32.totalorder %v4410, 1
      %vm4419 = vcmp.eq.s32.totalorder %v4411, 1
      %vm4420 = vcmp.eq.s32.totalorder %v4412, 1
      %vm4421 = vcmp.eq.s32.totalorder %v4413, 1
      %vm4422 = vcmp.eq.s32.totalorder %v4414, 1
      %vm4423 = vcmp.eq.s32.totalorder %v4415, 1
      %vm4424 = vcmp.eq.s32.totalorder %v4416, 1
      %vm4425 = vmpackc.low %vm4418, %vm4417
      %vm4426 = vmpackc.low %vm4420, %vm4419
      %vm4427 = vmpackc.low %vm4422, %vm4421
      %vm4428 = vmpackc.low %vm4424, %vm4423
      %v4429 = vsel %vm4425, 65537, 0
      %v4430 = vsel %vm4426, 65537, 0
      %v4431 = vsel %vm4427, 65537, 0
      %v4432 = vsel %vm4428, 65537, 0
      %4433 = vrot.lane.b32.xlu0 %v4429, 16
      %v4434 = vpop.permute.xlu0 %4433
      %4435 = vrot.lane.b32.xlu0 %v4430, 16
      %v4436 = vpop.permute.xlu0 %4435
      %4437 = vrot.lane.b32.xlu0 %v4431, 16
      %v4438 = vpop.permute.xlu0 %4437
      %4439 = vrot.lane.b32.xlu0 %v4432, 16
      %v4440 = vpop.permute.xlu0 %4439
      %v4441 = vrot.slane %v4434, 4
      %v4442 = vrot.slane %v4436, 4
      %v4443 = vrot.slane %v4438, 4
      %v4444 = vrot.slane %v4440, 4
      %vm4445 = vcmask 130048
      %v4446 = vsel %vm4445, %v4441, %v4434
      %v4447 = vsel %vm587, %v4441, %v4442
      %v4448 = vsel %vm4445, %v4447, %v4436
      %v4449 = vsel %vm587, %v4442, %v4443
      %v4450 = vsel %vm4445, %v4449, %v4438
      %v4451 = vsel %vm587, %v4443, %v4444
      %v4452 = vsel %vm4445, %v4451, %v4440
      %v4453 = vunpack.c.l.b16 %v4446
      %v4454 = vunpack.c.h.b16 %v4446
      %v4455 = vunpack.c.l.b16 0
      %v4456 = vunpack.c.h.b16 0
      %vm4457 = vcmp.ne.s32.totalorder %v4453, %v4455
      %vm4458 = vcmp.ne.s32.totalorder %v4454, %v4456
      %vm4459 = vmpackc.low %vm4458, %vm4457
      %v4460 = vunpack.c.l.b16 %v4448
      %v4461 = vunpack.c.h.b16 %v4448
      %v4462 = vunpack.c.l.b16 0
      %v4463 = vunpack.c.h.b16 0
      %vm4464 = vcmp.ne.s32.totalorder %v4460, %v4462
      %vm4465 = vcmp.ne.s32.totalorder %v4461, %v4463
      %vm4466 = vmpackc.low %vm4465, %vm4464
      %v4467 = vunpack.c.l.b16 %v4450
      %v4468 = vunpack.c.h.b16 %v4450
      %v4469 = vunpack.c.l.b16 0
      %v4470 = vunpack.c.h.b16 0
      %vm4471 = vcmp.ne.s32.totalorder %v4467, %v4469
      %vm4472 = vcmp.ne.s32.totalorder %v4468, %v4470
      %vm4473 = vmpackc.low %vm4472, %vm4471
      %v4474 = vunpack.c.l.b16 %v4452
      %v4475 = vunpack.c.h.b16 %v4452
      %v4476 = vunpack.c.l.b16 0
      %v4477 = vunpack.c.h.b16 0
      %vm4478 = vcmp.ne.s32.totalorder %v4474, %v4476
      %vm4479 = vcmp.ne.s32.totalorder %v4475, %v4477
      %vm4480 = vmpackc.low %vm4479, %vm4478
      %v4481 = vsel %vm4459, %v4375, 0
      %v4482 = vsel %vm4466, %v4397, 0
      %v4483 = vsel %vm4473, %v4376, 0
      %v4484 = vsel %vm4480, %v4398, 0
      %v4485 = vsel %vm4459, %v4377, 0
      %v4486 = vsel %vm4466, %v4399, 0
      %v4487 = vsel %vm4473, %v4378, 0
      %v4488 = vsel %vm4480, %v4400, 0
      %v4489 = vsel %vm4391, %v4397, 0
      %v4490 = vsel %vm4392, %v4398, 0
      %v4491 = vsel %vm4391, %v4399, 0
      %v4492 = vsel %vm4392, %v4400, 0
      %v4493 = vld [vmem:[#allocation5 + $0x20] sm:$0xff]
      %v4494 = vld [vmem:[#allocation5 + $0x54] sm:$0xff]
      %v4495 = vsel %vm4459, %v4397, 0
      %v4496 = vsel %vm4466, %v4376, 0
      %v4497 = vsel %vm4473, %v4398, 0
      %v4498 = vsel %vm4480, %v4493, 0
      %v4499 = vsel %vm4459, %v4399, 0
      %v4500 = vsel %vm4466, %v4378, 0
      %v4501 = vsel %vm4473, %v4400, 0
      %v4502 = vsel %vm4480, %v4494, 0
      %v4503 = vsel %vm4391, %v4376, 0
      %v4504 = vsel %vm4392, %v4493, 0
      %v4505 = vsel %vm4391, %v4378, 0
      %v4506 = vsel %vm4392, %v4494, 0
      %v4507 = vld [vmem:[#allocation5 + $0x28] sm:$0xff]
      %v4508 = vld [vmem:[#allocation5 + $0x5c] sm:$0xff]
      %v4509 = vsel %vm4459, %v4376, 0
      %v4510 = vsel %vm4466, %v4398, 0
      %v4511 = vsel %vm4473, %v4493, 0
      %v4512 = vsel %vm4480, %v4507, 0
      %v4513 = vsel %vm4459, %v4378, 0
      %v4514 = vsel %vm4466, %v4400, 0
      %v4515 = vsel %vm4473, %v4494, 0
      %v4516 = vsel %vm4480, %v4508, 0
      %v4521 = vunpack.c.l.b16 %v4393
      %v4522 = vunpack.c.h.b16 %v4393
      %v4523 = vunpack.c.l.b16 %v4394
      %v4524 = vunpack.c.h.b16 %v4394
      %v4525 = vunpack.c.l.b16 %v4395
      %v4526 = vunpack.c.h.b16 %v4395
      %v4527 = vunpack.c.l.b16 %v4396
      %v4528 = vunpack.c.h.b16 %v4396
      %v4529 = vpack.c.b16 %v4525, %v4521
      %v4530 = vpack.c.b16 %v4526, %v4522
      %v4531 = vpack.c.b16 %v4527, %v4523
      %v4532 = vpack.c.b16 %v4528, %v4524
      %v4545 = vunpack.c.l.b16 %v4375
      %v4546 = vunpack.c.h.b16 %v4375
      %v4547 = vunpack.c.l.b16 %v4397
      %v4548 = vunpack.c.l.b16 %v4376
      %v4549 = vunpack.c.h.b16 %v4376
      %v4550 = vunpack.c.l.b16 %v4398
      %v4551 = vunpack.c.l.b16 %v4377
      %v4552 = vunpack.c.h.b16 %v4377
      %v4553 = vunpack.c.l.b16 %v4399
      %v4554 = vunpack.c.l.b16 %v4378
      %v4555 = vunpack.c.h.b16 %v4378
      %v4556 = vunpack.c.l.b16 %v4400
      %v4557 = vpack.c.b16 %v4551, %v4545
      %v4558 = vpack.c.b16 %v4552, %v4546
      %v4559 = vpack.c.b16 %v4553, %v4547
      %v4560 = vpack.c.b16 %v4554, %v4548
      %v4561 = vpack.c.b16 %v4555, %v4549
      %v4562 = vpack.c.b16 %v4556, %v4550
      %4563 = vrot.lane.b32.xlu0 %v4557, 120
      %v4564 = vpop.permute.xlu0 %4563
      %4565 = vrot.lane.b32.xlu0 %v4558, 120
      %v4566 = vpop.permute.xlu0 %4565
      %4567 = vrot.lane.b32.xlu0 %v4559, 120
      %v4568 = vpop.permute.xlu0 %4567
      %4569 = vrot.lane.b32.xlu0 %v4560, 120
      %v4570 = vpop.permute.xlu0 %4569
      %4571 = vrot.lane.b32.xlu0 %v4561, 120
      %v4572 = vpop.permute.xlu0 %4571
      %4573 = vrot.lane.b32.xlu0 %v4562, 120
      %v4574 = vpop.permute.xlu0 %4573
      %v4575 = vsel %vm3656, %v4564, %v4566
      %v4576 = vsel %vm3656, %v4566, %v4568
      %v4577 = vsel %vm3656, %v4570, %v4572
      %v4578 = vsel %vm3656, %v4572, %v4574
      %v4591 = vunpack.c.l.b16 %v4481
      %v4592 = vunpack.c.h.b16 %v4481
      %v4593 = vunpack.c.l.b16 %v4482
      %v4594 = vunpack.c.l.b16 %v4483
      %v4595 = vunpack.c.h.b16 %v4483
      %v4596 = vunpack.c.l.b16 %v4484
      %v4597 = vunpack.c.l.b16 %v4485
      %v4598 = vunpack.c.h.b16 %v4485
      %v4599 = vunpack.c.l.b16 %v4486
      %v4600 = vunpack.c.l.b16 %v4487
      %v4601 = vunpack.c.h.b16 %v4487
      %v4602 = vunpack.c.l.b16 %v4488
      %v4603 = vpack.c.b16 %v4597, %v4591
      %v4604 = vpack.c.b16 %v4598, %v4592
      %v4605 = vpack.c.b16 %v4599, %v4593
      %v4606 = vpack.c.b16 %v4600, %v4594
      %v4607 = vpack.c.b16 %v4601, %v4595
      %v4608 = vpack.c.b16 %v4602, %v4596
      %4609 = vrot.lane.b32.xlu0 %v4603, 112
      %v4610 = vpop.permute.xlu0 %4609
      %4611 = vrot.lane.b32.xlu0 %v4604, 112
      %v4612 = vpop.permute.xlu0 %4611
      %4613 = vrot.lane.b32.xlu0 %v4605, 112
      %v4614 = vpop.permute.xlu0 %4613
      %4615 = vrot.lane.b32.xlu0 %v4606, 112
      %v4616 = vpop.permute.xlu0 %4615
      %4617 = vrot.lane.b32.xlu0 %v4607, 112
      %v4618 = vpop.permute.xlu0 %4617
      %4619 = vrot.lane.b32.xlu0 %v4608, 112
      %v4620 = vpop.permute.xlu0 %4619
      %vm4621 = vcmask 916480
      %v4622 = vsel %vm4621, %v4610, %v4612
      %v4623 = vsel %vm4621, %v4612, %v4614
      %v4624 = vsel %vm4621, %v4616, %v4618
      %v4625 = vsel %vm4621, %v4618, %v4620
      %v4634 = vunpack.c.l.b16 %v4489
      %v4635 = vunpack.c.h.b16 %v4489
      %v4636 = vunpack.c.l.b16 %v4490
      %v4637 = vunpack.c.h.b16 %v4490
      %v4638 = vunpack.c.l.b16 %v4491
      %v4639 = vunpack.c.h.b16 %v4491
      %v4640 = vunpack.c.l.b16 %v4492
      %v4641 = vunpack.c.h.b16 %v4492
      %v4642 = vpack.c.b16 %v4638, %v4634
      %v4643 = vpack.c.b16 %v4639, %v4635
      %v4644 = vpack.c.b16 %v4640, %v4636
      %v4645 = vpack.c.b16 %v4641, %v4637
      %v4652 = vunpack.c.h.b16 %v4397
      %v4653 = vunpack.c.h.b16 %v4398
      %v4654 = vunpack.c.l.b16 %v4493
      %v4655 = vunpack.c.h.b16 %v4399
      %v4656 = vunpack.c.h.b16 %v4400
      %v4657 = vunpack.c.l.b16 %v4494
      %v4658 = vpack.c.b16 %v4655, %v4652
      %v4659 = vpack.c.b16 %v4656, %v4653
      %v4660 = vpack.c.b16 %v4657, %v4654
      %4661 = vrot.lane.b32.xlu0 %v4658, 120
      %v4662 = vpop.permute.xlu0 %4661
      %4663 = vrot.lane.b32.xlu0 %v4659, 120
      %v4664 = vpop.permute.xlu0 %4663
      %4665 = vrot.lane.b32.xlu0 %v4660, 120
      %v4666 = vpop.permute.xlu0 %4665
      %v4667 = vsel %vm3656, %v4568, %v4662
      %v4668 = vsel %vm3656, %v4662, %v4570
      %v4669 = vsel %vm3656, %v4574, %v4664
      %v4670 = vsel %vm3656, %v4664, %v4666
      %v4683 = vunpack.c.l.b16 %v4495
      %v4684 = vunpack.c.h.b16 %v4495
      %v4685 = vunpack.c.l.b16 %v4496
      %v4686 = vunpack.c.l.b16 %v4497
      %v4687 = vunpack.c.h.b16 %v4497
      %v4688 = vunpack.c.l.b16 %v4498
      %v4689 = vunpack.c.l.b16 %v4499
      %v4690 = vunpack.c.h.b16 %v4499
      %v4691 = vunpack.c.l.b16 %v4500
      %v4692 = vunpack.c.l.b16 %v4501
      %v4693 = vunpack.c.h.b16 %v4501
      %v4694 = vunpack.c.l.b16 %v4502
      %v4695 = vpack.c.b16 %v4689, %v4683
      %v4696 = vpack.c.b16 %v4690, %v4684
      %v4697 = vpack.c.b16 %v4691, %v4685
      %v4698 = vpack.c.b16 %v4692, %v4686
      %v4699 = vpack.c.b16 %v4693, %v4687
      %v4700 = vpack.c.b16 %v4694, %v4688
      %4701 = vrot.lane.b32.xlu0 %v4695, 112
      %v4702 = vpop.permute.xlu0 %4701
      %4703 = vrot.lane.b32.xlu0 %v4696, 112
      %v4704 = vpop.permute.xlu0 %4703
      %4705 = vrot.lane.b32.xlu0 %v4697, 112
      %v4706 = vpop.permute.xlu0 %4705
      %4707 = vrot.lane.b32.xlu0 %v4698, 112
      %v4708 = vpop.permute.xlu0 %4707
      %4709 = vrot.lane.b32.xlu0 %v4699, 112
      %v4710 = vpop.permute.xlu0 %4709
      %4711 = vrot.lane.b32.xlu0 %v4700, 112
      %v4712 = vpop.permute.xlu0 %4711
      %v4713 = vsel %vm4621, %v4702, %v4704
      %v4714 = vsel %vm4621, %v4704, %v4706
      %v4715 = vsel %vm4621, %v4708, %v4710
      %v4716 = vsel %vm4621, %v4710, %v4712
      %v4725 = vunpack.c.l.b16 %v4503
      %v4726 = vunpack.c.h.b16 %v4503
      %v4727 = vunpack.c.l.b16 %v4504
      %v4728 = vunpack.c.h.b16 %v4504
      %v4729 = vunpack.c.l.b16 %v4505
      %v4730 = vunpack.c.h.b16 %v4505
      %v4731 = vunpack.c.l.b16 %v4506
      %v4732 = vunpack.c.h.b16 %v4506
      %v4733 = vpack.c.b16 %v4729, %v4725
      %v4734 = vpack.c.b16 %v4730, %v4726
      %v4735 = vpack.c.b16 %v4731, %v4727
      %v4736 = vpack.c.b16 %v4732, %v4728
      %v4743 = vunpack.c.h.b16 %v4493
      %v4744 = vunpack.c.l.b16 %v4507
      %v4745 = vunpack.c.h.b16 %v4494
      %v4746 = vunpack.c.l.b16 %v4508
      %v4747 = vpack.c.b16 %v4745, %v4743
      %v4748 = vpack.c.b16 %v4746, %v4744
      %4749 = vrot.lane.b32.xlu0 %v4747, 120
      %v4750 = vpop.permute.xlu0 %4749
      %4751 = vrot.lane.b32.xlu0 %v4748, 120
      %v4752 = vpop.permute.xlu0 %4751
      %v4753 = vsel %vm3656, %v4666, %v4750
      %v4754 = vsel %vm3656, %v4750, %v4752
      %v4765 = vunpack.c.l.b16 %v4509
      %v4766 = vunpack.c.h.b16 %v4509
      %v4767 = vunpack.c.l.b16 %v4510
      %v4768 = vunpack.c.l.b16 %v4511
      %v4769 = vunpack.c.h.b16 %v4511
      %v4770 = vunpack.c.l.b16 %v4512
      %v4771 = vunpack.c.l.b16 %v4513
      %v4772 = vunpack.c.h.b16 %v4513
      %v4773 = vunpack.c.l.b16 %v4514
      %v4774 = vunpack.c.l.b16 %v4515
      %v4775 = vunpack.c.h.b16 %v4515
      %v4776 = vunpack.c.l.b16 %v4516
      %v4777 = vpack.c.b16 %v4771, %v4765
      %v4778 = vpack.c.b16 %v4772, %v4766
      %v4779 = vpack.c.b16 %v4773, %v4767
      %v4780 = vpack.c.b16 %v4774, %v4768
      %v4781 = vpack.c.b16 %v4775, %v4769
      %v4782 = vpack.c.b16 %v4776, %v4770
      %4783 = vrot.lane.b32.xlu0 %v4777, 112
      %v4784 = vpop.permute.xlu0 %4783
      %4785 = vrot.lane.b32.xlu0 %v4778, 112
      %v4786 = vpop.permute.xlu0 %4785
      %4787 = vrot.lane.b32.xlu0 %v4779, 112
      %v4788 = vpop.permute.xlu0 %4787
      %4789 = vrot.lane.b32.xlu0 %v4780, 112
      %v4790 = vpop.permute.xlu0 %4789
      %4791 = vrot.lane.b32.xlu0 %v4781, 112
      %v4792 = vpop.permute.xlu0 %4791
      %4793 = vrot.lane.b32.xlu0 %v4782, 112
      %v4794 = vpop.permute.xlu0 %4793
      %v4795 = vsel %vm4621, %v4784, %v4786
      %v4796 = vsel %vm4621, %v4786, %v4788
      %v4797 = vsel %vm4621, %v4790, %v4792
      %v4798 = vsel %vm4621, %v4792, %v4794
      %v4803 = vld [vmem:[%s10] sm:$0xff]
      %v4804 = vld [vmem:[%s10 + $0x8] sm:$0xff]
      %v4805 = vld [vmem:[%s10 + $0x10] sm:$0xff]
      %v4806 = vld [vmem:[%s10 + $0x18] sm:$0xff]
      %v4811 = vunpack.c.l.b16 %v4803
      %v4812 = vunpack.c.h.b16 %v4803
      %v4813 = vunpack.c.l.b16 %v4804
      %v4814 = vunpack.c.h.b16 %v4804
      %v4815 = vunpack.c.l.b16 %v4805
      %v4816 = vunpack.c.h.b16 %v4805
      %v4817 = vunpack.c.l.b16 %v4806
      %v4818 = vunpack.c.h.b16 %v4806
      %v4819 = vpack.c.b16 %v4813, %v4811
      %v4820 = vpack.c.b16 %v4814, %v4812
      %v4821 = vpack.c.b16 %v4817, %v4815
      %v4822 = vpack.c.b16 %v4818, %v4816
      %v4826 = vsel %vm1690, %v4820, 0
      %v4829 = vsel %vm1690, %v4822, 0
      %4831 = vmatpush.bf16.msra.mxu0 %v4577
      %4832 = vmatpush.bf16.msra.mxu0 %v4733
      %4833 = vmatpush.bf16.msra.mxu0 %v4713
      %4834 = vmatpush.bf16.msra.mxu0 %v4667
      %4835 = vmatpush.bf16.msra.mxu0 %v4642
      %4836 = vmatpush.bf16.msra.mxu0 %v4622
      %4837 = vmatpush.bf16.msra.mxu0 %v4575
      %4838 = vmatpush.bf16.msra.mxu0 %v4529
      %4839 = vmatmul.bf16.gmra.mxu0 %v4819
      %v4840 = vpop.f32.mrf.mxu0
      %v4841 = vadd.f32 0.0, %v4840
      %v4842 = vpop.f32.mrf.mxu0
      %v4843 = vadd.f32 0.0, %v4842
      %4844 = vmatmul.bf16.gmra.mxu0 %v4821
      %v4845 = vpop.f32.mrf.mxu0
      %v4846 = vadd.f32 0.0, %v4845
      %v4847 = vpop.f32.mrf.mxu0
      %v4848 = vadd.f32 0.0, %v4847
      %4849 = vdwg.mxu0
      %4850 = vmatpush.bf16.msra.mxu0 0
      %4851 = vmatpush.bf16.msra.mxu0 0
      %4852 = vmatpush.bf16.msra.mxu0 0
      %4853 = vmatpush.bf16.msra.mxu0 0
      %4854 = vmatpush.bf16.msra.mxu0 0
      %4855 = vmatpush.bf16.msra.mxu0 0
      %4856 = vmatpush.bf16.msra.mxu0 0
      %4857 = vmatpush.bf16.msra.mxu0 %v4795
      %4858 = vmatmul.bf16.gmra.mxu0 %v4826
      %v4859 = vpop.f32.mrf.mxu0
      %v4860 = vadd.f32 %v4841, %v4859
      %v4861 = vpop.f32.mrf.mxu0
      %v4862 = vadd.f32 %v4843, %v4861
      %4863 = vmatmul.bf16.gmra.mxu0 %v4829
      %v4864 = vpop.f32.mrf.mxu0
      %v4865 = vadd.f32 %v4846, %v4864
      %v4866 = vpop.f32.mrf.mxu0
      %v4867 = vadd.f32 %v4848, %v4866
      %4868 = vdwg.mxu0
      %4869 = vmatpush.bf16.msra.mxu0 %v4578
      %4870 = vmatpush.bf16.msra.mxu0 %v4734
      %4871 = vmatpush.bf16.msra.mxu0 %v4714
      %4872 = vmatpush.bf16.msra.mxu0 %v4668
      %4873 = vmatpush.bf16.msra.mxu0 %v4643
      %4874 = vmatpush.bf16.msra.mxu0 %v4623
      %4875 = vmatpush.bf16.msra.mxu0 %v4576
      %4876 = vmatpush.bf16.msra.mxu0 %v4530
      %4877 = vmatmul.bf16.gmra.mxu0 %v4819
      %v4878 = vpop.f32.mrf.mxu0
      %v4879 = vadd.f32 0.0, %v4878
      %v4880 = vpop.f32.mrf.mxu0
      %v4881 = vadd.f32 0.0, %v4880
      %4882 = vmatmul.bf16.gmra.mxu0 %v4821
      %v4883 = vpop.f32.mrf.mxu0
      %v4884 = vadd.f32 0.0, %v4883
      %v4885 = vpop.f32.mrf.mxu0
      %v4886 = vadd.f32 0.0, %v4885
      %4887 = vdwg.mxu0
      %4888 = vmatpush.bf16.msra.mxu0 0
      %4889 = vmatpush.bf16.msra.mxu0 0
      %4890 = vmatpush.bf16.msra.mxu0 0
      %4891 = vmatpush.bf16.msra.mxu0 0
      %4892 = vmatpush.bf16.msra.mxu0 0
      %4893 = vmatpush.bf16.msra.mxu0 0
      %4894 = vmatpush.bf16.msra.mxu0 0
      %4895 = vmatpush.bf16.msra.mxu0 %v4796
      %4896 = vmatmul.bf16.gmra.mxu0 %v4826
      %v4897 = vpop.f32.mrf.mxu0
      %v4898 = vadd.f32 %v4879, %v4897
      %v4899 = vpop.f32.mrf.mxu0
      %v4900 = vadd.f32 %v4881, %v4899
      %4901 = vmatmul.bf16.gmra.mxu0 %v4829
      %v4902 = vpop.f32.mrf.mxu0
      %v4903 = vadd.f32 %v4884, %v4902
      %v4904 = vpop.f32.mrf.mxu0
      %v4905 = vadd.f32 %v4886, %v4904
      %4906 = vdwg.mxu0
      %4907 = vmatpush.bf16.msra.mxu0 %v4753
      %4908 = vmatpush.bf16.msra.mxu0 %v4735
      %4909 = vmatpush.bf16.msra.mxu0 %v4715
      %4910 = vmatpush.bf16.msra.mxu0 %v4669
      %4911 = vmatpush.bf16.msra.mxu0 %v4644
      %4912 = vmatpush.bf16.msra.mxu0 %v4624
      %4913 = vmatpush.bf16.msra.mxu0 %v4577
      %4914 = vmatpush.bf16.msra.mxu0 %v4531
      %4915 = vmatmul.bf16.gmra.mxu0 %v4819
      %v4916 = vpop.f32.mrf.mxu0
      %v4917 = vadd.f32 0.0, %v4916
      %v4918 = vpop.f32.mrf.mxu0
      %v4919 = vadd.f32 0.0, %v4918
      %4920 = vmatmul.bf16.gmra.mxu0 %v4821
      %v4921 = vpop.f32.mrf.mxu0
      %v4922 = vadd.f32 0.0, %v4921
      %v4923 = vpop.f32.mrf.mxu0
      %v4924 = vadd.f32 0.0, %v4923
      %4925 = vdwg.mxu0
      %4926 = vmatpush.bf16.msra.mxu0 0
      %4927 = vmatpush.bf16.msra.mxu0 0
      %4928 = vmatpush.bf16.msra.mxu0 0
      %4929 = vmatpush.bf16.msra.mxu0 0
      %4930 = vmatpush.bf16.msra.mxu0 0
      %4931 = vmatpush.bf16.msra.mxu0 0
      %4932 = vmatpush.bf16.msra.mxu0 0
      %4933 = vmatpush.bf16.msra.mxu0 %v4797
      %4934 = vmatmul.bf16.gmra.mxu0 %v4826
      %v4935 = vpop.f32.mrf.mxu0
      %v4936 = vadd.f32 %v4917, %v4935
      %v4937 = vpop.f32.mrf.mxu0
      %v4938 = vadd.f32 %v4919, %v4937
      %4939 = vmatmul.bf16.gmra.mxu0 %v4829
      %v4940 = vpop.f32.mrf.mxu0
      %v4941 = vadd.f32 %v4922, %v4940
      %v4942 = vpop.f32.mrf.mxu0
      %v4943 = vadd.f32 %v4924, %v4942
      %4944 = vdwg.mxu0
      %4945 = vmatpush.bf16.msra.mxu0 %v4754
      %4946 = vmatpush.bf16.msra.mxu0 %v4736
      %4947 = vmatpush.bf16.msra.mxu0 %v4716
      %4948 = vmatpush.bf16.msra.mxu0 %v4670
      %4949 = vmatpush.bf16.msra.mxu0 %v4645
      %4950 = vmatpush.bf16.msra.mxu0 %v4625
      %4951 = vmatpush.bf16.msra.mxu0 %v4578
      %4952 = vmatpush.bf16.msra.mxu0 %v4532
      %4953 = vmatmul.bf16.gmra.mxu0 %v4819
      %v4954 = vpop.f32.mrf.mxu0
      %v4955 = vadd.f32 0.0, %v4954
      %v4956 = vpop.f32.mrf.mxu0
      %v4957 = vadd.f32 0.0, %v4956
      %4958 = vmatmul.bf16.gmra.mxu0 %v4821
      %v4959 = vpop.f32.mrf.mxu0
      %v4960 = vadd.f32 0.0, %v4959
      %v4961 = vpop.f32.mrf.mxu0
      %v4962 = vadd.f32 0.0, %v4961
      %4963 = vdwg.mxu0
      %4964 = vmatpush.bf16.msra.mxu0 0
      %4965 = vmatpush.bf16.msra.mxu0 0
      %4966 = vmatpush.bf16.msra.mxu0 0
      %4967 = vmatpush.bf16.msra.mxu0 0
      %4968 = vmatpush.bf16.msra.mxu0 0
      %4969 = vmatpush.bf16.msra.mxu0 0
      %4970 = vmatpush.bf16.msra.mxu0 0
      %4971 = vmatpush.bf16.msra.mxu0 %v4798
      %4972 = vmatmul.bf16.gmra.mxu0 %v4826
      %v4973 = vpop.f32.mrf.mxu0
      %v4974 = vadd.f32 %v4955, %v4973
      %v4975 = vpop.f32.mrf.mxu0
      %v4976 = vadd.f32 %v4957, %v4975
      %4977 = vmatmul.bf16.gmra.mxu0 %v4829
      %v4978 = vpop.f32.mrf.mxu0
      %v4979 = vadd.f32 %v4960, %v4978
      %v4980 = vpop.f32.mrf.mxu0
      %v4981 = vadd.f32 %v4962, %v4980
      %4982 = vdwg.mxu0
      %v4983 = vld [vmem:[%s11] sm:$0xff]
      %v4984 = vld [vmem:[%s11 + $0x8] sm:$0xff]
      %v4985 = vld [vmem:[%s11 + $0x10] sm:$0xff]
      %v4986 = vld [vmem:[%s11 + $0x18] sm:$0xff]
      %4988 = vset.pattern.permute.xlu0 0
      %4989 = vperm.xlu0 %4988, %v4983
      %v4990 = vpop.permute.xlu0 %4989
      %4993 = vset.pattern.permute.xlu0 0
      %4994 = vperm.xlu0 %4993, %v4984
      %v4995 = vpop.permute.xlu0 %4994
      %4998 = vset.pattern.permute.xlu0 0
      %4999 = vperm.xlu0 %4998, %v4985
      %v5000 = vpop.permute.xlu0 %4999
      %5003 = vset.pattern.permute.xlu0 0
      %5004 = vperm.xlu0 %5003, %v4986
      %v5005 = vpop.permute.xlu0 %5004
      %v5007 = vmul.f32 %v4860, %v4990
      %v5008 = vmul.f32 %v4898, %v4990
      %v5009 = vmul.f32 %v4936, %v4990
      %v5010 = vmul.f32 %v4974, %v4990
      %v5011 = vmul.f32 %v4862, %v4995
      %v5012 = vmul.f32 %v4900, %v4995
      %v5013 = vmul.f32 %v4938, %v4995
      %v5014 = vmul.f32 %v4976, %v4995
      %v5015 = vmul.f32 %v4865, %v5000
      %v5016 = vmul.f32 %v4903, %v5000
      %v5017 = vmul.f32 %v4941, %v5000
      %v5018 = vmul.f32 %v4979, %v5000
      %v5019 = vmul.f32 %v4867, %v5005
      %v5020 = vmul.f32 %v4905, %v5005
      %v5021 = vmul.f32 %v4943, %v5005
      %v5022 = vmul.f32 %v4981, %v5005
      %v5023 = vld [vmem:[%s12] sm:$0xff]
      %v5024 = vld [vmem:[%s12 + $0x8] sm:$0xff]
      %v5025 = vld [vmem:[%s12 + $0x10] sm:$0xff]
      %v5026 = vld [vmem:[%s12 + $0x18] sm:$0xff]
      %5028 = vset.pattern.permute.xlu0 0
      %5029 = vperm.xlu0 %5028, %v5023
      %v5030 = vpop.permute.xlu0 %5029
      %5033 = vset.pattern.permute.xlu0 0
      %5034 = vperm.xlu0 %5033, %v5024
      %v5035 = vpop.permute.xlu0 %5034
      %5038 = vset.pattern.permute.xlu0 0
      %5039 = vperm.xlu0 %5038, %v5025
      %v5040 = vpop.permute.xlu0 %5039
      %5043 = vset.pattern.permute.xlu0 0
      %5044 = vperm.xlu0 %5043, %v5026
      %v5045 = vpop.permute.xlu0 %5044
      %v5047 = vadd.f32 %v5007, %v5030
      %v5048 = vadd.f32 %v5008, %v5030
      %v5049 = vadd.f32 %v5009, %v5030
      %v5050 = vadd.f32 %v5010, %v5030
      %v5051 = vadd.f32 %v5011, %v5035
      %v5052 = vadd.f32 %v5012, %v5035
      %v5053 = vadd.f32 %v5013, %v5035
      %v5054 = vadd.f32 %v5014, %v5035
      %v5055 = vadd.f32 %v5015, %v5040
      %v5056 = vadd.f32 %v5016, %v5040
      %v5057 = vadd.f32 %v5017, %v5040
      %v5058 = vadd.f32 %v5018, %v5040
      %v5059 = vadd.f32 %v5019, %v5045
      %v5060 = vadd.f32 %v5020, %v5045
      %v5061 = vadd.f32 %v5021, %v5045
      %v5062 = vadd.f32 %v5022, %v5045
      %v5063 = vmax.f32 %v5047, 0.0
      %v5064 = vmax.f32 %v5048, 0.0
      %v5065 = vmax.f32 %v5049, 0.0
      %v5066 = vmax.f32 %v5050, 0.0
      %v5067 = vmax.f32 %v5051, 0.0
      %v5068 = vmax.f32 %v5052, 0.0
      %v5069 = vmax.f32 %v5053, 0.0
      %v5070 = vmax.f32 %v5054, 0.0
      %v5071 = vmax.f32 %v5055, 0.0
      %v5072 = vmax.f32 %v5056, 0.0
      %v5073 = vmax.f32 %v5057, 0.0
      %v5074 = vmax.f32 %v5058, 0.0
      %v5075 = vmax.f32 %v5059, 0.0
      %v5076 = vmax.f32 %v5060, 0.0
      %v5077 = vmax.f32 %v5061, 0.0
      %v5078 = vmax.f32 %v5062, 0.0
      %v5079 = vpack.c.bf16 %v5064, %v5063
      %v5080 = vpack.c.bf16 %v5066, %v5065
      %v5081 = vpack.c.bf16 %v5068, %v5067
      %v5082 = vpack.c.bf16 %v5070, %v5069
      %v5083 = vpack.c.bf16 %v5072, %v5071
      %v5084 = vpack.c.bf16 %v5074, %v5073
      %v5085 = vpack.c.bf16 %v5076, %v5075
      %v5086 = vpack.c.bf16 %v5078, %v5077
      %5088 = vset.pattern.permute.xlu0 0
      %5089 = vperm.xlu0 %5088, %v5079
      %v5090 = vpop.permute.xlu0 %5089
      %v5093 = vunpack.c.l.s4 839922192
      %v5094 = vunpack.c.0.s8 %v5093
      %v5095 = vperm.slane %v5090, %v5094
      %5097 = vset.pattern.permute.xlu0 0
      %5098 = vperm.xlu0 %5097, %v5081
      %v5099 = vpop.permute.xlu0 %5098
      %v5102 = vunpack.c.l.s4 839922192
      %v5103 = vunpack.c.0.s8 %v5102
      %v5104 = vperm.slane %v5099, %v5103
      %5106 = vset.pattern.permute.xlu0 0
      %5107 = vperm.xlu0 %5106, %v5083
      %v5108 = vpop.permute.xlu0 %5107
      %v5111 = vunpack.c.l.s4 839922192
      %v5112 = vunpack.c.0.s8 %v5111
      %v5113 = vperm.slane %v5108, %v5112
      %5115 = vset.pattern.permute.xlu0 0
      %5116 = vperm.xlu0 %5115, %v5085
      %v5117 = vpop.permute.xlu0 %5116
      %v5120 = vunpack.c.l.s4 839922192
      %v5121 = vunpack.c.0.s8 %v5120
      %v5122 = vperm.slane %v5117, %v5121
      %5123 = vset.pattern.permute.xlu0 16
      %5124 = vperm.xlu0 %5123, %v5079
      %v5125 = vpop.permute.xlu0 %5124
      %v5128 = vunpack.c.l.s4 839922192
      %v5129 = vunpack.c.0.s8 %v5128
      %v5130 = vperm.slane %v5125, %v5129
      %5131 = vset.pattern.permute.xlu0 16
      %5132 = vperm.xlu0 %5131, %v5081
      %v5133 = vpop.permute.xlu0 %5132
      %v5136 = vunpack.c.l.s4 839922192
      %v5137 = vunpack.c.0.s8 %v5136
      %v5138 = vperm.slane %v5133, %v5137
      %5139 = vset.pattern.permute.xlu0 16
      %5140 = vperm.xlu0 %5139, %v5083
      %v5141 = vpop.permute.xlu0 %5140
      %v5144 = vunpack.c.l.s4 839922192
      %v5145 = vunpack.c.0.s8 %v5144
      %v5146 = vperm.slane %v5141, %v5145
      %5147 = vset.pattern.permute.xlu0 16
      %5148 = vperm.xlu0 %5147, %v5085
      %v5149 = vpop.permute.xlu0 %5148
      %v5152 = vunpack.c.l.s4 839922192
      %v5153 = vunpack.c.0.s8 %v5152
      %v5154 = vperm.slane %v5149, %v5153
      %5156 = vset.pattern.permute.xlu0 0
      %5157 = vperm.xlu0 %5156, %v5080
      %v5158 = vpop.permute.xlu0 %5157
      %v5161 = vunpack.c.l.s4 839922192
      %v5162 = vunpack.c.0.s8 %v5161
      %v5163 = vperm.slane %v5158, %v5162
      %5165 = vset.pattern.permute.xlu0 0
      %5166 = vperm.xlu0 %5165, %v5082
      %v5167 = vpop.permute.xlu0 %5166
      %v5170 = vunpack.c.l.s4 839922192
      %v5171 = vunpack.c.0.s8 %v5170
      %v5172 = vperm.slane %v5167, %v5171
      %5174 = vset.pattern.permute.xlu0 0
      %5175 = vperm.xlu0 %5174, %v5084
      %v5176 = vpop.permute.xlu0 %5175
      %v5179 = vunpack.c.l.s4 839922192
      %v5180 = vunpack.c.0.s8 %v5179
      %v5181 = vperm.slane %v5176, %v5180
      %5183 = vset.pattern.permute.xlu0 0
      %5184 = vperm.xlu0 %5183, %v5086
      %v5185 = vpop.permute.xlu0 %5184
      %v5188 = vunpack.c.l.s4 839922192
      %v5189 = vunpack.c.0.s8 %v5188
      %v5190 = vperm.slane %v5185, %v5189
      %5191 = vset.pattern.permute.xlu0 16
      %5192 = vperm.xlu0 %5191, %v5080
      %v5193 = vpop.permute.xlu0 %5192
      %v5196 = vunpack.c.l.s4 839922192
      %v5197 = vunpack.c.0.s8 %v5196
      %v5198 = vperm.slane %v5193, %v5197
      %5199 = vset.pattern.permute.xlu0 16
      %5200 = vperm.xlu0 %5199, %v5082
      %v5201 = vpop.permute.xlu0 %5200
      %v5204 = vunpack.c.l.s4 839922192
      %v5205 = vunpack.c.0.s8 %v5204
      %v5206 = vperm.slane %v5201, %v5205
      %5207 = vset.pattern.permute.xlu0 16
      %5208 = vperm.xlu0 %5207, %v5084
      %v5209 = vpop.permute.xlu0 %5208
      %v5212 = vunpack.c.l.s4 839922192
      %v5213 = vunpack.c.0.s8 %v5212
      %v5214 = vperm.slane %v5209, %v5213
      %5215 = vset.pattern.permute.xlu0 16
      %5216 = vperm.xlu0 %5215, %v5086
      %v5217 = vpop.permute.xlu0 %5216
      %v5220 = vunpack.c.l.s4 839922192
      %v5221 = vunpack.c.0.s8 %v5220
      %v5222 = vperm.slane %v5217, %v5221
      %v5227 = vunpack.c.l.b16 %v5095
      %v5228 = vunpack.c.l.b16 %v5104
      %v5229 = vunpack.c.l.b16 %v5113
      %v5230 = vunpack.c.l.b16 %v5122
      %v5231 = vpack.c.b16 %v5228, %v5227
      %v5232 = vpack.c.b16 %v5230, %v5229
      %v5237 = vunpack.c.l.b16 %v5130
      %v5238 = vunpack.c.l.b16 %v5138
      %v5239 = vunpack.c.l.b16 %v5146
      %v5240 = vunpack.c.l.b16 %v5154
      %v5241 = vpack.c.b16 %v5238, %v5237
      %v5242 = vpack.c.b16 %v5240, %v5239
      %v5247 = vunpack.c.l.b16 %v5163
      %v5248 = vunpack.c.l.b16 %v5172
      %v5249 = vunpack.c.l.b16 %v5181
      %v5250 = vunpack.c.l.b16 %v5190
      %v5251 = vpack.c.b16 %v5248, %v5247
      %v5252 = vpack.c.b16 %v5250, %v5249
      %v5257 = vunpack.c.l.b16 %v5198
      %v5258 = vunpack.c.l.b16 %v5206
      %v5259 = vunpack.c.l.b16 %v5214
      %v5260 = vunpack.c.l.b16 %v5222
      %v5261 = vpack.c.b16 %v5258, %v5257
      %v5262 = vpack.c.b16 %v5260, %v5259
      %vm5263 = vcmask 261120
      %v5266 = vsel %vm5263, %v5231, %v5241
      %v5269 = vsel %vm5263, %v5232, %v5242
      %vm5270 = vcmask 523264
      %v5272 = vsel %vm5270, %v5266, %v5251
      %v5274 = vsel %vm5270, %v5269, %v5252
      %vm5275 = vcmask 785408
      %v5277 = vsel %vm5275, %v5272, %v5261
      %v5280 = vsel %vm5275, %v5274, %v5262
      %v5282 = vunpack.c.l.bf16 %v5277
      %v5283 = vunpack.c.h.bf16 %v5277
      %v5284 = vunpack.c.l.bf16 %v5280
      %v5285 = vunpack.c.h.bf16 %v5280
      %v5286 = vld [vmem:[%s13] sm:$0xff]
      %v5287 = vld [vmem:[%s13 + $0x8] sm:$0xff]
      %v5288 = vld [vmem:[%s13 + $0x10] sm:$0xff]
      %v5289 = vld [vmem:[%s13 + $0x18] sm:$0xff]
      %v5290 = vmul.f32 %v5282, %v5286
      %v5291 = vmul.f32 %v5283, %v5287
      %v5292 = vmul.f32 %v5284, %v5288
      %v5293 = vmul.f32 %v5285, %v5289
      %v5294 = vadd.f32 %v5290, %v5291
      %v5295 = vadd.f32 %v5294, %v5292
      %v5296 = vadd.f32 %v5295, %v5293
      %v5297 = vrot.slane %v5296, 4
      %v5298 = vadd.f32 %v5296, %v5297
      %v5299 = vrot.slane %v5298, 2
      %v5300 = vadd.f32 %v5298, %v5299
      %v5301 = vrot.slane %v5300, 1
      %v5302 = vadd.f32 %v5300, %v5301
      %v5303 = vld [vmem:[%s14] sm:$0x1]
      %v5304 = vadd.f32 %v5302, %v5303
      %5305 = vst [vmem:[%s490] sm:$0x1] %v5304
      %p5306 = scmp.lt.s32.totalorder %s26, 1
      %s5307 = scalar_select %p5306, %s26, 1
      %s5308 = scalar_lea.vmem %s15, %s5307
      // Predicated region
      $region81: #{conv_stem_forward.1} parent=79 // pred_check
        %p5309 = pneg %p364
      $region82: #{conv_stem_forward.1} parent=79 // pred_check_branch
        %5311 = sbr.rel (%p5309) target = $region84
      $region83: #{conv_stem_forward.1} parent=79 // pred_region
        _
      $region84: #{conv_stem_forward.1} parent=79 // pred_fallthru
        _
    $region80: #{conv_stem_forward.1} parent=5 // pred_fallthru
      _
    %p5312 = scmp.le.s32.totalorder 2, %s21
    // Predicated region
    $region85: #{conv_stem_forward.1} parent=5 // pred_check
      %p5313 = pneg %p5312
    $region86: #{conv_stem_forward.1} parent=5 // pred_check_branch
      %5315 = sbr.rel (%p5313) target = $region88
    $region87: #{conv_stem_forward.1} parent=5 // pred_region
      %s5316 = ssub.s32 %s21, 2
      // Predicated region
      $region89: #{conv_stem_forward.1} parent=87 // pred_check
        %p5317 = pneg %p370
      $region90: #{conv_stem_forward.1} parent=87 // pred_check_branch
        %5319 = sbr.rel (%p5317) target = $region92
      $region91: #{conv_stem_forward.1} parent=87 // pred_region
        %p5320 = scmp.lt.s32.totalorder %s27, 1
        %s5321 = scalar_select %p5320, %s27, 1
        %s5322 = scalar_lea.vmem %s15, %s5321
      $region92: #{conv_stem_forward.1} parent=87 // pred_fallthru
        _
    $region88: #{conv_stem_forward.1} parent=5 // pred_fallthru
      _
  $region6: #{conv_stem_forward.1} parent=0 // loop_footer
    %s25 = sadd.s32 1, %s21
  $region7: #{conv_stem_forward.1} parent=0 // loop_footer_branch
    %20 = sbr.rel target = $region3
  $region8: #{conv_stem_forward.1} parent=0 // loop_exit
    _

</llo_original>
